<compile_context>
chip_gen: v6e
topology: v6e:2x2x1
jax: 0.10.0
libtpu: 0.0.40
codegen_flags: <defaults>
</compile_context>

<pallas_src>
import math

import jax
import jax.numpy as jnp
from jax.experimental import pallas as pl
from jax.experimental.pallas import tpu as pltpu


def _lstm_kernel(x_ref, h0_ref, c0_ref, wf_ref,
                 bi_ref, bg_ref, bf_ref, bo_ref,
                 out_ref, hfin_ref, cfin_ref):
    L, N, H = x_ref.shape

    # h_0 is part of the output sequence.
    out_ref[0] = h0_ref[...].astype(out_ref.dtype)

    h0 = h0_ref[...].astype(jnp.float32)
    c0 = c0_ref[...].astype(jnp.float32)
    w_fused = wf_ref[...]                 # (H, 4H) bf16, column blocks [ i | g | f | o ]
    bi = bi_ref[...]                      # (1, H) f32
    bg = bg_ref[...]
    bf = bf_ref[...]
    bo = bo_ref[...]

    def step(t, carry):
        h, c = carry                                          # f32 (N, H) carries
        x_t = x_ref[t].astype(jnp.bfloat16)                   # (N, H)

        # xh = x_t @ h  (the module's "conv"); f32 accumulation.
        xh = jnp.dot(x_t, h.astype(jnp.bfloat16),
                     preferred_element_type=jnp.float32)

        # One fused gate matmul: (2N, H) @ (H, 4H) -> (2N, 4H), 128-lane dense.
        lhs = jnp.concatenate([h, xh], axis=0).astype(jnp.bfloat16)
        gates = jnp.dot(lhs, w_fused, preferred_element_type=jnp.float32)

        i = jax.nn.sigmoid(gates[:N, 0 * H:1 * H] + bi)       # uses h rows
        g = jnp.tanh(gates[:N, 1 * H:2 * H] + bg)             # uses h rows
        f = jax.nn.sigmoid(gates[N:, 2 * H:3 * H] + bf)       # uses xh rows
        o = jax.nn.sigmoid(gates[N:, 3 * H:4 * H] + bo)       # uses xh rows

        c_new = f * c + jnp.dot(x_t, (i * g).astype(jnp.bfloat16),
                                preferred_element_type=jnp.float32)
        h_new = o * jnp.tanh(c_new)

        out_ref[t + 1] = h_new.astype(out_ref.dtype)
        return h_new, c_new

    h_fin, c_fin = jax.lax.fori_loop(0, L, step, (h0, c0), unroll=True)

    hfin_ref[...] = h_fin.astype(hfin_ref.dtype)
    cfin_ref[...] = c_fin.astype(cfin_ref.dtype)


def my_lstm_forward(x, params, hx=None):
    """x: (L, N, H) with N == H.  Returns (out, (h_L, c_L)) like the PyTorch module."""
    L, N, H = x.shape
    assert N == H, "module semantics require N == hidden_size (adj @ h)"

    Whi, bi, Whf, bf, Whg, bg, Who, bo = params

    if hx is None:
        h0 = jnp.zeros((N, H), x.dtype)
        c0 = jnp.zeros((N, H), x.dtype)
    else:
        h0, c0 = hx
        assert h0.shape == (N, H) and c0.shape == (N, H), "hx must be (N, H) pairs"
        h0 = h0.astype(x.dtype)
        c0 = c0.astype(x.dtype)

    # Fused weight: columns [ i | g | f | o ]; bf16 for native-rate MXU.
    w_fused = jnp.concatenate([Whi, Whg, Whf, Who], axis=1).astype(jnp.bfloat16)  # (H, 4H)
    bi2, bg2, bf2, bo2 = (b.reshape(1, H).astype(jnp.float32) for b in (bi, bg, bf, bo))

    # Explicit VMEM budget: everything is resident in one invocation.
    itemsize = jnp.dtype(x.dtype).itemsize
    footprint = (
        x.size * itemsize                    # x (L, N, H)
        + (L + 1) * N * H * itemsize         # out slab
        + 4 * N * H * 4                      # h0/c0 inputs + final h/c outputs
        + w_fused.size * 2                   # fused bf16 weights
        + 4 * 8 * 128 * 4                    # padded bias rows
    )
    vmem_bytes = int(min(64 * 1024 * 1024, max(16 * 1024 * 1024, 4 * footprint)))

    vmem = pl.BlockSpec(memory_space=pltpu.MemorySpace.VMEM)

    out, h_fin, c_fin = pl.pallas_call(
        _lstm_kernel,
        out_shape=(
            jax.ShapeDtypeStruct((L + 1, N, H), x.dtype),   # [h_0, ..., h_L]
            jax.ShapeDtypeStruct((N, H), x.dtype),          # h_L
            jax.ShapeDtypeStruct((N, H), x.dtype),          # c_L
        ),
        in_specs=[vmem] * 8,
        out_specs=(vmem, vmem, vmem),
        compiler_params=pltpu.CompilerParams(vmem_limit_bytes=vmem_bytes),
    )(x, h0, c0, w_fused, bi2, bg2, bf2, bo2)

    return out, (h_fin, c_fin)


def _reference_forward(x, params, hx=None):
    """Pure-JAX reference mirroring the PyTorch module, for validation."""
    L, N, H = x.shape
    Whi, bi, Whf, bf, Whg, bg, Who, bo = params
    if hx is None:
        h_t = jnp.zeros((N, H), x.dtype)
        c_t = jnp.zeros((N, H), x.dtype)
    else:
        h_t, c_t = hx
    outs = [h_t]
    for t in range(L):
        x_t = x[t]
        xh = x_t @ h_t
        f = jax.nn.sigmoid(xh @ Whf + bf)
        i = jax.nn.sigmoid(h_t @ Whi + bi)
        g = jnp.tanh(h_t @ Whg + bg)
        o = jax.nn.sigmoid(xh @ Who + bo)
        c_t = f * c_t + x_t @ (i * g)
        h_t = o * jnp.tanh(c_t)
        outs.append(h_t)
    return jnp.stack(outs, 0), (h_t, c_t)


def init_params(key, hidden_size):
    stdv = 1.0 / math.sqrt(hidden_size)
    keys = jax.random.split(key, 8)
    shapes = [(hidden_size, hidden_size), (hidden_size,)] * 4   # Whi,bi,Whf,bf,Whg,bg,Who,bo
    return tuple(
        jax.random.uniform(k, s, jnp.float32, minval=-stdv, maxval=stdv)
        for k, s in zip(keys, shapes)
    )


if __name__ == "__main__":
    L, N, H = 8, 32, 32   # module requires N == hidden_size
    key = jax.random.PRNGKey(0)
    kx, kp = jax.random.split(key)

    x = jax.random.normal(kx, (L, N, H), jnp.float32) * 0.1
    params = init_params(kp, H)

    fwd = jax.jit(my_lstm_forward)
    out, (h_t, c_t) = fwd(x, params)
    jax.block_until_ready((out, h_t, c_t))

    # sanity check against pure-JAX reference (bf16-class MXU error expected)
    ref_out, (ref_h, ref_c) = _reference_forward(x, params)
    assert out.shape == (L + 1, N, H)
    assert h_t.shape == (N, H) and c_t.shape == (N, H)
    assert jnp.allclose(out, ref_out, rtol=2e-2, atol=2e-2)
    assert jnp.allclose(h_t, ref_h, rtol=2e-2, atol=2e-2)
    assert jnp.allclose(c_t, ref_c, rtol=2e-2, atol=2e-2)

    print("KERNEL_OK")
</pallas_src>

<mosaic_0001>
module attributes {stable_mosaic.version = 11 : i64} {
  func.func @_lstm_kernel(%arg0: memref<8x32x32xf32, #tpu.memory_space<vmem>>, %arg1: memref<32x32xf32, #tpu.memory_space<vmem>>, %arg2: memref<32x32xf32, #tpu.memory_space<vmem>>, %arg3: memref<32x128xbf16, #tpu.memory_space<vmem>>, %arg4: memref<1x32xf32, #tpu.memory_space<vmem>>, %arg5: memref<1x32xf32, #tpu.memory_space<vmem>>, %arg6: memref<1x32xf32, #tpu.memory_space<vmem>>, %arg7: memref<1x32xf32, #tpu.memory_space<vmem>>, %arg8: memref<9x32x32xf32, #tpu.memory_space<vmem>>, %arg9: memref<32x32xf32, #tpu.memory_space<vmem>>, %arg10: memref<32x32xf32, #tpu.memory_space<vmem>>) attributes {dimension_semantics = [], scalar_prefetch = 0 : i64, scratch_operands = 0 : i64, tpu.core_type = #tpu.core_type<tc>} {
    %c0 = arith.constant 0 : index
    %c0_0 = arith.constant 0 : index
    %0 = vector.load %arg1[%c0, %c0_0] : memref<32x32xf32, #tpu.memory_space<vmem>>, vector<32x32xf32>
    %c0_1 = arith.constant 0 : index
    %c0_2 = arith.constant 0 : index
    %c0_3 = arith.constant 0 : index
    %1 = vector.load %arg8[%c0_1, %c0_2, %c0_3] : memref<9x32x32xf32, #tpu.memory_space<vmem>>, vector<1x32x32xf32>
    %2 = vector.shape_cast %1 : vector<1x32x32xf32> to vector<32x32xf32>
    %3 = vector.shape_cast %0 : vector<32x32xf32> to vector<1x32x32xf32>
    tpu.vector_store %arg8[%c0_1, %c0_2, %c0_3], %3 {strides = array<i32>} : memref<9x32x32xf32, #tpu.memory_space<vmem>>, vector<1x32x32xf32>,
    %c0_4 = arith.constant 0 : index
    %c0_5 = arith.constant 0 : index
    %4 = vector.load %arg1[%c0_4, %c0_5] : memref<32x32xf32, #tpu.memory_space<vmem>>, vector<32x32xf32>
    %c0_6 = arith.constant 0 : index
    %c0_7 = arith.constant 0 : index
    %5 = vector.load %arg2[%c0_6, %c0_7] : memref<32x32xf32, #tpu.memory_space<vmem>>, vector<32x32xf32>
    %c0_8 = arith.constant 0 : index
    %c0_9 = arith.constant 0 : index
    %6 = vector.load %arg3[%c0_8, %c0_9] : memref<32x128xbf16, #tpu.memory_space<vmem>>, vector<32x128xbf16>
    %c0_10 = arith.constant 0 : index
    %c0_11 = arith.constant 0 : index
    %7 = vector.load %arg4[%c0_10, %c0_11] : memref<1x32xf32, #tpu.memory_space<vmem>>, vector<1x32xf32>
    %c0_12 = arith.constant 0 : index
    %c0_13 = arith.constant 0 : index
    %8 = vector.load %arg5[%c0_12, %c0_13] : memref<1x32xf32, #tpu.memory_space<vmem>>, vector<1x32xf32>
    %c0_14 = arith.constant 0 : index
    %c0_15 = arith.constant 0 : index
    %9 = vector.load %arg6[%c0_14, %c0_15] : memref<1x32xf32, #tpu.memory_space<vmem>>, vector<1x32xf32>
    %c0_16 = arith.constant 0 : index
    %c0_17 = arith.constant 0 : index
    %10 = vector.load %arg7[%c0_16, %c0_17] : memref<1x32xf32, #tpu.memory_space<vmem>>, vector<1x32xf32>
    %c0_i32 = arith.constant 0 : i32
    %11 = arith.index_cast %c0_i32 : i32 to index
    %c0_18 = arith.constant 0 : index
    %c0_19 = arith.constant 0 : index
    %12 = vector.load %arg0[%11, %c0_18, %c0_19] : memref<8x32x32xf32, #tpu.memory_space<vmem>>, vector<1x32x32xf32>
    %13 = vector.shape_cast %12 : vector<1x32x32xf32> to vector<32x32xf32>
    %14 = arith.truncf %13 : vector<32x32xf32> to vector<32x32xbf16>
    %15 = arith.truncf %4 : vector<32x32xf32> to vector<32x32xbf16>
    %cst = arith.constant dense<0.000000e+00> : vector<32x32xf32>
    %16 = tpu.matmul %14, %15, %cst {dimension_numbers = #tpu.dot_dimension_numbers<[1], [0], [0], [1], [0, 0, 1, 1], [], []>} : vector<32x32xbf16>, vector<32x32xbf16>, vector<32x32xf32> -> vector<32x32xf32>
    %17 = tpu.concatenate %4, %16 in 0 : vector<32x32xf32>, vector<32x32xf32> -> vector<64x32xf32>
    %18 = arith.truncf %17 : vector<64x32xf32> to vector<64x32xbf16>
    %cst_20 = arith.constant dense<0.000000e+00> : vector<64x128xf32>
    %19 = tpu.matmul %18, %6, %cst_20 {dimension_numbers = #tpu.dot_dimension_numbers<[1], [0], [0], [1], [0, 0, 1, 1], [], []>} : vector<64x32xbf16>, vector<32x128xbf16>, vector<64x128xf32> -> vector<64x128xf32>
    %20 = vector.extract_strided_slice %19 {offsets = [0, 0], sizes = [32, 32], strides = [1, 1]} : vector<64x128xf32> to vector<32x32xf32>
    %21 = vector.broadcast %7 : vector<1x32xf32> to vector<32x32xf32>
    %22 = arith.addf %20, %21 : vector<32x32xf32>
    %23 = arith.negf %22 : vector<32x32xf32>
    %24 = math.exp %23 : vector<32x32xf32>
    %cst_21 = arith.constant 1.000000e+00 : f32
    %25 = vector.broadcast %cst_21 : f32 to vector<32x32xf32>
    %26 = arith.addf %25, %24 : vector<32x32xf32>
    %27 = arith.divf %25, %26 : vector<32x32xf32>
    %28 = vector.extract_strided_slice %19 {offsets = [0, 32], sizes = [32, 32], strides = [1, 1]} : vector<64x128xf32> to vector<32x32xf32>
    %29 = vector.broadcast %8 : vector<1x32xf32> to vector<32x32xf32>
    %30 = arith.addf %28, %29 : vector<32x32xf32>
    %31 = math.tanh %30 : vector<32x32xf32>
    %32 = vector.extract_strided_slice %19 {offsets = [32, 64], sizes = [32, 32], strides = [1, 1]} : vector<64x128xf32> to vector<32x32xf32>
    %33 = vector.broadcast %9 : vector<1x32xf32> to vector<32x32xf32>
    %34 = arith.addf %32, %33 : vector<32x32xf32>
    %35 = arith.negf %34 : vector<32x32xf32>
    %36 = math.exp %35 : vector<32x32xf32>
    %cst_22 = arith.constant 1.000000e+00 : f32
    %37 = vector.broadcast %cst_22 : f32 to vector<32x32xf32>
    %38 = arith.addf %37, %36 : vector<32x32xf32>
    %39 = arith.divf %37, %38 : vector<32x32xf32>
    %40 = vector.extract_strided_slice %19 {offsets = [32, 96], sizes = [32, 32], strides = [1, 1]} : vector<64x128xf32> to vector<32x32xf32>
    %41 = vector.broadcast %10 : vector<1x32xf32> to vector<32x32xf32>
    %42 = arith.addf %40, %41 : vector<32x32xf32>
    %43 = arith.negf %42 : vector<32x32xf32>
    %44 = math.exp %43 : vector<32x32xf32>
    %cst_23 = arith.constant 1.000000e+00 : f32
    %45 = vector.broadcast %cst_23 : f32 to vector<32x32xf32>
    %46 = arith.addf %45, %44 : vector<32x32xf32>
    %47 = arith.divf %45, %46 : vector<32x32xf32>
    %48 = arith.mulf %39, %5 : vector<32x32xf32>
    %49 = arith.mulf %27, %31 : vector<32x32xf32>
    %50 = arith.truncf %49 : vector<32x32xf32> to vector<32x32xbf16>
    %cst_24 = arith.constant dense<0.000000e+00> : vector<32x32xf32>
    %51 = tpu.matmul %14, %50, %cst_24 {dimension_numbers = #tpu.dot_dimension_numbers<[1], [0], [0], [1], [0, 0, 1, 1], [], []>} : vector<32x32xbf16>, vector<32x32xbf16>, vector<32x32xf32> -> vector<32x32xf32>
    %52 = arith.addf %48, %51 : vector<32x32xf32>
    %53 = math.tanh %52 : vector<32x32xf32>
    %54 = arith.mulf %47, %53 : vector<32x32xf32>
    %c1_i32 = arith.constant 1 : i32
    %55 = arith.addi %c0_i32, %c1_i32 : i32
    %56 = arith.index_cast %55 : i32 to index
    %c0_25 = arith.constant 0 : index
    %c0_26 = arith.constant 0 : index
    %57 = vector.load %arg8[%56, %c0_25, %c0_26] : memref<9x32x32xf32, #tpu.memory_space<vmem>>, vector<1x32x32xf32>
    %58 = vector.shape_cast %57 : vector<1x32x32xf32> to vector<32x32xf32>
    %59 = vector.shape_cast %54 : vector<32x32xf32> to vector<1x32x32xf32>
    tpu.vector_store %arg8[%56, %c0_25, %c0_26], %59 {strides = array<i32>} : memref<9x32x32xf32, #tpu.memory_space<vmem>>, vector<1x32x32xf32>,
    %c1_i32_27 = arith.constant 1 : i32
    %60 = arith.index_cast %c1_i32_27 : i32 to index
    %c0_28 = arith.constant 0 : index
    %c0_29 = arith.constant 0 : index
    %61 = vector.load %arg0[%60, %c0_28, %c0_29] : memref<8x32x32xf32, #tpu.memory_space<vmem>>, vector<1x32x32xf32>
    %62 = vector.shape_cast %61 : vector<1x32x32xf32> to vector<32x32xf32>
    %63 = arith.truncf %62 : vector<32x32xf32> to vector<32x32xbf16>
    %64 = arith.truncf %54 : vector<32x32xf32> to vector<32x32xbf16>
    %cst_30 = arith.constant dense<0.000000e+00> : vector<32x32xf32>
    %65 = tpu.matmul %63, %64, %cst_30 {dimension_numbers = #tpu.dot_dimension_numbers<[1], [0], [0], [1], [0, 0, 1, 1], [], []>} : vector<32x32xbf16>, vector<32x32xbf16>, vector<32x32xf32> -> vector<32x32xf32>
    %66 = tpu.concatenate %54, %65 in 0 : vector<32x32xf32>, vector<32x32xf32> -> vector<64x32xf32>
    %67 = arith.truncf %66 : vector<64x32xf32> to vector<64x32xbf16>
    %cst_31 = arith.constant dense<0.000000e+00> : vector<64x128xf32>
    %68 = tpu.matmul %67, %6, %cst_31 {dimension_numbers = #tpu.dot_dimension_numbers<[1], [0], [0], [1], [0, 0, 1, 1], [], []>} : vector<64x32xbf16>, vector<32x128xbf16>, vector<64x128xf32> -> vector<64x128xf32>
    %69 = vector.extract_strided_slice %68 {offsets = [0, 0], sizes = [32, 32], strides = [1, 1]} : vector<64x128xf32> to vector<32x32xf32>
    %70 = vector.broadcast %7 : vector<1x32xf32> to vector<32x32xf32>
    %71 = arith.addf %69, %70 : vector<32x32xf32>
    %72 = arith.negf %71 : vector<32x32xf32>
    %73 = math.exp %72 : vector<32x32xf32>
    %cst_32 = arith.constant 1.000000e+00 : f32
    %74 = vector.broadcast %cst_32 : f32 to vector<32x32xf32>
    %75 = arith.addf %74, %73 : vector<32x32xf32>
    %76 = arith.divf %74, %75 : vector<32x32xf32>
    %77 = vector.extract_strided_slice %68 {offsets = [0, 32], sizes = [32, 32], strides = [1, 1]} : vector<64x128xf32> to vector<32x32xf32>
    %78 = vector.broadcast %8 : vector<1x32xf32> to vector<32x32xf32>
    %79 = arith.addf %77, %78 : vector<32x32xf32>
    %80 = math.tanh %79 : vector<32x32xf32>
    %81 = vector.extract_strided_slice %68 {offsets = [32, 64], sizes = [32, 32], strides = [1, 1]} : vector<64x128xf32> to vector<32x32xf32>
    %82 = vector.broadcast %9 : vector<1x32xf32> to vector<32x32xf32>
    %83 = arith.addf %81, %82 : vector<32x32xf32>
    %84 = arith.negf %83 : vector<32x32xf32>
    %85 = math.exp %84 : vector<32x32xf32>
    %cst_33 = arith.constant 1.000000e+00 : f32
    %86 = vector.broadcast %cst_33 : f32 to vector<32x32xf32>
    %87 = arith.addf %86, %85 : vector<32x32xf32>
    %88 = arith.divf %86, %87 : vector<32x32xf32>
    %89 = vector.extract_strided_slice %68 {offsets = [32, 96], sizes = [32, 32], strides = [1, 1]} : vector<64x128xf32> to vector<32x32xf32>
    %90 = vector.broadcast %10 : vector<1x32xf32> to vector<32x32xf32>
    %91 = arith.addf %89, %90 : vector<32x32xf32>
    %92 = arith.negf %91 : vector<32x32xf32>
    %93 = math.exp %92 : vector<32x32xf32>
    %cst_34 = arith.constant 1.000000e+00 : f32
    %94 = vector.broadcast %cst_34 : f32 to vector<32x32xf32>
    %95 = arith.addf %94, %93 : vector<32x32xf32>
    %96 = arith.divf %94, %95 : vector<32x32xf32>
    %97 = arith.mulf %88, %52 : vector<32x32xf32>
    %98 = arith.mulf %76, %80 : vector<32x32xf32>
    %99 = arith.truncf %98 : vector<32x32xf32> to vector<32x32xbf16>
    %cst_35 = arith.constant dense<0.000000e+00> : vector<32x32xf32>
    %100 = tpu.matmul %63, %99, %cst_35 {dimension_numbers = #tpu.dot_dimension_numbers<[1], [0], [0], [1], [0, 0, 1, 1], [], []>} : vector<32x32xbf16>, vector<32x32xbf16>, vector<32x32xf32> -> vector<32x32xf32>
    %101 = arith.addf %97, %100 : vector<32x32xf32>
    %102 = math.tanh %101 : vector<32x32xf32>
    %103 = arith.mulf %96, %102 : vector<32x32xf32>
    %c1_i32_36 = arith.constant 1 : i32
    %104 = arith.addi %c1_i32_27, %c1_i32_36 : i32
    %105 = arith.index_cast %104 : i32 to index
    %c0_37 = arith.constant 0 : index
    %c0_38 = arith.constant 0 : index
    %106 = vector.load %arg8[%105, %c0_37, %c0_38] : memref<9x32x32xf32, #tpu.memory_space<vmem>>, vector<1x32x32xf32>
    %107 = vector.shape_cast %106 : vector<1x32x32xf32> to vector<32x32xf32>
    %108 = vector.shape_cast %103 : vector<32x32xf32> to vector<1x32x32xf32>
    tpu.vector_store %arg8[%105, %c0_37, %c0_38], %108 {strides = array<i32>} : memref<9x32x32xf32, #tpu.memory_space<vmem>>, vector<1x32x32xf32>,
    %c2_i32 = arith.constant 2 : i32
    %109 = arith.index_cast %c2_i32 : i32 to index
    %c0_39 = arith.constant 0 : index
    %c0_40 = arith.constant 0 : index
    %110 = vector.load %arg0[%109, %c0_39, %c0_40] : memref<8x32x32xf32, #tpu.memory_space<vmem>>, vector<1x32x32xf32>
    %111 = vector.shape_cast %110 : vector<1x32x32xf32> to vector<32x32xf32>
    %112 = arith.truncf %111 : vector<32x32xf32> to vector<32x32xbf16>
    %113 = arith.truncf %103 : vector<32x32xf32> to vector<32x32xbf16>
    %cst_41 = arith.constant dense<0.000000e+00> : vector<32x32xf32>
    %114 = tpu.matmul %112, %113, %cst_41 {dimension_numbers = #tpu.dot_dimension_numbers<[1], [0], [0], [1], [0, 0, 1, 1], [], []>} : vector<32x32xbf16>, vector<32x32xbf16>, vector<32x32xf32> -> vector<32x32xf32>
    %115 = tpu.concatenate %103, %114 in 0 : vector<32x32xf32>, vector<32x32xf32> -> vector<64x32xf32>
    %116 = arith.truncf %115 : vector<64x32xf32> to vector<64x32xbf16>
    %cst_42 = arith.constant dense<0.000000e+00> : vector<64x128xf32>
    %117 = tpu.matmul %116, %6, %cst_42 {dimension_numbers = #tpu.dot_dimension_numbers<[1], [0], [0], [1], [0, 0, 1, 1], [], []>} : vector<64x32xbf16>, vector<32x128xbf16>, vector<64x128xf32> -> vector<64x128xf32>
    %118 = vector.extract_strided_slice %117 {offsets = [0, 0], sizes = [32, 32], strides = [1, 1]} : vector<64x128xf32> to vector<32x32xf32>
    %119 = vector.broadcast %7 : vector<1x32xf32> to vector<32x32xf32>
    %120 = arith.addf %118, %119 : vector<32x32xf32>
    %121 = arith.negf %120 : vector<32x32xf32>
    %122 = math.exp %121 : vector<32x32xf32>
    %cst_43 = arith.constant 1.000000e+00 : f32
    %123 = vector.broadcast %cst_43 : f32 to vector<32x32xf32>
    %124 = arith.addf %123, %122 : vector<32x32xf32>
    %125 = arith.divf %123, %124 : vector<32x32xf32>
    %126 = vector.extract_strided_slice %117 {offsets = [0, 32], sizes = [32, 32], strides = [1, 1]} : vector<64x128xf32> to vector<32x32xf32>
    %127 = vector.broadcast %8 : vector<1x32xf32> to vector<32x32xf32>
    %128 = arith.addf %126, %127 : vector<32x32xf32>
    %129 = math.tanh %128 : vector<32x32xf32>
    %130 = vector.extract_strided_slice %117 {offsets = [32, 64], sizes = [32, 32], strides = [1, 1]} : vector<64x128xf32> to vector<32x32xf32>
    %131 = vector.broadcast %9 : vector<1x32xf32> to vector<32x32xf32>
    %132 = arith.addf %130, %131 : vector<32x32xf32>
    %133 = arith.negf %132 : vector<32x32xf32>
    %134 = math.exp %133 : vector<32x32xf32>
    %cst_44 = arith.constant 1.000000e+00 : f32
    %135 = vector.broadcast %cst_44 : f32 to vector<32x32xf32>
    %136 = arith.addf %135, %134 : vector<32x32xf32>
    %137 = arith.divf %135, %136 : vector<32x32xf32>
    %138 = vector.extract_strided_slice %117 {offsets = [32, 96], sizes = [32, 32], strides = [1, 1]} : vector<64x128xf32> to vector<32x32xf32>
    %139 = vector.broadcast %10 : vector<1x32xf32> to vector<32x32xf32>
    %140 = arith.addf %138, %139 : vector<32x32xf32>
    %141 = arith.negf %140 : vector<32x32xf32>
    %142 = math.exp %141 : vector<32x32xf32>
    %cst_45 = arith.constant 1.000000e+00 : f32
    %143 = vector.broadcast %cst_45 : f32 to vector<32x32xf32>
    %144 = arith.addf %143, %142 : vector<32x32xf32>
    %145 = arith.divf %143, %144 : vector<32x32xf32>
    %146 = arith.mulf %137, %101 : vector<32x32xf32>
    %147 = arith.mulf %125, %129 : vector<32x32xf32>
    %148 = arith.truncf %147 : vector<32x32xf32> to vector<32x32xbf16>
    %cst_46 = arith.constant dense<0.000000e+00> : vector<32x32xf32>
    %149 = tpu.matmul %112, %148, %cst_46 {dimension_numbers = #tpu.dot_dimension_numbers<[1], [0], [0], [1], [0, 0, 1, 1], [], []>} : vector<32x32xbf16>, vector<32x32xbf16>, vector<32x32xf32> -> vector<32x32xf32>
    %150 = arith.addf %146, %149 : vector<32x32xf32>
    %151 = math.tanh %150 : vector<32x32xf32>
    %152 = arith.mulf %145, %151 : vector<32x32xf32>
    %c1_i32_47 = arith.constant 1 : i32
    %153 = arith.addi %c2_i32, %c1_i32_47 : i32
    %154 = arith.index_cast %153 : i32 to index
    %c0_48 = arith.constant 0 : index
    %c0_49 = arith.constant 0 : index
    %155 = vector.load %arg8[%154, %c0_48, %c0_49] : memref<9x32x32xf32, #tpu.memory_space<vmem>>, vector<1x32x32xf32>
    %156 = vector.shape_cast %155 : vector<1x32x32xf32> to vector<32x32xf32>
    %157 = vector.shape_cast %152 : vector<32x32xf32> to vector<1x32x32xf32>
    tpu.vector_store %arg8[%154, %c0_48, %c0_49], %157 {strides = array<i32>} : memref<9x32x32xf32, #tpu.memory_space<vmem>>, vector<1x32x32xf32>,
    %c3_i32 = arith.constant 3 : i32
    %158 = arith.index_cast %c3_i32 : i32 to index
    %c0_50 = arith.constant 0 : index
    %c0_51 = arith.constant 0 : index
    %159 = vector.load %arg0[%158, %c0_50, %c0_51] : memref<8x32x32xf32, #tpu.memory_space<vmem>>, vector<1x32x32xf32>
    %160 = vector.shape_cast %159 : vector<1x32x32xf32> to vector<32x32xf32>
    %161 = arith.truncf %160 : vector<32x32xf32> to vector<32x32xbf16>
    %162 = arith.truncf %152 : vector<32x32xf32> to vector<32x32xbf16>
    %cst_52 = arith.constant dense<0.000000e+00> : vector<32x32xf32>
    %163 = tpu.matmul %161, %162, %cst_52 {dimension_numbers = #tpu.dot_dimension_numbers<[1], [0], [0], [1], [0, 0, 1, 1], [], []>} : vector<32x32xbf16>, vector<32x32xbf16>, vector<32x32xf32> -> vector<32x32xf32>
    %164 = tpu.concatenate %152, %163 in 0 : vector<32x32xf32>, vector<32x32xf32> -> vector<64x32xf32>
    %165 = arith.truncf %164 : vector<64x32xf32> to vector<64x32xbf16>
    %cst_53 = arith.constant dense<0.000000e+00> : vector<64x128xf32>
    %166 = tpu.matmul %165, %6, %cst_53 {dimension_numbers = #tpu.dot_dimension_numbers<[1], [0], [0], [1], [0, 0, 1, 1], [], []>} : vector<64x32xbf16>, vector<32x128xbf16>, vector<64x128xf32> -> vector<64x128xf32>
    %167 = vector.extract_strided_slice %166 {offsets = [0, 0], sizes = [32, 32], strides = [1, 1]} : vector<64x128xf32> to vector<32x32xf32>
    %168 = vector.broadcast %7 : vector<1x32xf32> to vector<32x32xf32>
    %169 = arith.addf %167, %168 : vector<32x32xf32>
    %170 = arith.negf %169 : vector<32x32xf32>
    %171 = math.exp %170 : vector<32x32xf32>
    %cst_54 = arith.constant 1.000000e+00 : f32
    %172 = vector.broadcast %cst_54 : f32 to vector<32x32xf32>
    %173 = arith.addf %172, %171 : vector<32x32xf32>
    %174 = arith.divf %172, %173 : vector<32x32xf32>
    %175 = vector.extract_strided_slice %166 {offsets = [0, 32], sizes = [32, 32], strides = [1, 1]} : vector<64x128xf32> to vector<32x32xf32>
    %176 = vector.broadcast %8 : vector<1x32xf32> to vector<32x32xf32>
    %177 = arith.addf %175, %176 : vector<32x32xf32>
    %178 = math.tanh %177 : vector<32x32xf32>
    %179 = vector.extract_strided_slice %166 {offsets = [32, 64], sizes = [32, 32], strides = [1, 1]} : vector<64x128xf32> to vector<32x32xf32>
    %180 = vector.broadcast %9 : vector<1x32xf32> to vector<32x32xf32>
    %181 = arith.addf %179, %180 : vector<32x32xf32>
    %182 = arith.negf %181 : vector<32x32xf32>
    %183 = math.exp %182 : vector<32x32xf32>
    %cst_55 = arith.constant 1.000000e+00 : f32
    %184 = vector.broadcast %cst_55 : f32 to vector<32x32xf32>
    %185 = arith.addf %184, %183 : vector<32x32xf32>
    %186 = arith.divf %184, %185 : vector<32x32xf32>
    %187 = vector.extract_strided_slice %166 {offsets = [32, 96], sizes = [32, 32], strides = [1, 1]} : vector<64x128xf32> to vector<32x32xf32>
    %188 = vector.broadcast %10 : vector<1x32xf32> to vector<32x32xf32>
    %189 = arith.addf %187, %188 : vector<32x32xf32>
    %190 = arith.negf %189 : vector<32x32xf32>
    %191 = math.exp %190 : vector<32x32xf32>
    %cst_56 = arith.constant 1.000000e+00 : f32
    %192 = vector.broadcast %cst_56 : f32 to vector<32x32xf32>
    %193 = arith.addf %192, %191 : vector<32x32xf32>
    %194 = arith.divf %192, %193 : vector<32x32xf32>
    %195 = arith.mulf %186, %150 : vector<32x32xf32>
    %196 = arith.mulf %174, %178 : vector<32x32xf32>
    %197 = arith.truncf %196 : vector<32x32xf32> to vector<32x32xbf16>
    %cst_57 = arith.constant dense<0.000000e+00> : vector<32x32xf32>
    %198 = tpu.matmul %161, %197, %cst_57 {dimension_numbers = #tpu.dot_dimension_numbers<[1], [0], [0], [1], [0, 0, 1, 1], [], []>} : vector<32x32xbf16>, vector<32x32xbf16>, vector<32x32xf32> -> vector<32x32xf32>
    %199 = arith.addf %195, %198 : vector<32x32xf32>
    %200 = math.tanh %199 : vector<32x32xf32>
    %201 = arith.mulf %194, %200 : vector<32x32xf32>
    %c1_i32_58 = arith.constant 1 : i32
    %202 = arith.addi %c3_i32, %c1_i32_58 : i32
    %203 = arith.index_cast %202 : i32 to index
    %c0_59 = arith.constant 0 : index
    %c0_60 = arith.constant 0 : index
    %204 = vector.load %arg8[%203, %c0_59, %c0_60] : memref<9x32x32xf32, #tpu.memory_space<vmem>>, vector<1x32x32xf32>
    %205 = vector.shape_cast %204 : vector<1x32x32xf32> to vector<32x32xf32>
    %206 = vector.shape_cast %201 : vector<32x32xf32> to vector<1x32x32xf32>
    tpu.vector_store %arg8[%203, %c0_59, %c0_60], %206 {strides = array<i32>} : memref<9x32x32xf32, #tpu.memory_space<vmem>>, vector<1x32x32xf32>,
    %c4_i32 = arith.constant 4 : i32
    %207 = arith.index_cast %c4_i32 : i32 to index
    %c0_61 = arith.constant 0 : index
    %c0_62 = arith.constant 0 : index
    %208 = vector.load %arg0[%207, %c0_61, %c0_62] : memref<8x32x32xf32, #tpu.memory_space<vmem>>, vector<1x32x32xf32>
    %209 = vector.shape_cast %208 : vector<1x32x32xf32> to vector<32x32xf32>
    %210 = arith.truncf %209 : vector<32x32xf32> to vector<32x32xbf16>
    %211 = arith.truncf %201 : vector<32x32xf32> to vector<32x32xbf16>
    %cst_63 = arith.constant dense<0.000000e+00> : vector<32x32xf32>
    %212 = tpu.matmul %210, %211, %cst_63 {dimension_numbers = #tpu.dot_dimension_numbers<[1], [0], [0], [1], [0, 0, 1, 1], [], []>} : vector<32x32xbf16>, vector<32x32xbf16>, vector<32x32xf32> -> vector<32x32xf32>
    %213 = tpu.concatenate %201, %212 in 0 : vector<32x32xf32>, vector<32x32xf32> -> vector<64x32xf32>
    %214 = arith.truncf %213 : vector<64x32xf32> to vector<64x32xbf16>
    %cst_64 = arith.constant dense<0.000000e+00> : vector<64x128xf32>
    %215 = tpu.matmul %214, %6, %cst_64 {dimension_numbers = #tpu.dot_dimension_numbers<[1], [0], [0], [1], [0, 0, 1, 1], [], []>} : vector<64x32xbf16>, vector<32x128xbf16>, vector<64x128xf32> -> vector<64x128xf32>
    %216 = vector.extract_strided_slice %215 {offsets = [0, 0], sizes = [32, 32], strides = [1, 1]} : vector<64x128xf32> to vector<32x32xf32>
    %217 = vector.broadcast %7 : vector<1x32xf32> to vector<32x32xf32>
    %218 = arith.addf %216, %217 : vector<32x32xf32>
    %219 = arith.negf %218 : vector<32x32xf32>
    %220 = math.exp %219 : vector<32x32xf32>
    %cst_65 = arith.constant 1.000000e+00 : f32
    %221 = vector.broadcast %cst_65 : f32 to vector<32x32xf32>
    %222 = arith.addf %221, %220 : vector<32x32xf32>
    %223 = arith.divf %221, %222 : vector<32x32xf32>
    %224 = vector.extract_strided_slice %215 {offsets = [0, 32], sizes = [32, 32], strides = [1, 1]} : vector<64x128xf32> to vector<32x32xf32>
    %225 = vector.broadcast %8 : vector<1x32xf32> to vector<32x32xf32>
    %226 = arith.addf %224, %225 : vector<32x32xf32>
    %227 = math.tanh %226 : vector<32x32xf32>
    %228 = vector.extract_strided_slice %215 {offsets = [32, 64], sizes = [32, 32], strides = [1, 1]} : vector<64x128xf32> to vector<32x32xf32>
    %229 = vector.broadcast %9 : vector<1x32xf32> to vector<32x32xf32>
    %230 = arith.addf %228, %229 : vector<32x32xf32>
    %231 = arith.negf %230 : vector<32x32xf32>
    %232 = math.exp %231 : vector<32x32xf32>
    %cst_66 = arith.constant 1.000000e+00 : f32
    %233 = vector.broadcast %cst_66 : f32 to vector<32x32xf32>
    %234 = arith.addf %233, %232 : vector<32x32xf32>
    %235 = arith.divf %233, %234 : vector<32x32xf32>
    %236 = vector.extract_strided_slice %215 {offsets = [32, 96], sizes = [32, 32], strides = [1, 1]} : vector<64x128xf32> to vector<32x32xf32>
    %237 = vector.broadcast %10 : vector<1x32xf32> to vector<32x32xf32>
    %238 = arith.addf %236, %237 : vector<32x32xf32>
    %239 = arith.negf %238 : vector<32x32xf32>
    %240 = math.exp %239 : vector<32x32xf32>
    %cst_67 = arith.constant 1.000000e+00 : f32
    %241 = vector.broadcast %cst_67 : f32 to vector<32x32xf32>
    %242 = arith.addf %241, %240 : vector<32x32xf32>
    %243 = arith.divf %241, %242 : vector<32x32xf32>
    %244 = arith.mulf %235, %199 : vector<32x32xf32>
    %245 = arith.mulf %223, %227 : vector<32x32xf32>
    %246 = arith.truncf %245 : vector<32x32xf32> to vector<32x32xbf16>
    %cst_68 = arith.constant dense<0.000000e+00> : vector<32x32xf32>
    %247 = tpu.matmul %210, %246, %cst_68 {dimension_numbers = #tpu.dot_dimension_numbers<[1], [0], [0], [1], [0, 0, 1, 1], [], []>} : vector<32x32xbf16>, vector<32x32xbf16>, vector<32x32xf32> -> vector<32x32xf32>
    %248 = arith.addf %244, %247 : vector<32x32xf32>
    %249 = math.tanh %248 : vector<32x32xf32>
    %250 = arith.mulf %243, %249 : vector<32x32xf32>
    %c1_i32_69 = arith.constant 1 : i32
    %251 = arith.addi %c4_i32, %c1_i32_69 : i32
    %252 = arith.index_cast %251 : i32 to index
    %c0_70 = arith.constant 0 : index
    %c0_71 = arith.constant 0 : index
    %253 = vector.load %arg8[%252, %c0_70, %c0_71] : memref<9x32x32xf32, #tpu.memory_space<vmem>>, vector<1x32x32xf32>
    %254 = vector.shape_cast %253 : vector<1x32x32xf32> to vector<32x32xf32>
    %255 = vector.shape_cast %250 : vector<32x32xf32> to vector<1x32x32xf32>
    tpu.vector_store %arg8[%252, %c0_70, %c0_71], %255 {strides = array<i32>} : memref<9x32x32xf32, #tpu.memory_space<vmem>>, vector<1x32x32xf32>,
    %c5_i32 = arith.constant 5 : i32
    %256 = arith.index_cast %c5_i32 : i32 to index
    %c0_72 = arith.constant 0 : index
    %c0_73 = arith.constant 0 : index
    %257 = vector.load %arg0[%256, %c0_72, %c0_73] : memref<8x32x32xf32, #tpu.memory_space<vmem>>, vector<1x32x32xf32>
    %258 = vector.shape_cast %257 : vector<1x32x32xf32> to vector<32x32xf32>
    %259 = arith.truncf %258 : vector<32x32xf32> to vector<32x32xbf16>
    %260 = arith.truncf %250 : vector<32x32xf32> to vector<32x32xbf16>
    %cst_74 = arith.constant dense<0.000000e+00> : vector<32x32xf32>
    %261 = tpu.matmul %259, %260, %cst_74 {dimension_numbers = #tpu.dot_dimension_numbers<[1], [0], [0], [1], [0, 0, 1, 1], [], []>} : vector<32x32xbf16>, vector<32x32xbf16>, vector<32x32xf32> -> vector<32x32xf32>
    %262 = tpu.concatenate %250, %261 in 0 : vector<32x32xf32>, vector<32x32xf32> -> vector<64x32xf32>
    %263 = arith.truncf %262 : vector<64x32xf32> to vector<64x32xbf16>
    %cst_75 = arith.constant dense<0.000000e+00> : vector<64x128xf32>
    %264 = tpu.matmul %263, %6, %cst_75 {dimension_numbers = #tpu.dot_dimension_numbers<[1], [0], [0], [1], [0, 0, 1, 1], [], []>} : vector<64x32xbf16>, vector<32x128xbf16>, vector<64x128xf32> -> vector<64x128xf32>
    %265 = vector.extract_strided_slice %264 {offsets = [0, 0], sizes = [32, 32], strides = [1, 1]} : vector<64x128xf32> to vector<32x32xf32>
    %266 = vector.broadcast %7 : vector<1x32xf32> to vector<32x32xf32>
    %267 = arith.addf %265, %266 : vector<32x32xf32>
    %268 = arith.negf %267 : vector<32x32xf32>
    %269 = math.exp %268 : vector<32x32xf32>
    %cst_76 = arith.constant 1.000000e+00 : f32
    %270 = vector.broadcast %cst_76 : f32 to vector<32x32xf32>
    %271 = arith.addf %270, %269 : vector<32x32xf32>
    %272 = arith.divf %270, %271 : vector<32x32xf32>
    %273 = vector.extract_strided_slice %264 {offsets = [0, 32], sizes = [32, 32], strides = [1, 1]} : vector<64x128xf32> to vector<32x32xf32>
    %274 = vector.broadcast %8 : vector<1x32xf32> to vector<32x32xf32>
    %275 = arith.addf %273, %274 : vector<32x32xf32>
    %276 = math.tanh %275 : vector<32x32xf32>
    %277 = vector.extract_strided_slice %264 {offsets = [32, 64], sizes = [32, 32], strides = [1, 1]} : vector<64x128xf32> to vector<32x32xf32>
    %278 = vector.broadcast %9 : vector<1x32xf32> to vector<32x32xf32>
    %279 = arith.addf %277, %278 : vector<32x32xf32>
    %280 = arith.negf %279 : vector<32x32xf32>
    %281 = math.exp %280 : vector<32x32xf32>
    %cst_77 = arith.constant 1.000000e+00 : f32
    %282 = vector.broadcast %cst_77 : f32 to vector<32x32xf32>
    %283 = arith.addf %282, %281 : vector<32x32xf32>
    %284 = arith.divf %282, %283 : vector<32x32xf32>
    %285 = vector.extract_strided_slice %264 {offsets = [32, 96], sizes = [32, 32], strides = [1, 1]} : vector<64x128xf32> to vector<32x32xf32>
    %286 = vector.broadcast %10 : vector<1x32xf32> to vector<32x32xf32>
    %287 = arith.addf %285, %286 : vector<32x32xf32>
    %288 = arith.negf %287 : vector<32x32xf32>
    %289 = math.exp %288 : vector<32x32xf32>
    %cst_78 = arith.constant 1.000000e+00 : f32
    %290 = vector.broadcast %cst_78 : f32 to vector<32x32xf32>
    %291 = arith.addf %290, %289 : vector<32x32xf32>
    %292 = arith.divf %290, %291 : vector<32x32xf32>
    %293 = arith.mulf %284, %248 : vector<32x32xf32>
    %294 = arith.mulf %272, %276 : vector<32x32xf32>
    %295 = arith.truncf %294 : vector<32x32xf32> to vector<32x32xbf16>
    %cst_79 = arith.constant dense<0.000000e+00> : vector<32x32xf32>
    %296 = tpu.matmul %259, %295, %cst_79 {dimension_numbers = #tpu.dot_dimension_numbers<[1], [0], [0], [1], [0, 0, 1, 1], [], []>} : vector<32x32xbf16>, vector<32x32xbf16>, vector<32x32xf32> -> vector<32x32xf32>
    %297 = arith.addf %293, %296 : vector<32x32xf32>
    %298 = math.tanh %297 : vector<32x32xf32>
    %299 = arith.mulf %292, %298 : vector<32x32xf32>
    %c1_i32_80 = arith.constant 1 : i32
    %300 = arith.addi %c5_i32, %c1_i32_80 : i32
    %301 = arith.index_cast %300 : i32 to index
    %c0_81 = arith.constant 0 : index
    %c0_82 = arith.constant 0 : index
    %302 = vector.load %arg8[%301, %c0_81, %c0_82] : memref<9x32x32xf32, #tpu.memory_space<vmem>>, vector<1x32x32xf32>
    %303 = vector.shape_cast %302 : vector<1x32x32xf32> to vector<32x32xf32>
    %304 = vector.shape_cast %299 : vector<32x32xf32> to vector<1x32x32xf32>
    tpu.vector_store %arg8[%301, %c0_81, %c0_82], %304 {strides = array<i32>} : memref<9x32x32xf32, #tpu.memory_space<vmem>>, vector<1x32x32xf32>,
    %c6_i32 = arith.constant 6 : i32
    %305 = arith.index_cast %c6_i32 : i32 to index
    %c0_83 = arith.constant 0 : index
    %c0_84 = arith.constant 0 : index
    %306 = vector.load %arg0[%305, %c0_83, %c0_84] : memref<8x32x32xf32, #tpu.memory_space<vmem>>, vector<1x32x32xf32>
    %307 = vector.shape_cast %306 : vector<1x32x32xf32> to vector<32x32xf32>
    %308 = arith.truncf %307 : vector<32x32xf32> to vector<32x32xbf16>
    %309 = arith.truncf %299 : vector<32x32xf32> to vector<32x32xbf16>
    %cst_85 = arith.constant dense<0.000000e+00> : vector<32x32xf32>
    %310 = tpu.matmul %308, %309, %cst_85 {dimension_numbers = #tpu.dot_dimension_numbers<[1], [0], [0], [1], [0, 0, 1, 1], [], []>} : vector<32x32xbf16>, vector<32x32xbf16>, vector<32x32xf32> -> vector<32x32xf32>
    %311 = tpu.concatenate %299, %310 in 0 : vector<32x32xf32>, vector<32x32xf32> -> vector<64x32xf32>
    %312 = arith.truncf %311 : vector<64x32xf32> to vector<64x32xbf16>
    %cst_86 = arith.constant dense<0.000000e+00> : vector<64x128xf32>
    %313 = tpu.matmul %312, %6, %cst_86 {dimension_numbers = #tpu.dot_dimension_numbers<[1], [0], [0], [1], [0, 0, 1, 1], [], []>} : vector<64x32xbf16>, vector<32x128xbf16>, vector<64x128xf32> -> vector<64x128xf32>
    %314 = vector.extract_strided_slice %313 {offsets = [0, 0], sizes = [32, 32], strides = [1, 1]} : vector<64x128xf32> to vector<32x32xf32>
    %315 = vector.broadcast %7 : vector<1x32xf32> to vector<32x32xf32>
    %316 = arith.addf %314, %315 : vector<32x32xf32>
    %317 = arith.negf %316 : vector<32x32xf32>
    %318 = math.exp %317 : vector<32x32xf32>
    %cst_87 = arith.constant 1.000000e+00 : f32
    %319 = vector.broadcast %cst_87 : f32 to vector<32x32xf32>
    %320 = arith.addf %319, %318 : vector<32x32xf32>
    %321 = arith.divf %319, %320 : vector<32x32xf32>
    %322 = vector.extract_strided_slice %313 {offsets = [0, 32], sizes = [32, 32], strides = [1, 1]} : vector<64x128xf32> to vector<32x32xf32>
    %323 = vector.broadcast %8 : vector<1x32xf32> to vector<32x32xf32>
    %324 = arith.addf %322, %323 : vector<32x32xf32>
    %325 = math.tanh %324 : vector<32x32xf32>
    %326 = vector.extract_strided_slice %313 {offsets = [32, 64], sizes = [32, 32], strides = [1, 1]} : vector<64x128xf32> to vector<32x32xf32>
    %327 = vector.broadcast %9 : vector<1x32xf32> to vector<32x32xf32>
    %328 = arith.addf %326, %327 : vector<32x32xf32>
    %329 = arith.negf %328 : vector<32x32xf32>
    %330 = math.exp %329 : vector<32x32xf32>
    %cst_88 = arith.constant 1.000000e+00 : f32
    %331 = vector.broadcast %cst_88 : f32 to vector<32x32xf32>
    %332 = arith.addf %331, %330 : vector<32x32xf32>
    %333 = arith.divf %331, %332 : vector<32x32xf32>
    %334 = vector.extract_strided_slice %313 {offsets = [32, 96], sizes = [32, 32], strides = [1, 1]} : vector<64x128xf32> to vector<32x32xf32>
    %335 = vector.broadcast %10 : vector<1x32xf32> to vector<32x32xf32>
    %336 = arith.addf %334, %335 : vector<32x32xf32>
    %337 = arith.negf %336 : vector<32x32xf32>
    %338 = math.exp %337 : vector<32x32xf32>
    %cst_89 = arith.constant 1.000000e+00 : f32
    %339 = vector.broadcast %cst_89 : f32 to vector<32x32xf32>
    %340 = arith.addf %339, %338 : vector<32x32xf32>
    %341 = arith.divf %339, %340 : vector<32x32xf32>
    %342 = arith.mulf %333, %297 : vector<32x32xf32>
    %343 = arith.mulf %321, %325 : vector<32x32xf32>
    %344 = arith.truncf %343 : vector<32x32xf32> to vector<32x32xbf16>
    %cst_90 = arith.constant dense<0.000000e+00> : vector<32x32xf32>
    %345 = tpu.matmul %308, %344, %cst_90 {dimension_numbers = #tpu.dot_dimension_numbers<[1], [0], [0], [1], [0, 0, 1, 1], [], []>} : vector<32x32xbf16>, vector<32x32xbf16>, vector<32x32xf32> -> vector<32x32xf32>
    %346 = arith.addf %342, %345 : vector<32x32xf32>
    %347 = math.tanh %346 : vector<32x32xf32>
    %348 = arith.mulf %341, %347 : vector<32x32xf32>
    %c1_i32_91 = arith.constant 1 : i32
    %349 = arith.addi %c6_i32, %c1_i32_91 : i32
    %350 = arith.index_cast %349 : i32 to index
    %c0_92 = arith.constant 0 : index
    %c0_93 = arith.constant 0 : index
    %351 = vector.load %arg8[%350, %c0_92, %c0_93] : memref<9x32x32xf32, #tpu.memory_space<vmem>>, vector<1x32x32xf32>
    %352 = vector.shape_cast %351 : vector<1x32x32xf32> to vector<32x32xf32>
    %353 = vector.shape_cast %348 : vector<32x32xf32> to vector<1x32x32xf32>
    tpu.vector_store %arg8[%350, %c0_92, %c0_93], %353 {strides = array<i32>} : memref<9x32x32xf32, #tpu.memory_space<vmem>>, vector<1x32x32xf32>,
    %c7_i32 = arith.constant 7 : i32
    %354 = arith.index_cast %c7_i32 : i32 to index
    %c0_94 = arith.constant 0 : index
    %c0_95 = arith.constant 0 : index
    %355 = vector.load %arg0[%354, %c0_94, %c0_95] : memref<8x32x32xf32, #tpu.memory_space<vmem>>, vector<1x32x32xf32>
    %356 = vector.shape_cast %355 : vector<1x32x32xf32> to vector<32x32xf32>
    %357 = arith.truncf %356 : vector<32x32xf32> to vector<32x32xbf16>
    %358 = arith.truncf %348 : vector<32x32xf32> to vector<32x32xbf16>
    %cst_96 = arith.constant dense<0.000000e+00> : vector<32x32xf32>
    %359 = tpu.matmul %357, %358, %cst_96 {dimension_numbers = #tpu.dot_dimension_numbers<[1], [0], [0], [1], [0, 0, 1, 1], [], []>} : vector<32x32xbf16>, vector<32x32xbf16>, vector<32x32xf32> -> vector<32x32xf32>
    %360 = tpu.concatenate %348, %359 in 0 : vector<32x32xf32>, vector<32x32xf32> -> vector<64x32xf32>
    %361 = arith.truncf %360 : vector<64x32xf32> to vector<64x32xbf16>
    %cst_97 = arith.constant dense<0.000000e+00> : vector<64x128xf32>
    %362 = tpu.matmul %361, %6, %cst_97 {dimension_numbers = #tpu.dot_dimension_numbers<[1], [0], [0], [1], [0, 0, 1, 1], [], []>} : vector<64x32xbf16>, vector<32x128xbf16>, vector<64x128xf32> -> vector<64x128xf32>
    %363 = vector.extract_strided_slice %362 {offsets = [0, 0], sizes = [32, 32], strides = [1, 1]} : vector<64x128xf32> to vector<32x32xf32>
    %364 = vector.broadcast %7 : vector<1x32xf32> to vector<32x32xf32>
    %365 = arith.addf %363, %364 : vector<32x32xf32>
    %366 = arith.negf %365 : vector<32x32xf32>
    %367 = math.exp %366 : vector<32x32xf32>
    %cst_98 = arith.constant 1.000000e+00 : f32
    %368 = vector.broadcast %cst_98 : f32 to vector<32x32xf32>
    %369 = arith.addf %368, %367 : vector<32x32xf32>
    %370 = arith.divf %368, %369 : vector<32x32xf32>
    %371 = vector.extract_strided_slice %362 {offsets = [0, 32], sizes = [32, 32], strides = [1, 1]} : vector<64x128xf32> to vector<32x32xf32>
    %372 = vector.broadcast %8 : vector<1x32xf32> to vector<32x32xf32>
    %373 = arith.addf %371, %372 : vector<32x32xf32>
    %374 = math.tanh %373 : vector<32x32xf32>
    %375 = vector.extract_strided_slice %362 {offsets = [32, 64], sizes = [32, 32], strides = [1, 1]} : vector<64x128xf32> to vector<32x32xf32>
    %376 = vector.broadcast %9 : vector<1x32xf32> to vector<32x32xf32>
    %377 = arith.addf %375, %376 : vector<32x32xf32>
    %378 = arith.negf %377 : vector<32x32xf32>
    %379 = math.exp %378 : vector<32x32xf32>
    %cst_99 = arith.constant 1.000000e+00 : f32
    %380 = vector.broadcast %cst_99 : f32 to vector<32x32xf32>
    %381 = arith.addf %380, %379 : vector<32x32xf32>
    %382 = arith.divf %380, %381 : vector<32x32xf32>
    %383 = vector.extract_strided_slice %362 {offsets = [32, 96], sizes = [32, 32], strides = [1, 1]} : vector<64x128xf32> to vector<32x32xf32>
    %384 = vector.broadcast %10 : vector<1x32xf32> to vector<32x32xf32>
    %385 = arith.addf %383, %384 : vector<32x32xf32>
    %386 = arith.negf %385 : vector<32x32xf32>
    %387 = math.exp %386 : vector<32x32xf32>
    %cst_100 = arith.constant 1.000000e+00 : f32
    %388 = vector.broadcast %cst_100 : f32 to vector<32x32xf32>
    %389 = arith.addf %388, %387 : vector<32x32xf32>
    %390 = arith.divf %388, %389 : vector<32x32xf32>
    %391 = arith.mulf %382, %346 : vector<32x32xf32>
    %392 = arith.mulf %370, %374 : vector<32x32xf32>
    %393 = arith.truncf %392 : vector<32x32xf32> to vector<32x32xbf16>
    %cst_101 = arith.constant dense<0.000000e+00> : vector<32x32xf32>
    %394 = tpu.matmul %357, %393, %cst_101 {dimension_numbers = #tpu.dot_dimension_numbers<[1], [0], [0], [1], [0, 0, 1, 1], [], []>} : vector<32x32xbf16>, vector<32x32xbf16>, vector<32x32xf32> -> vector<32x32xf32>
    %395 = arith.addf %391, %394 : vector<32x32xf32>
    %396 = math.tanh %395 : vector<32x32xf32>
    %397 = arith.mulf %390, %396 : vector<32x32xf32>
    %c1_i32_102 = arith.constant 1 : i32
    %398 = arith.addi %c7_i32, %c1_i32_102 : i32
    %399 = arith.index_cast %398 : i32 to index
    %c0_103 = arith.constant 0 : index
    %c0_104 = arith.constant 0 : index
    %400 = vector.load %arg8[%399, %c0_103, %c0_104] : memref<9x32x32xf32, #tpu.memory_space<vmem>>, vector<1x32x32xf32>
    %401 = vector.shape_cast %400 : vector<1x32x32xf32> to vector<32x32xf32>
    %402 = vector.shape_cast %397 : vector<32x32xf32> to vector<1x32x32xf32>
    tpu.vector_store %arg8[%399, %c0_103, %c0_104], %402 {strides = array<i32>} : memref<9x32x32xf32, #tpu.memory_space<vmem>>, vector<1x32x32xf32>,
    %c8_i32 = arith.constant 8 : i32
    %c0_105 = arith.constant 0 : index
    %c0_106 = arith.constant 0 : index
    %403 = vector.load %arg9[%c0_105, %c0_106] : memref<32x32xf32, #tpu.memory_space<vmem>>, vector<32x32xf32>
    tpu.vector_store %arg9[%c0_105, %c0_106], %397 {strides = array<i32>} : memref<32x32xf32, #tpu.memory_space<vmem>>, vector<32x32xf32>,
    %c0_107 = arith.constant 0 : index
    %c0_108 = arith.constant 0 : index
    %404 = vector.load %arg10[%c0_107, %c0_108] : memref<32x32xf32, #tpu.memory_space<vmem>>, vector<32x32xf32>
    tpu.vector_store %arg10[%c0_107, %c0_108], %395 {strides = array<i32>} : memref<32x32xf32, #tpu.memory_space<vmem>>, vector<32x32xf32>,
    return
  }
}

</mosaic_0001>

<llo_original>
// kernel: my_lstm_forward.1
$region0: #{my_lstm_forward.1}
  #allocation0 [shape = 'u32[]', space=smem, size = 0x4, offset = 0x4, fixed_abs, tag = 'smem constant byte address 0x4 - core index']
  #allocation1 [shape = 'u32[144,128]{1,0:T(1,128)}', space=vmem, size = 0x12000, scoped, tag = 'internal scratch']
  %s0 = inlined_call_operand.vmem [shape: f32[8,32,32], index: 0, kind: input, shape index: {}]
  %s1 = inlined_call_operand.vmem [shape: f32[32,32], index: 1, kind: input, shape index: {}, may-alias: {1,2}]
  %s2 = inlined_call_operand.vmem [shape: f32[32,32], index: 2, kind: input, shape index: {}, may-alias: {1,2}]
  %s3 = inlined_call_operand.vmem [shape: bf16[32,128], index: 3, kind: input, shape index: {}]
  %s4 = inlined_call_operand.vmem [shape: f32[1,32], index: 4, kind: input, shape index: {}]
  %s5 = inlined_call_operand.vmem [shape: f32[1,32], index: 5, kind: input, shape index: {}]
  %s6 = inlined_call_operand.hbm [shape: f32[1,32], index: 6, kind: input, shape index: {}]
  %s7 = inlined_call_operand.vmem [shape: f32[1,32], index: 7, kind: input, shape index: {}]
  %s8 = inlined_call_operand.hbm [shape: f32[9,32,32], index: 8, kind: output, shape index: {0}]
  %s9 = inlined_call_operand.hbm [shape: f32[32,32], index: 9, kind: output, shape index: {1}]
  %s10 = inlined_call_operand.hbm [shape: f32[32,32], index: 10, kind: output, shape index: {2}]
  %11 = xla_tuple %s8, %s9, %s10
  %s12 = sld [smem:[#allocation0]]
  $region62: #{my_lstm_forward.1} parent=0
    _
  %s14 = ssub.s32 1, %s12
  %s15 = scalar_select 0, %s14, %s12
  $region1: #{my_lstm_forward.1} parent=0
    #allocation2 [shape = 'u8[512]{0}', space=vmem, size = 0x400, scoped, tag = 'input window, operand 6, single buffered']
    #allocation3 [shape = 's32[1]{0}', space=sflag, size = 0x4, scoped, tag = 'scoped memory for my_lstm_forward.1']
    #allocation4 [shape = 's32[1]{0}', space=sflag, size = 0x4, scoped, tag = 'scoped memory for my_lstm_forward.1']
    #allocation5 [shape = 'u8[147456]{0}', space=vmem, size = 0x24000, scoped, tag = 'output window, operand 0, single buffered']
    #allocation6 [shape = 'u8[16384]{0}', space=vmem, size = 0x4000, scoped, tag = 'output window, operand 1, single buffered']
    #allocation7 [shape = 's32[1]{0}', space=sflag, size = 0x4, scoped, tag = 'scoped memory for my_lstm_forward.1']
    #allocation8 [shape = 'u8[16384]{0}', space=vmem, size = 0x4000, scoped, tag = 'output window, operand 2, single buffered']
    %16 = vsyncpa [#allocation3], 0
    %17 = vsyncpa [#allocation4], 0
    %18 = vsyncpa [#allocation7], 0
    // Predicated region
    $region2: #{my_lstm_forward.1} parent=1 // pred_check
      _
    $region3: #{my_lstm_forward.1} parent=1 // pred_check_branch
      %20 = sbr.rel (0) target = $region5
    $region4: #{my_lstm_forward.1} parent=1 // pred_region
      _
    $region5: #{my_lstm_forward.1} parent=1 // pred_fallthru
      _
    // Predicated region
    $region6: #{my_lstm_forward.1} parent=1 // pred_check
      _
    $region7: #{my_lstm_forward.1} parent=1 // pred_check_branch
      %22 = sbr.rel (0) target = $region9
    $region8: #{my_lstm_forward.1} parent=1 // pred_region
      _
    $region9: #{my_lstm_forward.1} parent=1 // pred_fallthru
      _
    // Predicated region
    $region10: #{my_lstm_forward.1} parent=1 // pred_check
      _
    $region11: #{my_lstm_forward.1} parent=1 // pred_check_branch
      %24 = sbr.rel (0) target = $region13
    $region12: #{my_lstm_forward.1} parent=1 // pred_region
      _
    $region13: #{my_lstm_forward.1} parent=1 // pred_fallthru
      _
    // Predicated region
    $region14: #{my_lstm_forward.1} parent=1 // pred_check
      _
    $region15: #{my_lstm_forward.1} parent=1 // pred_check_branch
      %26 = sbr.rel (0) target = $region17
    $region16: #{my_lstm_forward.1} parent=1 // pred_region
      _
    $region17: #{my_lstm_forward.1} parent=1 // pred_fallthru
      _
    // Predicated region
    $region18: #{my_lstm_forward.1} parent=1 // pred_check
      _
    $region19: #{my_lstm_forward.1} parent=1 // pred_check_branch
      %28 = sbr.rel (0) target = $region21
    $region20: #{my_lstm_forward.1} parent=1 // pred_region
      _
    $region21: #{my_lstm_forward.1} parent=1 // pred_fallthru
      _
    // Predicated region
    $region22: #{my_lstm_forward.1} parent=1 // pred_check
      _
    $region23: #{my_lstm_forward.1} parent=1 // pred_check_branch
      %30 = sbr.rel (0) target = $region25
    $region24: #{my_lstm_forward.1} parent=1 // pred_region
      _
    $region25: #{my_lstm_forward.1} parent=1 // pred_fallthru
      _
    // Predicated region
    $region26: #{my_lstm_forward.1} parent=1 // pred_check
      _
    $region27: #{my_lstm_forward.1} parent=1 // pred_check_branch
      %32 = sbr.rel (0) target = $region29
    $region28: #{my_lstm_forward.1} parent=1 // pred_region
      %s34 = ssub.s32 16, 16
      %35 = vsyncadd [#allocation3], %s34
      %s37 = sshll.u32 [#allocation2], 4
      %s38 = int_to_ptr.vmem [resolvable:$true] %s37
      %40 = dma.hbm_to_vmem [thread:$0]  %s6, 16, %s38, [#allocation3]
    $region29: #{my_lstm_forward.1} parent=1 // pred_fallthru
      _
    // Predicated region
    $region30: #{my_lstm_forward.1} parent=1 // pred_check
      _
    $region31: #{my_lstm_forward.1} parent=1 // pred_check_branch
      %42 = sbr.rel (0) target = $region33
    $region32: #{my_lstm_forward.1} parent=1 // pred_region
      _
    $region33: #{my_lstm_forward.1} parent=1 // pred_fallthru
      _
    // Predicated region
    $region34: #{my_lstm_forward.1} parent=1 // pred_check
      _
    $region35: #{my_lstm_forward.1} parent=1 // pred_check_branch
      %44 = sbr.rel (0) target = $region37
    $region36: #{my_lstm_forward.1} parent=1 // pred_region
      %45 = dma.done [#allocation3], 16
    $region37: #{my_lstm_forward.1} parent=1 // pred_fallthru
      _
    %v47 = vld [vmem:[%s1] sm:$0xff]
    %v48 = vld [vmem:[%s1 + $0x8] sm:$0xff]
    %v49 = vld [vmem:[%s1 + $0x10] sm:$0xff]
    %v50 = vld [vmem:[%s1 + $0x18] sm:$0xff]
    %vm51 = vcmask 261120
    %52 = vst.msk [vmem:[#allocation5] sm:$0xff] %vm51, %v47
    %53 = vst.msk [vmem:[#allocation5 + $0x8] sm:$0xff] %vm51, %v48
    %54 = vst.msk [vmem:[#allocation5 + $0x10] sm:$0xff] %vm51, %v49
    %55 = vst.msk [vmem:[#allocation5 + $0x18] sm:$0xff] %vm51, %v50
    %v56 = vld [vmem:[%s1] sm:$0xff]
    %v57 = vld [vmem:[%s1 + $0x8] sm:$0xff]
    %v58 = vld [vmem:[%s1 + $0x10] sm:$0xff]
    %v59 = vld [vmem:[%s1 + $0x18] sm:$0xff]
    %v60 = vld [vmem:[%s2] sm:$0xff]
    %v61 = vld [vmem:[%s2 + $0x8] sm:$0xff]
    %v62 = vld [vmem:[%s2 + $0x10] sm:$0xff]
    %v63 = vld [vmem:[%s2 + $0x18] sm:$0xff]
    %v64 = vld [vmem:[%s3] sm:$0xf]
    %v65 = vld [vmem:[%s3 + $0x4] sm:$0xf]
    %v66 = vld [vmem:[%s3 + $0x8] sm:$0xf]
    %v67 = vld [vmem:[%s3 + $0xc] sm:$0xf]
    %v68 = vld [vmem:[%s4] sm:$0x1]
    %v69 = vld [vmem:[%s5] sm:$0x1]
    %v70 = vld [vmem:[#allocation2] sm:$0x1]
    %v71 = vld [vmem:[%s7] sm:$0x1]
    %v72 = vld [vmem:[%s0] sm:$0xff]
    %v73 = vld [vmem:[%s0 + $0x8] sm:$0xff]
    %v74 = vld [vmem:[%s0 + $0x10] sm:$0xff]
    %v75 = vld [vmem:[%s0 + $0x18] sm:$0xff]
    %v76 = vpack.c.bf16 %v73, %v72
    %v77 = vpack.c.bf16 %v75, %v74
    %v78 = vpack.c.bf16 %v57, %v56
    %v79 = vpack.c.bf16 %v59, %v58
    %v81 = vsel %vm51, %v76, 0
    %v84 = vsel %vm51, %v77, 0
    %86 = vmatprep.subr.bf16.mxu0 0
    %87 = vmatpush1.bf16.msra.mxu0 0
    %88 = vmatprep.subr.bf16.mxu0 0
    %89 = vmatpush1.bf16.msra.mxu0 0
    %90 = vmatprep.subr.bf16.mxu0 0
    %91 = vmatpush1.bf16.msra.mxu0 0
    %92 = vmatprep.subr.bf16.mxu0 0
    %93 = vmatpush1.bf16.msra.mxu0 0
    %94 = vmatprep.subr.bf16.mxu0 0
    %95 = vmatpush1.bf16.msra.mxu0 0
    %96 = vmatprep.subr.bf16.mxu0 0
    %97 = vmatpush1.bf16.msra.mxu0 0
    %98 = vmatprep.subr.bf16.mxu0 0
    %99 = vmatpush1.bf16.msra.mxu0 %v79
    %100 = vmatprep.subr.bf16.mxu0 0
    %101 = vmatpush1.bf16.msra.mxu0 %v78
    %102 = vmatprep.subr.bf16.mxu0 0
    %103 = vmatpush2.bf16.msra.mxu0 0
    %104 = vmatprep.subr.bf16.mxu0 0
    %105 = vmatpush2.bf16.msra.mxu0 0
    %106 = vmatprep.subr.bf16.mxu0 0
    %107 = vmatpush2.bf16.msra.mxu0 0
    %108 = vmatprep.subr.bf16.mxu0 0
    %109 = vmatpush2.bf16.msra.mxu0 0
    %110 = vmatprep.subr.bf16.mxu0 0
    %111 = vmatpush2.bf16.msra.mxu0 0
    %112 = vmatprep.subr.bf16.mxu0 0
    %113 = vmatpush2.bf16.msra.mxu0 0
    %114 = vmatprep.subr.bf16.mxu0 0
    %115 = vmatpush2.bf16.msra.mxu0 0
    %116 = vmatprep.subr.bf16.mxu0 0
    %117 = vmatpush2.bf16.msra.mxu0 0
    %118 = vmatprep.mubr.bf16.mxu0 0
    %119 = vmatmul.mubr.bf16.gmra.mxu0 %v81
    %v120 = vpop.f32.mrf.mxu0
    %v121 = vadd.f32 0.0, %v120
    %v122 = vpop.f32.mrf.mxu0
    %v123 = vpop.f32.mrf.mxu0
    %v124 = vadd.f32 0.0, %v123
    %v125 = vpop.f32.mrf.mxu0
    %126 = vmatprep.mubr.bf16.mxu0 0
    %127 = vmatmul.mubr.bf16.gmra.mxu0 %v84
    %v128 = vpop.f32.mrf.mxu0
    %v129 = vadd.f32 0.0, %v128
    %v130 = vpop.f32.mrf.mxu0
    %v131 = vpop.f32.mrf.mxu0
    %v132 = vadd.f32 0.0, %v131
    %v133 = vpop.f32.mrf.mxu0
    %134 = vdwg.mxu0
    %v135 = vpack.c.bf16 %v124, %v121
    %v136 = vpack.c.bf16 %v132, %v129
    %v141 = vunpack.c.l.b16 %v64
    %v142 = vunpack.c.l.b16 %v65
    %v143 = vunpack.c.l.b16 %v66
    %v144 = vunpack.c.l.b16 %v67
    %v145 = vpack.c.b16 %v142, %v141
    %v146 = vpack.c.b16 %v144, %v143
    %v150 = vsel %vm51, %v78, 0
    %v153 = vsel %vm51, %v79, 0
    %v156 = vsel %vm51, %v135, 0
    %v159 = vsel %vm51, %v136, 0
    %161 = vmatprep.subr.bf16.mxu0 0
    %162 = vmatpush1.bf16.msra.mxu0 0
    %163 = vmatprep.subr.bf16.mxu0 0
    %164 = vmatpush1.bf16.msra.mxu0 0
    %165 = vmatprep.subr.bf16.mxu0 0
    %166 = vmatpush1.bf16.msra.mxu0 0
    %167 = vmatprep.subr.bf16.mxu0 0
    %168 = vmatpush1.bf16.msra.mxu0 0
    %169 = vmatprep.subr.bf16.mxu0 0
    %170 = vmatpush1.bf16.msra.mxu0 0
    %171 = vmatprep.subr.bf16.mxu0 0
    %172 = vmatpush1.bf16.msra.mxu0 0
    %173 = vmatprep.subr.bf16.mxu0 0
    %174 = vmatpush1.bf16.msra.mxu0 %v146
    %175 = vmatprep.subr.bf16.mxu0 0
    %176 = vmatpush1.bf16.msra.mxu0 %v145
    %177 = vmatprep.subr.bf16.mxu0 0
    %178 = vmatpush2.bf16.msra.mxu0 0
    %179 = vmatprep.subr.bf16.mxu0 0
    %180 = vmatpush2.bf16.msra.mxu0 0
    %181 = vmatprep.subr.bf16.mxu0 0
    %182 = vmatpush2.bf16.msra.mxu0 0
    %183 = vmatprep.subr.bf16.mxu0 0
    %184 = vmatpush2.bf16.msra.mxu0 0
    %185 = vmatprep.subr.bf16.mxu0 0
    %186 = vmatpush2.bf16.msra.mxu0 0
    %187 = vmatprep.subr.bf16.mxu0 0
    %188 = vmatpush2.bf16.msra.mxu0 0
    %189 = vmatprep.subr.bf16.mxu0 0
    %190 = vmatpush2.bf16.msra.mxu0 0
    %191 = vmatprep.subr.bf16.mxu0 0
    %192 = vmatpush2.bf16.msra.mxu0 0
    %193 = vmatprep.mubr.bf16.mxu0 0
    %194 = vmatmul.mubr.bf16.gmra.mxu0 %v150
    %v195 = vpop.f32.mrf.mxu0
    %v196 = vadd.f32 0.0, %v195
    %v197 = vpop.f32.mrf.mxu0
    %v198 = vpop.f32.mrf.mxu0
    %v199 = vadd.f32 0.0, %v198
    %v200 = vpop.f32.mrf.mxu0
    %201 = vmatprep.mubr.bf16.mxu0 0
    %202 = vmatmul.mubr.bf16.gmra.mxu0 %v153
    %v203 = vpop.f32.mrf.mxu0
    %v204 = vadd.f32 0.0, %v203
    %v205 = vpop.f32.mrf.mxu0
    %v206 = vpop.f32.mrf.mxu0
    %v207 = vadd.f32 0.0, %v206
    %v208 = vpop.f32.mrf.mxu0
    %209 = vmatprep.mubr.bf16.mxu0 0
    %210 = vmatmul.mubr.bf16.gmra.mxu0 %v156
    %v211 = vpop.f32.mrf.mxu0
    %v212 = vadd.f32 0.0, %v211
    %v213 = vpop.f32.mrf.mxu0
    %v214 = vpop.f32.mrf.mxu0
    %v215 = vadd.f32 0.0, %v214
    %v216 = vpop.f32.mrf.mxu0
    %217 = vmatprep.mubr.bf16.mxu0 0
    %218 = vmatmul.mubr.bf16.gmra.mxu0 %v159
    %v219 = vpop.f32.mrf.mxu0
    %v220 = vadd.f32 0.0, %v219
    %v221 = vpop.f32.mrf.mxu0
    %v222 = vpop.f32.mrf.mxu0
    %v223 = vadd.f32 0.0, %v222
    %v224 = vpop.f32.mrf.mxu0
    %225 = vdwg.mxu0
    %v227 = vlaneseq
    %v228 = vshrl.u32 %v227, 7
    %v229 = vsub.s32 0, %v228
    %v230 = vrot.slane %v68, %v229
    %v232 = vadd.f32 %v196, %v230
    %v233 = vadd.f32 %v199, %v230
    %v234 = vadd.f32 %v204, %v230
    %v235 = vadd.f32 %v207, %v230
    %v236 = vxor.u32 %v232, 2147483648
    %v237 = vxor.u32 %v233, 2147483648
    %v238 = vxor.u32 %v234, 2147483648
    %v239 = vxor.u32 %v235, 2147483648
    %v240 = vmul.f32 %v236, 1.442695
    %v241 = vpow.pop %v240
    %v242 = vmul.f32 %v237, 1.442695
    %v243 = vpow.pop %v242
    %v244 = vmul.f32 %v238, 1.442695
    %v245 = vpow.pop %v244
    %v246 = vmul.f32 %v239, 1.442695
    %v247 = vpow.pop %v246
    %v248 = vadd.f32 %v241, 1.0
    %v249 = vadd.f32 %v243, 1.0
    %v250 = vadd.f32 %v245, 1.0
    %v251 = vadd.f32 %v247, 1.0
    %v252 = vrcp.pop %v248
    %v253 = vmul.f32 1.0, %v252
    %v254 = vrcp.pop %v249
    %v255 = vmul.f32 1.0, %v254
    %v256 = vrcp.pop %v250
    %v257 = vmul.f32 1.0, %v256
    %v258 = vrcp.pop %v251
    %v259 = vmul.f32 1.0, %v258
    %v261 = vlaneseq
    %v262 = vshrl.u32 %v261, 7
    %v263 = vsub.s32 0, %v262
    %v264 = vrot.slane %v69, %v263
    %265 = vrot.lane.b32.xlu0 %v264, 32
    %v266 = vpop.permute.xlu0 %265
    %v268 = vadd.f32 %v196, %v266
    %v269 = vadd.f32 %v199, %v266
    %v270 = vadd.f32 %v204, %v266
    %v271 = vadd.f32 %v207, %v266
    %v272 = vtanh.pop %v268
    %v273 = vtanh.pop %v269
    %v274 = vtanh.pop %v270
    %v275 = vtanh.pop %v271
    %v277 = vlaneseq
    %v278 = vshrl.u32 %v277, 7
    %v279 = vsub.s32 0, %v278
    %v280 = vrot.slane %v70, %v279
    %281 = vrot.lane.b32.xlu0 %v280, 64
    %v282 = vpop.permute.xlu0 %281
    %v284 = vadd.f32 %v212, %v282
    %v285 = vadd.f32 %v215, %v282
    %v286 = vadd.f32 %v220, %v282
    %v287 = vadd.f32 %v223, %v282
    %v288 = vxor.u32 %v284, 2147483648
    %v289 = vxor.u32 %v285, 2147483648
    %v290 = vxor.u32 %v286, 2147483648
    %v291 = vxor.u32 %v287, 2147483648
    %v292 = vmul.f32 %v288, 1.442695
    %v293 = vpow.pop %v292
    %v294 = vmul.f32 %v289, 1.442695
    %v295 = vpow.pop %v294
    %v296 = vmul.f32 %v290, 1.442695
    %v297 = vpow.pop %v296
    %v298 = vmul.f32 %v291, 1.442695
    %v299 = vpow.pop %v298
    %v300 = vadd.f32 %v293, 1.0
    %v301 = vadd.f32 %v295, 1.0
    %v302 = vadd.f32 %v297, 1.0
    %v303 = vadd.f32 %v299, 1.0
    %v304 = vrcp.pop %v300
    %v305 = vmul.f32 1.0, %v304
    %v306 = vrcp.pop %v301
    %v307 = vmul.f32 1.0, %v306
    %v308 = vrcp.pop %v302
    %v309 = vmul.f32 1.0, %v308
    %v310 = vrcp.pop %v303
    %v311 = vmul.f32 1.0, %v310
    %v313 = vlaneseq
    %v314 = vshrl.u32 %v313, 7
    %v315 = vsub.s32 0, %v314
    %v316 = vrot.slane %v71, %v315
    %317 = vrot.lane.b32.xlu0 %v316, 96
    %v318 = vpop.permute.xlu0 %317
    %v320 = vadd.f32 %v212, %v318
    %v321 = vadd.f32 %v215, %v318
    %v322 = vadd.f32 %v220, %v318
    %v323 = vadd.f32 %v223, %v318
    %v324 = vxor.u32 %v320, 2147483648
    %v325 = vxor.u32 %v321, 2147483648
    %v326 = vxor.u32 %v322, 2147483648
    %v327 = vxor.u32 %v323, 2147483648
    %v328 = vmul.f32 %v324, 1.442695
    %v329 = vpow.pop %v328
    %v330 = vmul.f32 %v325, 1.442695
    %v331 = vpow.pop %v330
    %v332 = vmul.f32 %v326, 1.442695
    %v333 = vpow.pop %v332
    %v334 = vmul.f32 %v327, 1.442695
    %v335 = vpow.pop %v334
    %v336 = vadd.f32 %v329, 1.0
    %v337 = vadd.f32 %v331, 1.0
    %v338 = vadd.f32 %v333, 1.0
    %v339 = vadd.f32 %v335, 1.0
    %v340 = vrcp.pop %v336
    %v341 = vmul.f32 1.0, %v340
    %v342 = vrcp.pop %v337
    %v343 = vmul.f32 1.0, %v342
    %v344 = vrcp.pop %v338
    %v345 = vmul.f32 1.0, %v344
    %v346 = vrcp.pop %v339
    %v347 = vmul.f32 1.0, %v346
    %352 = vrot.lane.b32.xlu0 %v60, 64
    %v353 = vpop.permute.xlu0 %352
    %354 = vrot.lane.b32.xlu0 %v61, 64
    %v355 = vpop.permute.xlu0 %354
    %356 = vrot.lane.b32.xlu0 %v62, 64
    %v357 = vpop.permute.xlu0 %356
    %358 = vrot.lane.b32.xlu0 %v63, 64
    %v359 = vpop.permute.xlu0 %358
    %v364 = vmul.f32 %v305, %v353
    %v365 = vmul.f32 %v307, %v355
    %v366 = vmul.f32 %v309, %v357
    %v367 = vmul.f32 %v311, %v359
    %372 = vrot.lane.b32.xlu0 %v272, 96
    %v373 = vpop.permute.xlu0 %372
    %374 = vrot.lane.b32.xlu0 %v273, 96
    %v375 = vpop.permute.xlu0 %374
    %376 = vrot.lane.b32.xlu0 %v274, 96
    %v377 = vpop.permute.xlu0 %376
    %378 = vrot.lane.b32.xlu0 %v275, 96
    %v379 = vpop.permute.xlu0 %378
    %v384 = vmul.f32 %v253, %v373
    %v385 = vmul.f32 %v255, %v375
    %v386 = vmul.f32 %v257, %v377
    %v387 = vmul.f32 %v259, %v379
    %v388 = vpack.c.bf16 %v385, %v384
    %v389 = vpack.c.bf16 %v387, %v386
    %390 = vmatprep.subr.bf16.mxu0 0
    %391 = vmatpush1.bf16.msra.mxu0 0
    %392 = vmatprep.subr.bf16.mxu0 0
    %393 = vmatpush1.bf16.msra.mxu0 0
    %394 = vmatprep.subr.bf16.mxu0 0
    %395 = vmatpush1.bf16.msra.mxu0 0
    %396 = vmatprep.subr.bf16.mxu0 0
    %397 = vmatpush1.bf16.msra.mxu0 0
    %398 = vmatprep.subr.bf16.mxu0 0
    %399 = vmatpush1.bf16.msra.mxu0 0
    %400 = vmatprep.subr.bf16.mxu0 0
    %401 = vmatpush1.bf16.msra.mxu0 0
    %402 = vmatprep.subr.bf16.mxu0 0
    %403 = vmatpush1.bf16.msra.mxu0 %v389
    %404 = vmatprep.subr.bf16.mxu0 0
    %405 = vmatpush1.bf16.msra.mxu0 %v388
    %406 = vmatprep.subr.bf16.mxu0 0
    %407 = vmatpush2.bf16.msra.mxu0 0
    %408 = vmatprep.subr.bf16.mxu0 0
    %409 = vmatpush2.bf16.msra.mxu0 0
    %410 = vmatprep.subr.bf16.mxu0 0
    %411 = vmatpush2.bf16.msra.mxu0 0
    %412 = vmatprep.subr.bf16.mxu0 0
    %413 = vmatpush2.bf16.msra.mxu0 0
    %414 = vmatprep.subr.bf16.mxu0 0
    %415 = vmatpush2.bf16.msra.mxu0 0
    %416 = vmatprep.subr.bf16.mxu0 0
    %417 = vmatpush2.bf16.msra.mxu0 0
    %418 = vmatprep.subr.bf16.mxu0 0
    %419 = vmatpush2.bf16.msra.mxu0 0
    %420 = vmatprep.subr.bf16.mxu0 0
    %421 = vmatpush2.bf16.msra.mxu0 0
    %422 = vmatprep.mubr.bf16.mxu0 0
    %423 = vmatmul.mubr.bf16.gmra.mxu0 %v81
    %v424 = vpop.f32.mrf.mxu0
    %v425 = vadd.f32 0.0, %v424
    %v426 = vpop.f32.mrf.mxu0
    %v427 = vpop.f32.mrf.mxu0
    %v428 = vadd.f32 0.0, %v427
    %v429 = vpop.f32.mrf.mxu0
    %430 = vmatprep.mubr.bf16.mxu0 0
    %431 = vmatmul.mubr.bf16.gmra.mxu0 %v84
    %v432 = vpop.f32.mrf.mxu0
    %v433 = vadd.f32 0.0, %v432
    %v434 = vpop.f32.mrf.mxu0
    %v435 = vpop.f32.mrf.mxu0
    %v436 = vadd.f32 0.0, %v435
    %v437 = vpop.f32.mrf.mxu0
    %438 = vdwg.mxu0
    %443 = vrot.lane.b32.xlu0 %v425, 64
    %v444 = vpop.permute.xlu0 %443
    %445 = vrot.lane.b32.xlu0 %v428, 64
    %v446 = vpop.permute.xlu0 %445
    %447 = vrot.lane.b32.xlu0 %v433, 64
    %v448 = vpop.permute.xlu0 %447
    %449 = vrot.lane.b32.xlu0 %v436, 64
    %v450 = vpop.permute.xlu0 %449
    %v455 = vadd.f32 %v364, %v444
    %v456 = vadd.f32 %v365, %v446
    %v457 = vadd.f32 %v366, %v448
    %v458 = vadd.f32 %v367, %v450
    %v459 = vtanh.pop %v455
    %v460 = vtanh.pop %v456
    %v461 = vtanh.pop %v457
    %v462 = vtanh.pop %v458
    %467 = vrot.lane.b32.xlu0 %v459, 32
    %v468 = vpop.permute.xlu0 %467
    %469 = vrot.lane.b32.xlu0 %v460, 32
    %v470 = vpop.permute.xlu0 %469
    %471 = vrot.lane.b32.xlu0 %v461, 32
    %v472 = vpop.permute.xlu0 %471
    %473 = vrot.lane.b32.xlu0 %v462, 32
    %v474 = vpop.permute.xlu0 %473
    %v479 = vmul.f32 %v341, %v468
    %v480 = vmul.f32 %v343, %v470
    %v481 = vmul.f32 %v345, %v472
    %v482 = vmul.f32 %v347, %v474
    %487 = vrot.lane.b32.xlu0 %v479, 32
    %v488 = vpop.permute.xlu0 %487
    %489 = vrot.lane.b32.xlu0 %v480, 32
    %v490 = vpop.permute.xlu0 %489
    %491 = vrot.lane.b32.xlu0 %v481, 32
    %v492 = vpop.permute.xlu0 %491
    %493 = vrot.lane.b32.xlu0 %v482, 32
    %v494 = vpop.permute.xlu0 %493
    %s499 = scalar_lea.vmem [#allocation5], 32
    %500 = vst.msk [vmem:[%s499] sm:$0xff] %vm51, %v488
    %501 = vst.msk [vmem:[%s499 + $0x8] sm:$0xff] %vm51, %v490
    %502 = vst.msk [vmem:[%s499 + $0x10] sm:$0xff] %vm51, %v492
    %503 = vst.msk [vmem:[%s499 + $0x18] sm:$0xff] %vm51, %v494
    %s504 = scalar_lea.vmem %s0, 32
    %v505 = vld [vmem:[%s504] sm:$0xff]
    %v506 = vld [vmem:[%s504 + $0x8] sm:$0xff]
    %v507 = vld [vmem:[%s504 + $0x10] sm:$0xff]
    %v508 = vld [vmem:[%s504 + $0x18] sm:$0xff]
    %v509 = vpack.c.bf16 %v506, %v505
    %v510 = vpack.c.bf16 %v508, %v507
    %v511 = vpack.c.bf16 %v480, %v479
    %v512 = vpack.c.bf16 %v482, %v481
    %515 = vrot.lane.b32.xlu0 %v511, 32
    %v516 = vpop.permute.xlu0 %515
    %517 = vrot.lane.b32.xlu0 %v512, 32
    %v518 = vpop.permute.xlu0 %517
    %v522 = vsel %vm51, %v509, 0
    %v525 = vsel %vm51, %v510, 0
    %527 = vmatprep.subr.bf16.mxu0 0
    %528 = vmatpush1.bf16.msra.mxu0 0
    %529 = vmatprep.subr.bf16.mxu0 0
    %530 = vmatpush1.bf16.msra.mxu0 0
    %531 = vmatprep.subr.bf16.mxu0 0
    %532 = vmatpush1.bf16.msra.mxu0 0
    %533 = vmatprep.subr.bf16.mxu0 0
    %534 = vmatpush1.bf16.msra.mxu0 0
    %535 = vmatprep.subr.bf16.mxu0 0
    %536 = vmatpush1.bf16.msra.mxu0 0
    %537 = vmatprep.subr.bf16.mxu0 0
    %538 = vmatpush1.bf16.msra.mxu0 0
    %539 = vmatprep.subr.bf16.mxu0 0
    %540 = vmatpush1.bf16.msra.mxu0 %v518
    %541 = vmatprep.subr.bf16.mxu0 0
    %542 = vmatpush1.bf16.msra.mxu0 %v516
    %543 = vmatprep.subr.bf16.mxu0 0
    %544 = vmatpush2.bf16.msra.mxu0 0
    %545 = vmatprep.subr.bf16.mxu0 0
    %546 = vmatpush2.bf16.msra.mxu0 0
    %547 = vmatprep.subr.bf16.mxu0 0
    %548 = vmatpush2.bf16.msra.mxu0 0
    %549 = vmatprep.subr.bf16.mxu0 0
    %550 = vmatpush2.bf16.msra.mxu0 0
    %551 = vmatprep.subr.bf16.mxu0 0
    %552 = vmatpush2.bf16.msra.mxu0 0
    %553 = vmatprep.subr.bf16.mxu0 0
    %554 = vmatpush2.bf16.msra.mxu0 0
    %555 = vmatprep.subr.bf16.mxu0 0
    %556 = vmatpush2.bf16.msra.mxu0 0
    %557 = vmatprep.subr.bf16.mxu0 0
    %558 = vmatpush2.bf16.msra.mxu0 0
    %559 = vmatprep.mubr.bf16.mxu0 0
    %560 = vmatmul.mubr.bf16.gmra.mxu0 %v522
    %v561 = vpop.f32.mrf.mxu0
    %v562 = vadd.f32 0.0, %v561
    %v563 = vpop.f32.mrf.mxu0
    %v564 = vpop.f32.mrf.mxu0
    %v565 = vadd.f32 0.0, %v564
    %v566 = vpop.f32.mrf.mxu0
    %567 = vmatprep.mubr.bf16.mxu0 0
    %568 = vmatmul.mubr.bf16.gmra.mxu0 %v525
    %v569 = vpop.f32.mrf.mxu0
    %v570 = vadd.f32 0.0, %v569
    %v571 = vpop.f32.mrf.mxu0
    %v572 = vpop.f32.mrf.mxu0
    %v573 = vadd.f32 0.0, %v572
    %v574 = vpop.f32.mrf.mxu0
    %575 = vdwg.mxu0
    %580 = vrot.lane.b32.xlu0 %v562, 96
    %v581 = vpop.permute.xlu0 %580
    %582 = vrot.lane.b32.xlu0 %v565, 96
    %v583 = vpop.permute.xlu0 %582
    %584 = vrot.lane.b32.xlu0 %v570, 96
    %v585 = vpop.permute.xlu0 %584
    %586 = vrot.lane.b32.xlu0 %v573, 96
    %v587 = vpop.permute.xlu0 %586
    %v592 = vpack.c.bf16 %v583, %v581
    %v593 = vpack.c.bf16 %v587, %v585
    %596 = vrot.lane.b32.xlu0 %v592, 32
    %v597 = vpop.permute.xlu0 %596
    %598 = vrot.lane.b32.xlu0 %v593, 32
    %v599 = vpop.permute.xlu0 %598
    %v601 = vsel %vm51, %v516, 0
    %v604 = vsel %vm51, %v518, 0
    %v607 = vsel %vm51, %v597, 0
    %v610 = vsel %vm51, %v599, 0
    %612 = vmatprep.subr.bf16.mxu0 0
    %613 = vmatpush1.bf16.msra.mxu0 0
    %614 = vmatprep.subr.bf16.mxu0 0
    %615 = vmatpush1.bf16.msra.mxu0 0
    %616 = vmatprep.subr.bf16.mxu0 0
    %617 = vmatpush1.bf16.msra.mxu0 0
    %618 = vmatprep.subr.bf16.mxu0 0
    %619 = vmatpush1.bf16.msra.mxu0 0
    %620 = vmatprep.subr.bf16.mxu0 0
    %621 = vmatpush1.bf16.msra.mxu0 0
    %622 = vmatprep.subr.bf16.mxu0 0
    %623 = vmatpush1.bf16.msra.mxu0 0
    %624 = vmatprep.subr.bf16.mxu0 0
    %625 = vmatpush1.bf16.msra.mxu0 %v146
    %626 = vmatprep.subr.bf16.mxu0 0
    %627 = vmatpush1.bf16.msra.mxu0 %v145
    %628 = vmatprep.subr.bf16.mxu0 0
    %629 = vmatpush2.bf16.msra.mxu0 0
    %630 = vmatprep.subr.bf16.mxu0 0
    %631 = vmatpush2.bf16.msra.mxu0 0
    %632 = vmatprep.subr.bf16.mxu0 0
    %633 = vmatpush2.bf16.msra.mxu0 0
    %634 = vmatprep.subr.bf16.mxu0 0
    %635 = vmatpush2.bf16.msra.mxu0 0
    %636 = vmatprep.subr.bf16.mxu0 0
    %637 = vmatpush2.bf16.msra.mxu0 0
    %638 = vmatprep.subr.bf16.mxu0 0
    %639 = vmatpush2.bf16.msra.mxu0 0
    %640 = vmatprep.subr.bf16.mxu0 0
    %641 = vmatpush2.bf16.msra.mxu0 0
    %642 = vmatprep.subr.bf16.mxu0 0
    %643 = vmatpush2.bf16.msra.mxu0 0
    %644 = vmatprep.mubr.bf16.mxu0 0
    %645 = vmatmul.mubr.bf16.gmra.mxu0 %v601
    %v646 = vpop.f32.mrf.mxu0
    %v647 = vadd.f32 0.0, %v646
    %v648 = vpop.f32.mrf.mxu0
    %v649 = vpop.f32.mrf.mxu0
    %v650 = vadd.f32 0.0, %v649
    %v651 = vpop.f32.mrf.mxu0
    %652 = vmatprep.mubr.bf16.mxu0 0
    %653 = vmatmul.mubr.bf16.gmra.mxu0 %v604
    %v654 = vpop.f32.mrf.mxu0
    %v655 = vadd.f32 0.0, %v654
    %v656 = vpop.f32.mrf.mxu0
    %v657 = vpop.f32.mrf.mxu0
    %v658 = vadd.f32 0.0, %v657
    %v659 = vpop.f32.mrf.mxu0
    %660 = vmatprep.mubr.bf16.mxu0 0
    %661 = vmatmul.mubr.bf16.gmra.mxu0 %v607
    %v662 = vpop.f32.mrf.mxu0
    %v663 = vadd.f32 0.0, %v662
    %v664 = vpop.f32.mrf.mxu0
    %v665 = vpop.f32.mrf.mxu0
    %v666 = vadd.f32 0.0, %v665
    %v667 = vpop.f32.mrf.mxu0
    %668 = vmatprep.mubr.bf16.mxu0 0
    %669 = vmatmul.mubr.bf16.gmra.mxu0 %v610
    %v670 = vpop.f32.mrf.mxu0
    %v671 = vadd.f32 0.0, %v670
    %v672 = vpop.f32.mrf.mxu0
    %v673 = vpop.f32.mrf.mxu0
    %v674 = vadd.f32 0.0, %v673
    %v675 = vpop.f32.mrf.mxu0
    %676 = vdwg.mxu0
    %v677 = vadd.f32 %v647, %v230
    %v678 = vadd.f32 %v650, %v230
    %v679 = vadd.f32 %v655, %v230
    %v680 = vadd.f32 %v658, %v230
    %v681 = vxor.u32 %v677, 2147483648
    %v682 = vxor.u32 %v678, 2147483648
    %v683 = vxor.u32 %v679, 2147483648
    %v684 = vxor.u32 %v680, 2147483648
    %v685 = vmul.f32 %v681, 1.442695
    %v686 = vpow.pop %v685
    %v687 = vmul.f32 %v682, 1.442695
    %v688 = vpow.pop %v687
    %v689 = vmul.f32 %v683, 1.442695
    %v690 = vpow.pop %v689
    %v691 = vmul.f32 %v684, 1.442695
    %v692 = vpow.pop %v691
    %v693 = vadd.f32 %v686, 1.0
    %v694 = vadd.f32 %v688, 1.0
    %v695 = vadd.f32 %v690, 1.0
    %v696 = vadd.f32 %v692, 1.0
    %v697 = vrcp.pop %v693
    %v698 = vmul.f32 1.0, %v697
    %v699 = vrcp.pop %v694
    %v700 = vmul.f32 1.0, %v699
    %v701 = vrcp.pop %v695
    %v702 = vmul.f32 1.0, %v701
    %v703 = vrcp.pop %v696
    %v704 = vmul.f32 1.0, %v703
    %v705 = vadd.f32 %v647, %v266
    %v706 = vadd.f32 %v650, %v266
    %v707 = vadd.f32 %v655, %v266
    %v708 = vadd.f32 %v658, %v266
    %v709 = vtanh.pop %v705
    %v710 = vtanh.pop %v706
    %v711 = vtanh.pop %v707
    %v712 = vtanh.pop %v708
    %v713 = vadd.f32 %v663, %v282
    %v714 = vadd.f32 %v666, %v282
    %v715 = vadd.f32 %v671, %v282
    %v716 = vadd.f32 %v674, %v282
    %v717 = vxor.u32 %v713, 2147483648
    %v718 = vxor.u32 %v714, 2147483648
    %v719 = vxor.u32 %v715, 2147483648
    %v720 = vxor.u32 %v716, 2147483648
    %v721 = vmul.f32 %v717, 1.442695
    %v722 = vpow.pop %v721
    %v723 = vmul.f32 %v718, 1.442695
    %v724 = vpow.pop %v723
    %v725 = vmul.f32 %v719, 1.442695
    %v726 = vpow.pop %v725
    %v727 = vmul.f32 %v720, 1.442695
    %v728 = vpow.pop %v727
    %v729 = vadd.f32 %v722, 1.0
    %v730 = vadd.f32 %v724, 1.0
    %v731 = vadd.f32 %v726, 1.0
    %v732 = vadd.f32 %v728, 1.0
    %v733 = vrcp.pop %v729
    %v734 = vmul.f32 1.0, %v733
    %v735 = vrcp.pop %v730
    %v736 = vmul.f32 1.0, %v735
    %v737 = vrcp.pop %v731
    %v738 = vmul.f32 1.0, %v737
    %v739 = vrcp.pop %v732
    %v740 = vmul.f32 1.0, %v739
    %v741 = vadd.f32 %v663, %v318
    %v742 = vadd.f32 %v666, %v318
    %v743 = vadd.f32 %v671, %v318
    %v744 = vadd.f32 %v674, %v318
    %v745 = vxor.u32 %v741, 2147483648
    %v746 = vxor.u32 %v742, 2147483648
    %v747 = vxor.u32 %v743, 2147483648
    %v748 = vxor.u32 %v744, 2147483648
    %v749 = vmul.f32 %v745, 1.442695
    %v750 = vpow.pop %v749
    %v751 = vmul.f32 %v746, 1.442695
    %v752 = vpow.pop %v751
    %v753 = vmul.f32 %v747, 1.442695
    %v754 = vpow.pop %v753
    %v755 = vmul.f32 %v748, 1.442695
    %v756 = vpow.pop %v755
    %v757 = vadd.f32 %v750, 1.0
    %v758 = vadd.f32 %v752, 1.0
    %v759 = vadd.f32 %v754, 1.0
    %v760 = vadd.f32 %v756, 1.0
    %v761 = vrcp.pop %v757
    %v762 = vmul.f32 1.0, %v761
    %v763 = vrcp.pop %v758
    %v764 = vmul.f32 1.0, %v763
    %v765 = vrcp.pop %v759
    %v766 = vmul.f32 1.0, %v765
    %v767 = vrcp.pop %v760
    %v768 = vmul.f32 1.0, %v767
    %v769 = vmul.f32 %v734, %v455
    %v770 = vmul.f32 %v736, %v456
    %v771 = vmul.f32 %v738, %v457
    %v772 = vmul.f32 %v740, %v458
    %777 = vrot.lane.b32.xlu0 %v709, 96
    %v778 = vpop.permute.xlu0 %777
    %779 = vrot.lane.b32.xlu0 %v710, 96
    %v780 = vpop.permute.xlu0 %779
    %781 = vrot.lane.b32.xlu0 %v711, 96
    %v782 = vpop.permute.xlu0 %781
    %783 = vrot.lane.b32.xlu0 %v712, 96
    %v784 = vpop.permute.xlu0 %783
    %v789 = vmul.f32 %v698, %v778
    %v790 = vmul.f32 %v700, %v780
    %v791 = vmul.f32 %v702, %v782
    %v792 = vmul.f32 %v704, %v784
    %v793 = vpack.c.bf16 %v790, %v789
    %v794 = vpack.c.bf16 %v792, %v791
    %795 = vmatprep.subr.bf16.mxu0 0
    %796 = vmatpush1.bf16.msra.mxu0 0
    %797 = vmatprep.subr.bf16.mxu0 0
    %798 = vmatpush1.bf16.msra.mxu0 0
    %799 = vmatprep.subr.bf16.mxu0 0
    %800 = vmatpush1.bf16.msra.mxu0 0
    %801 = vmatprep.subr.bf16.mxu0 0
    %802 = vmatpush1.bf16.msra.mxu0 0
    %803 = vmatprep.subr.bf16.mxu0 0
    %804 = vmatpush1.bf16.msra.mxu0 0
    %805 = vmatprep.subr.bf16.mxu0 0
    %806 = vmatpush1.bf16.msra.mxu0 0
    %807 = vmatprep.subr.bf16.mxu0 0
    %808 = vmatpush1.bf16.msra.mxu0 %v794
    %809 = vmatprep.subr.bf16.mxu0 0
    %810 = vmatpush1.bf16.msra.mxu0 %v793
    %811 = vmatprep.subr.bf16.mxu0 0
    %812 = vmatpush2.bf16.msra.mxu0 0
    %813 = vmatprep.subr.bf16.mxu0 0
    %814 = vmatpush2.bf16.msra.mxu0 0
    %815 = vmatprep.subr.bf16.mxu0 0
    %816 = vmatpush2.bf16.msra.mxu0 0
    %817 = vmatprep.subr.bf16.mxu0 0
    %818 = vmatpush2.bf16.msra.mxu0 0
    %819 = vmatprep.subr.bf16.mxu0 0
    %820 = vmatpush2.bf16.msra.mxu0 0
    %821 = vmatprep.subr.bf16.mxu0 0
    %822 = vmatpush2.bf16.msra.mxu0 0
    %823 = vmatprep.subr.bf16.mxu0 0
    %824 = vmatpush2.bf16.msra.mxu0 0
    %825 = vmatprep.subr.bf16.mxu0 0
    %826 = vmatpush2.bf16.msra.mxu0 0
    %827 = vmatprep.mubr.bf16.mxu0 0
    %828 = vmatmul.mubr.bf16.gmra.mxu0 %v522
    %v829 = vpop.f32.mrf.mxu0
    %v830 = vadd.f32 0.0, %v829
    %v831 = vpop.f32.mrf.mxu0
    %v832 = vpop.f32.mrf.mxu0
    %v833 = vadd.f32 0.0, %v832
    %v834 = vpop.f32.mrf.mxu0
    %835 = vmatprep.mubr.bf16.mxu0 0
    %836 = vmatmul.mubr.bf16.gmra.mxu0 %v525
    %v837 = vpop.f32.mrf.mxu0
    %v838 = vadd.f32 0.0, %v837
    %v839 = vpop.f32.mrf.mxu0
    %v840 = vpop.f32.mrf.mxu0
    %v841 = vadd.f32 0.0, %v840
    %v842 = vpop.f32.mrf.mxu0
    %843 = vdwg.mxu0
    %848 = vrot.lane.b32.xlu0 %v830, 64
    %v849 = vpop.permute.xlu0 %848
    %850 = vrot.lane.b32.xlu0 %v833, 64
    %v851 = vpop.permute.xlu0 %850
    %852 = vrot.lane.b32.xlu0 %v838, 64
    %v853 = vpop.permute.xlu0 %852
    %854 = vrot.lane.b32.xlu0 %v841, 64
    %v855 = vpop.permute.xlu0 %854
    %v860 = vadd.f32 %v769, %v849
    %v861 = vadd.f32 %v770, %v851
    %v862 = vadd.f32 %v771, %v853
    %v863 = vadd.f32 %v772, %v855
    %v864 = vtanh.pop %v860
    %v865 = vtanh.pop %v861
    %v866 = vtanh.pop %v862
    %v867 = vtanh.pop %v863
    %872 = vrot.lane.b32.xlu0 %v864, 32
    %v873 = vpop.permute.xlu0 %872
    %874 = vrot.lane.b32.xlu0 %v865, 32
    %v875 = vpop.permute.xlu0 %874
    %876 = vrot.lane.b32.xlu0 %v866, 32
    %v877 = vpop.permute.xlu0 %876
    %878 = vrot.lane.b32.xlu0 %v867, 32
    %v879 = vpop.permute.xlu0 %878
    %v884 = vmul.f32 %v762, %v873
    %v885 = vmul.f32 %v764, %v875
    %v886 = vmul.f32 %v766, %v877
    %v887 = vmul.f32 %v768, %v879
    %892 = vrot.lane.b32.xlu0 %v884, 32
    %v893 = vpop.permute.xlu0 %892
    %894 = vrot.lane.b32.xlu0 %v885, 32
    %v895 = vpop.permute.xlu0 %894
    %896 = vrot.lane.b32.xlu0 %v886, 32
    %v897 = vpop.permute.xlu0 %896
    %898 = vrot.lane.b32.xlu0 %v887, 32
    %v899 = vpop.permute.xlu0 %898
    %s904 = scalar_lea.vmem [#allocation5], 64
    %905 = vst.msk [vmem:[%s904] sm:$0xff] %vm51, %v893
    %906 = vst.msk [vmem:[%s904 + $0x8] sm:$0xff] %vm51, %v895
    %907 = vst.msk [vmem:[%s904 + $0x10] sm:$0xff] %vm51, %v897
    %908 = vst.msk [vmem:[%s904 + $0x18] sm:$0xff] %vm51, %v899
    %s909 = scalar_lea.vmem %s0, 64
    %v910 = vld [vmem:[%s909] sm:$0xff]
    %v911 = vld [vmem:[%s909 + $0x8] sm:$0xff]
    %v912 = vld [vmem:[%s909 + $0x10] sm:$0xff]
    %v913 = vld [vmem:[%s909 + $0x18] sm:$0xff]
    %v914 = vpack.c.bf16 %v911, %v910
    %v915 = vpack.c.bf16 %v913, %v912
    %v916 = vpack.c.bf16 %v885, %v884
    %v917 = vpack.c.bf16 %v887, %v886
    %920 = vrot.lane.b32.xlu0 %v916, 32
    %v921 = vpop.permute.xlu0 %920
    %922 = vrot.lane.b32.xlu0 %v917, 32
    %v923 = vpop.permute.xlu0 %922
    %v927 = vsel %vm51, %v914, 0
    %v930 = vsel %vm51, %v915, 0
    %932 = vmatprep.subr.bf16.mxu0 0
    %933 = vmatpush1.bf16.msra.mxu0 0
    %934 = vmatprep.subr.bf16.mxu0 0
    %935 = vmatpush1.bf16.msra.mxu0 0
    %936 = vmatprep.subr.bf16.mxu0 0
    %937 = vmatpush1.bf16.msra.mxu0 0
    %938 = vmatprep.subr.bf16.mxu0 0
    %939 = vmatpush1.bf16.msra.mxu0 0
    %940 = vmatprep.subr.bf16.mxu0 0
    %941 = vmatpush1.bf16.msra.mxu0 0
    %942 = vmatprep.subr.bf16.mxu0 0
    %943 = vmatpush1.bf16.msra.mxu0 0
    %944 = vmatprep.subr.bf16.mxu0 0
    %945 = vmatpush1.bf16.msra.mxu0 %v923
    %946 = vmatprep.subr.bf16.mxu0 0
    %947 = vmatpush1.bf16.msra.mxu0 %v921
    %948 = vmatprep.subr.bf16.mxu0 0
    %949 = vmatpush2.bf16.msra.mxu0 0
    %950 = vmatprep.subr.bf16.mxu0 0
    %951 = vmatpush2.bf16.msra.mxu0 0
    %952 = vmatprep.subr.bf16.mxu0 0
    %953 = vmatpush2.bf16.msra.mxu0 0
    %954 = vmatprep.subr.bf16.mxu0 0
    %955 = vmatpush2.bf16.msra.mxu0 0
    %956 = vmatprep.subr.bf16.mxu0 0
    %957 = vmatpush2.bf16.msra.mxu0 0
    %958 = vmatprep.subr.bf16.mxu0 0
    %959 = vmatpush2.bf16.msra.mxu0 0
    %960 = vmatprep.subr.bf16.mxu0 0
    %961 = vmatpush2.bf16.msra.mxu0 0
    %962 = vmatprep.subr.bf16.mxu0 0
    %963 = vmatpush2.bf16.msra.mxu0 0
    %964 = vmatprep.mubr.bf16.mxu0 0
    %965 = vmatmul.mubr.bf16.gmra.mxu0 %v927
    %v966 = vpop.f32.mrf.mxu0
    %v967 = vadd.f32 0.0, %v966
    %v968 = vpop.f32.mrf.mxu0
    %v969 = vpop.f32.mrf.mxu0
    %v970 = vadd.f32 0.0, %v969
    %v971 = vpop.f32.mrf.mxu0
    %972 = vmatprep.mubr.bf16.mxu0 0
    %973 = vmatmul.mubr.bf16.gmra.mxu0 %v930
    %v974 = vpop.f32.mrf.mxu0
    %v975 = vadd.f32 0.0, %v974
    %v976 = vpop.f32.mrf.mxu0
    %v977 = vpop.f32.mrf.mxu0
    %v978 = vadd.f32 0.0, %v977
    %v979 = vpop.f32.mrf.mxu0
    %980 = vdwg.mxu0
    %985 = vrot.lane.b32.xlu0 %v967, 96
    %v986 = vpop.permute.xlu0 %985
    %987 = vrot.lane.b32.xlu0 %v970, 96
    %v988 = vpop.permute.xlu0 %987
    %989 = vrot.lane.b32.xlu0 %v975, 96
    %v990 = vpop.permute.xlu0 %989
    %991 = vrot.lane.b32.xlu0 %v978, 96
    %v992 = vpop.permute.xlu0 %991
    %v997 = vpack.c.bf16 %v988, %v986
    %v998 = vpack.c.bf16 %v992, %v990
    %1001 = vrot.lane.b32.xlu0 %v997, 32
    %v1002 = vpop.permute.xlu0 %1001
    %1003 = vrot.lane.b32.xlu0 %v998, 32
    %v1004 = vpop.permute.xlu0 %1003
    %v1006 = vsel %vm51, %v921, 0
    %v1009 = vsel %vm51, %v923, 0
    %v1012 = vsel %vm51, %v1002, 0
    %v1015 = vsel %vm51, %v1004, 0
    %1017 = vmatprep.subr.bf16.mxu0 0
    %1018 = vmatpush1.bf16.msra.mxu0 0
    %1019 = vmatprep.subr.bf16.mxu0 0
    %1020 = vmatpush1.bf16.msra.mxu0 0
    %1021 = vmatprep.subr.bf16.mxu0 0
    %1022 = vmatpush1.bf16.msra.mxu0 0
    %1023 = vmatprep.subr.bf16.mxu0 0
    %1024 = vmatpush1.bf16.msra.mxu0 0
    %1025 = vmatprep.subr.bf16.mxu0 0
    %1026 = vmatpush1.bf16.msra.mxu0 0
    %1027 = vmatprep.subr.bf16.mxu0 0
    %1028 = vmatpush1.bf16.msra.mxu0 0
    %1029 = vmatprep.subr.bf16.mxu0 0
    %1030 = vmatpush1.bf16.msra.mxu0 %v146
    %1031 = vmatprep.subr.bf16.mxu0 0
    %1032 = vmatpush1.bf16.msra.mxu0 %v145
    %1033 = vmatprep.subr.bf16.mxu0 0
    %1034 = vmatpush2.bf16.msra.mxu0 0
    %1035 = vmatprep.subr.bf16.mxu0 0
    %1036 = vmatpush2.bf16.msra.mxu0 0
    %1037 = vmatprep.subr.bf16.mxu0 0
    %1038 = vmatpush2.bf16.msra.mxu0 0
    %1039 = vmatprep.subr.bf16.mxu0 0
    %1040 = vmatpush2.bf16.msra.mxu0 0
    %1041 = vmatprep.subr.bf16.mxu0 0
    %1042 = vmatpush2.bf16.msra.mxu0 0
    %1043 = vmatprep.subr.bf16.mxu0 0
    %1044 = vmatpush2.bf16.msra.mxu0 0
    %1045 = vmatprep.subr.bf16.mxu0 0
    %1046 = vmatpush2.bf16.msra.mxu0 0
    %1047 = vmatprep.subr.bf16.mxu0 0
    %1048 = vmatpush2.bf16.msra.mxu0 0
    %1049 = vmatprep.mubr.bf16.mxu0 0
    %1050 = vmatmul.mubr.bf16.gmra.mxu0 %v1006
    %v1051 = vpop.f32.mrf.mxu0
    %v1052 = vadd.f32 0.0, %v1051
    %v1053 = vpop.f32.mrf.mxu0
    %v1054 = vpop.f32.mrf.mxu0
    %v1055 = vadd.f32 0.0, %v1054
    %v1056 = vpop.f32.mrf.mxu0
    %1057 = vmatprep.mubr.bf16.mxu0 0
    %1058 = vmatmul.mubr.bf16.gmra.mxu0 %v1009
    %v1059 = vpop.f32.mrf.mxu0
    %v1060 = vadd.f32 0.0, %v1059
    %v1061 = vpop.f32.mrf.mxu0
    %v1062 = vpop.f32.mrf.mxu0
    %v1063 = vadd.f32 0.0, %v1062
    %v1064 = vpop.f32.mrf.mxu0
    %1065 = vmatprep.mubr.bf16.mxu0 0
    %1066 = vmatmul.mubr.bf16.gmra.mxu0 %v1012
    %v1067 = vpop.f32.mrf.mxu0
    %v1068 = vadd.f32 0.0, %v1067
    %v1069 = vpop.f32.mrf.mxu0
    %v1070 = vpop.f32.mrf.mxu0
    %v1071 = vadd.f32 0.0, %v1070
    %v1072 = vpop.f32.mrf.mxu0
    %1073 = vmatprep.mubr.bf16.mxu0 0
    %1074 = vmatmul.mubr.bf16.gmra.mxu0 %v1015
    %v1075 = vpop.f32.mrf.mxu0
    %v1076 = vadd.f32 0.0, %v1075
    %v1077 = vpop.f32.mrf.mxu0
    %v1078 = vpop.f32.mrf.mxu0
    %v1079 = vadd.f32 0.0, %v1078
    %v1080 = vpop.f32.mrf.mxu0
    %1081 = vdwg.mxu0
    %v1082 = vadd.f32 %v1052, %v230
    %v1083 = vadd.f32 %v1055, %v230
    %v1084 = vadd.f32 %v1060, %v230
    %v1085 = vadd.f32 %v1063, %v230
    %v1086 = vxor.u32 %v1082, 2147483648
    %v1087 = vxor.u32 %v1083, 2147483648
    %v1088 = vxor.u32 %v1084, 2147483648
    %v1089 = vxor.u32 %v1085, 2147483648
    %v1090 = vmul.f32 %v1086, 1.442695
    %v1091 = vpow.pop %v1090
    %v1092 = vmul.f32 %v1087, 1.442695
    %v1093 = vpow.pop %v1092
    %v1094 = vmul.f32 %v1088, 1.442695
    %v1095 = vpow.pop %v1094
    %v1096 = vmul.f32 %v1089, 1.442695
    %v1097 = vpow.pop %v1096
    %v1098 = vadd.f32 %v1091, 1.0
    %v1099 = vadd.f32 %v1093, 1.0
    %v1100 = vadd.f32 %v1095, 1.0
    %v1101 = vadd.f32 %v1097, 1.0
    %v1102 = vrcp.pop %v1098
    %v1103 = vmul.f32 1.0, %v1102
    %v1104 = vrcp.pop %v1099
    %v1105 = vmul.f32 1.0, %v1104
    %v1106 = vrcp.pop %v1100
    %v1107 = vmul.f32 1.0, %v1106
    %v1108 = vrcp.pop %v1101
    %v1109 = vmul.f32 1.0, %v1108
    %v1110 = vadd.f32 %v1052, %v266
    %v1111 = vadd.f32 %v1055, %v266
    %v1112 = vadd.f32 %v1060, %v266
    %v1113 = vadd.f32 %v1063, %v266
    %v1114 = vtanh.pop %v1110
    %v1115 = vtanh.pop %v1111
    %v1116 = vtanh.pop %v1112
    %v1117 = vtanh.pop %v1113
    %v1118 = vadd.f32 %v1068, %v282
    %v1119 = vadd.f32 %v1071, %v282
    %v1120 = vadd.f32 %v1076, %v282
    %v1121 = vadd.f32 %v1079, %v282
    %v1122 = vxor.u32 %v1118, 2147483648
    %v1123 = vxor.u32 %v1119, 2147483648
    %v1124 = vxor.u32 %v1120, 2147483648
    %v1125 = vxor.u32 %v1121, 2147483648
    %v1126 = vmul.f32 %v1122, 1.442695
    %v1127 = vpow.pop %v1126
    %v1128 = vmul.f32 %v1123, 1.442695
    %v1129 = vpow.pop %v1128
    %v1130 = vmul.f32 %v1124, 1.442695
    %v1131 = vpow.pop %v1130
    %v1132 = vmul.f32 %v1125, 1.442695
    %v1133 = vpow.pop %v1132
    %v1134 = vadd.f32 %v1127, 1.0
    %v1135 = vadd.f32 %v1129, 1.0
    %v1136 = vadd.f32 %v1131, 1.0
    %v1137 = vadd.f32 %v1133, 1.0
    %v1138 = vrcp.pop %v1134
    %v1139 = vmul.f32 1.0, %v1138
    %v1140 = vrcp.pop %v1135
    %v1141 = vmul.f32 1.0, %v1140
    %v1142 = vrcp.pop %v1136
    %v1143 = vmul.f32 1.0, %v1142
    %v1144 = vrcp.pop %v1137
    %v1145 = vmul.f32 1.0, %v1144
    %v1146 = vadd.f32 %v1068, %v318
    %v1147 = vadd.f32 %v1071, %v318
    %v1148 = vadd.f32 %v1076, %v318
    %v1149 = vadd.f32 %v1079, %v318
    %v1150 = vxor.u32 %v1146, 2147483648
    %v1151 = vxor.u32 %v1147, 2147483648
    %v1152 = vxor.u32 %v1148, 2147483648
    %v1153 = vxor.u32 %v1149, 2147483648
    %v1154 = vmul.f32 %v1150, 1.442695
    %v1155 = vpow.pop %v1154
    %v1156 = vmul.f32 %v1151, 1.442695
    %v1157 = vpow.pop %v1156
    %v1158 = vmul.f32 %v1152, 1.442695
    %v1159 = vpow.pop %v1158
    %v1160 = vmul.f32 %v1153, 1.442695
    %v1161 = vpow.pop %v1160
    %v1162 = vadd.f32 %v1155, 1.0
    %v1163 = vadd.f32 %v1157, 1.0
    %v1164 = vadd.f32 %v1159, 1.0
    %v1165 = vadd.f32 %v1161, 1.0
    %v1166 = vrcp.pop %v1162
    %v1167 = vmul.f32 1.0, %v1166
    %v1168 = vrcp.pop %v1163
    %v1169 = vmul.f32 1.0, %v1168
    %v1170 = vrcp.pop %v1164
    %v1171 = vmul.f32 1.0, %v1170
    %v1172 = vrcp.pop %v1165
    %v1173 = vmul.f32 1.0, %v1172
    %v1174 = vmul.f32 %v1139, %v860
    %v1175 = vmul.f32 %v1141, %v861
    %v1176 = vmul.f32 %v1143, %v862
    %v1177 = vmul.f32 %v1145, %v863
    %1182 = vrot.lane.b32.xlu0 %v1114, 96
    %v1183 = vpop.permute.xlu0 %1182
    %1184 = vrot.lane.b32.xlu0 %v1115, 96
    %v1185 = vpop.permute.xlu0 %1184
    %1186 = vrot.lane.b32.xlu0 %v1116, 96
    %v1187 = vpop.permute.xlu0 %1186
    %1188 = vrot.lane.b32.xlu0 %v1117, 96
    %v1189 = vpop.permute.xlu0 %1188
    %v1194 = vmul.f32 %v1103, %v1183
    %v1195 = vmul.f32 %v1105, %v1185
    %v1196 = vmul.f32 %v1107, %v1187
    %v1197 = vmul.f32 %v1109, %v1189
    %v1198 = vpack.c.bf16 %v1195, %v1194
    %v1199 = vpack.c.bf16 %v1197, %v1196
    %1200 = vmatprep.subr.bf16.mxu0 0
    %1201 = vmatpush1.bf16.msra.mxu0 0
    %1202 = vmatprep.subr.bf16.mxu0 0
    %1203 = vmatpush1.bf16.msra.mxu0 0
    %1204 = vmatprep.subr.bf16.mxu0 0
    %1205 = vmatpush1.bf16.msra.mxu0 0
    %1206 = vmatprep.subr.bf16.mxu0 0
    %1207 = vmatpush1.bf16.msra.mxu0 0
    %1208 = vmatprep.subr.bf16.mxu0 0
    %1209 = vmatpush1.bf16.msra.mxu0 0
    %1210 = vmatprep.subr.bf16.mxu0 0
    %1211 = vmatpush1.bf16.msra.mxu0 0
    %1212 = vmatprep.subr.bf16.mxu0 0
    %1213 = vmatpush1.bf16.msra.mxu0 %v1199
    %1214 = vmatprep.subr.bf16.mxu0 0
    %1215 = vmatpush1.bf16.msra.mxu0 %v1198
    %1216 = vmatprep.subr.bf16.mxu0 0
    %1217 = vmatpush2.bf16.msra.mxu0 0
    %1218 = vmatprep.subr.bf16.mxu0 0
    %1219 = vmatpush2.bf16.msra.mxu0 0
    %1220 = vmatprep.subr.bf16.mxu0 0
    %1221 = vmatpush2.bf16.msra.mxu0 0
    %1222 = vmatprep.subr.bf16.mxu0 0
    %1223 = vmatpush2.bf16.msra.mxu0 0
    %1224 = vmatprep.subr.bf16.mxu0 0
    %1225 = vmatpush2.bf16.msra.mxu0 0
    %1226 = vmatprep.subr.bf16.mxu0 0
    %1227 = vmatpush2.bf16.msra.mxu0 0
    %1228 = vmatprep.subr.bf16.mxu0 0
    %1229 = vmatpush2.bf16.msra.mxu0 0
    %1230 = vmatprep.subr.bf16.mxu0 0
    %1231 = vmatpush2.bf16.msra.mxu0 0
    %1232 = vmatprep.mubr.bf16.mxu0 0
    %1233 = vmatmul.mubr.bf16.gmra.mxu0 %v927
    %v1234 = vpop.f32.mrf.mxu0
    %v1235 = vadd.f32 0.0, %v1234
    %v1236 = vpop.f32.mrf.mxu0
    %v1237 = vpop.f32.mrf.mxu0
    %v1238 = vadd.f32 0.0, %v1237
    %v1239 = vpop.f32.mrf.mxu0
    %1240 = vmatprep.mubr.bf16.mxu0 0
    %1241 = vmatmul.mubr.bf16.gmra.mxu0 %v930
    %v1242 = vpop.f32.mrf.mxu0
    %v1243 = vadd.f32 0.0, %v1242
    %v1244 = vpop.f32.mrf.mxu0
    %v1245 = vpop.f32.mrf.mxu0
    %v1246 = vadd.f32 0.0, %v1245
    %v1247 = vpop.f32.mrf.mxu0
    %1248 = vdwg.mxu0
    %1253 = vrot.lane.b32.xlu0 %v1235, 64
    %v1254 = vpop.permute.xlu0 %1253
    %1255 = vrot.lane.b32.xlu0 %v1238, 64
    %v1256 = vpop.permute.xlu0 %1255
    %1257 = vrot.lane.b32.xlu0 %v1243, 64
    %v1258 = vpop.permute.xlu0 %1257
    %1259 = vrot.lane.b32.xlu0 %v1246, 64
    %v1260 = vpop.permute.xlu0 %1259
    %v1265 = vadd.f32 %v1174, %v1254
    %v1266 = vadd.f32 %v1175, %v1256
    %v1267 = vadd.f32 %v1176, %v1258
    %v1268 = vadd.f32 %v1177, %v1260
    %v1269 = vtanh.pop %v1265
    %v1270 = vtanh.pop %v1266
    %v1271 = vtanh.pop %v1267
    %v1272 = vtanh.pop %v1268
    %1277 = vrot.lane.b32.xlu0 %v1269, 32
    %v1278 = vpop.permute.xlu0 %1277
    %1279 = vrot.lane.b32.xlu0 %v1270, 32
    %v1280 = vpop.permute.xlu0 %1279
    %1281 = vrot.lane.b32.xlu0 %v1271, 32
    %v1282 = vpop.permute.xlu0 %1281
    %1283 = vrot.lane.b32.xlu0 %v1272, 32
    %v1284 = vpop.permute.xlu0 %1283
    %v1289 = vmul.f32 %v1167, %v1278
    %v1290 = vmul.f32 %v1169, %v1280
    %v1291 = vmul.f32 %v1171, %v1282
    %v1292 = vmul.f32 %v1173, %v1284
    %1297 = vrot.lane.b32.xlu0 %v1289, 32
    %v1298 = vpop.permute.xlu0 %1297
    %1299 = vrot.lane.b32.xlu0 %v1290, 32
    %v1300 = vpop.permute.xlu0 %1299
    %1301 = vrot.lane.b32.xlu0 %v1291, 32
    %v1302 = vpop.permute.xlu0 %1301
    %1303 = vrot.lane.b32.xlu0 %v1292, 32
    %v1304 = vpop.permute.xlu0 %1303
    %s1309 = scalar_lea.vmem [#allocation5], 96
    %1310 = vst.msk [vmem:[%s1309] sm:$0xff] %vm51, %v1298
    %1311 = vst.msk [vmem:[%s1309 + $0x8] sm:$0xff] %vm51, %v1300
    %1312 = vst.msk [vmem:[%s1309 + $0x10] sm:$0xff] %vm51, %v1302
    %1313 = vst.msk [vmem:[%s1309 + $0x18] sm:$0xff] %vm51, %v1304
    %s1314 = scalar_lea.vmem %s0, 96
    %v1315 = vld [vmem:[%s1314] sm:$0xff]
    %v1316 = vld [vmem:[%s1314 + $0x8] sm:$0xff]
    %v1317 = vld [vmem:[%s1314 + $0x10] sm:$0xff]
    %v1318 = vld [vmem:[%s1314 + $0x18] sm:$0xff]
    %v1319 = vpack.c.bf16 %v1316, %v1315
    %v1320 = vpack.c.bf16 %v1318, %v1317
    %v1321 = vpack.c.bf16 %v1290, %v1289
    %v1322 = vpack.c.bf16 %v1292, %v1291
    %1325 = vrot.lane.b32.xlu0 %v1321, 32
    %v1326 = vpop.permute.xlu0 %1325
    %1327 = vrot.lane.b32.xlu0 %v1322, 32
    %v1328 = vpop.permute.xlu0 %1327
    %v1332 = vsel %vm51, %v1319, 0
    %v1335 = vsel %vm51, %v1320, 0
    %1337 = vmatprep.subr.bf16.mxu0 0
    %1338 = vmatpush1.bf16.msra.mxu0 0
    %1339 = vmatprep.subr.bf16.mxu0 0
    %1340 = vmatpush1.bf16.msra.mxu0 0
    %1341 = vmatprep.subr.bf16.mxu0 0
    %1342 = vmatpush1.bf16.msra.mxu0 0
    %1343 = vmatprep.subr.bf16.mxu0 0
    %1344 = vmatpush1.bf16.msra.mxu0 0
    %1345 = vmatprep.subr.bf16.mxu0 0
    %1346 = vmatpush1.bf16.msra.mxu0 0
    %1347 = vmatprep.subr.bf16.mxu0 0
    %1348 = vmatpush1.bf16.msra.mxu0 0
    %1349 = vmatprep.subr.bf16.mxu0 0
    %1350 = vmatpush1.bf16.msra.mxu0 %v1328
    %1351 = vmatprep.subr.bf16.mxu0 0
    %1352 = vmatpush1.bf16.msra.mxu0 %v1326
    %1353 = vmatprep.subr.bf16.mxu0 0
    %1354 = vmatpush2.bf16.msra.mxu0 0
    %1355 = vmatprep.subr.bf16.mxu0 0
    %1356 = vmatpush2.bf16.msra.mxu0 0
    %1357 = vmatprep.subr.bf16.mxu0 0
    %1358 = vmatpush2.bf16.msra.mxu0 0
    %1359 = vmatprep.subr.bf16.mxu0 0
    %1360 = vmatpush2.bf16.msra.mxu0 0
    %1361 = vmatprep.subr.bf16.mxu0 0
    %1362 = vmatpush2.bf16.msra.mxu0 0
    %1363 = vmatprep.subr.bf16.mxu0 0
    %1364 = vmatpush2.bf16.msra.mxu0 0
    %1365 = vmatprep.subr.bf16.mxu0 0
    %1366 = vmatpush2.bf16.msra.mxu0 0
    %1367 = vmatprep.subr.bf16.mxu0 0
    %1368 = vmatpush2.bf16.msra.mxu0 0
    %1369 = vmatprep.mubr.bf16.mxu0 0
    %1370 = vmatmul.mubr.bf16.gmra.mxu0 %v1332
    %v1371 = vpop.f32.mrf.mxu0
    %v1372 = vadd.f32 0.0, %v1371
    %v1373 = vpop.f32.mrf.mxu0
    %v1374 = vpop.f32.mrf.mxu0
    %v1375 = vadd.f32 0.0, %v1374
    %v1376 = vpop.f32.mrf.mxu0
    %1377 = vmatprep.mubr.bf16.mxu0 0
    %1378 = vmatmul.mubr.bf16.gmra.mxu0 %v1335
    %v1379 = vpop.f32.mrf.mxu0
    %v1380 = vadd.f32 0.0, %v1379
    %v1381 = vpop.f32.mrf.mxu0
    %v1382 = vpop.f32.mrf.mxu0
    %v1383 = vadd.f32 0.0, %v1382
    %v1384 = vpop.f32.mrf.mxu0
    %1385 = vdwg.mxu0
    %1390 = vrot.lane.b32.xlu0 %v1372, 96
    %v1391 = vpop.permute.xlu0 %1390
    %1392 = vrot.lane.b32.xlu0 %v1375, 96
    %v1393 = vpop.permute.xlu0 %1392
    %1394 = vrot.lane.b32.xlu0 %v1380, 96
    %v1395 = vpop.permute.xlu0 %1394
    %1396 = vrot.lane.b32.xlu0 %v1383, 96
    %v1397 = vpop.permute.xlu0 %1396
    %v1402 = vpack.c.bf16 %v1393, %v1391
    %v1403 = vpack.c.bf16 %v1397, %v1395
    %1406 = vrot.lane.b32.xlu0 %v1402, 32
    %v1407 = vpop.permute.xlu0 %1406
    %1408 = vrot.lane.b32.xlu0 %v1403, 32
    %v1409 = vpop.permute.xlu0 %1408
    %v1411 = vsel %vm51, %v1326, 0
    %v1414 = vsel %vm51, %v1328, 0
    %v1417 = vsel %vm51, %v1407, 0
    %v1420 = vsel %vm51, %v1409, 0
    %1422 = vmatprep.subr.bf16.mxu0 0
    %1423 = vmatpush1.bf16.msra.mxu0 0
    %1424 = vmatprep.subr.bf16.mxu0 0
    %1425 = vmatpush1.bf16.msra.mxu0 0
    %1426 = vmatprep.subr.bf16.mxu0 0
    %1427 = vmatpush1.bf16.msra.mxu0 0
    %1428 = vmatprep.subr.bf16.mxu0 0
    %1429 = vmatpush1.bf16.msra.mxu0 0
    %1430 = vmatprep.subr.bf16.mxu0 0
    %1431 = vmatpush1.bf16.msra.mxu0 0
    %1432 = vmatprep.subr.bf16.mxu0 0
    %1433 = vmatpush1.bf16.msra.mxu0 0
    %1434 = vmatprep.subr.bf16.mxu0 0
    %1435 = vmatpush1.bf16.msra.mxu0 %v146
    %1436 = vmatprep.subr.bf16.mxu0 0
    %1437 = vmatpush1.bf16.msra.mxu0 %v145
    %1438 = vmatprep.subr.bf16.mxu0 0
    %1439 = vmatpush2.bf16.msra.mxu0 0
    %1440 = vmatprep.subr.bf16.mxu0 0
    %1441 = vmatpush2.bf16.msra.mxu0 0
    %1442 = vmatprep.subr.bf16.mxu0 0
    %1443 = vmatpush2.bf16.msra.mxu0 0
    %1444 = vmatprep.subr.bf16.mxu0 0
    %1445 = vmatpush2.bf16.msra.mxu0 0
    %1446 = vmatprep.subr.bf16.mxu0 0
    %1447 = vmatpush2.bf16.msra.mxu0 0
    %1448 = vmatprep.subr.bf16.mxu0 0
    %1449 = vmatpush2.bf16.msra.mxu0 0
    %1450 = vmatprep.subr.bf16.mxu0 0
    %1451 = vmatpush2.bf16.msra.mxu0 0
    %1452 = vmatprep.subr.bf16.mxu0 0
    %1453 = vmatpush2.bf16.msra.mxu0 0
    %1454 = vmatprep.mubr.bf16.mxu0 0
    %1455 = vmatmul.mubr.bf16.gmra.mxu0 %v1411
    %v1456 = vpop.f32.mrf.mxu0
    %v1457 = vadd.f32 0.0, %v1456
    %v1458 = vpop.f32.mrf.mxu0
    %v1459 = vpop.f32.mrf.mxu0
    %v1460 = vadd.f32 0.0, %v1459
    %v1461 = vpop.f32.mrf.mxu0
    %1462 = vmatprep.mubr.bf16.mxu0 0
    %1463 = vmatmul.mubr.bf16.gmra.mxu0 %v1414
    %v1464 = vpop.f32.mrf.mxu0
    %v1465 = vadd.f32 0.0, %v1464
    %v1466 = vpop.f32.mrf.mxu0
    %v1467 = vpop.f32.mrf.mxu0
    %v1468 = vadd.f32 0.0, %v1467
    %v1469 = vpop.f32.mrf.mxu0
    %1470 = vmatprep.mubr.bf16.mxu0 0
    %1471 = vmatmul.mubr.bf16.gmra.mxu0 %v1417
    %v1472 = vpop.f32.mrf.mxu0
    %v1473 = vadd.f32 0.0, %v1472
    %v1474 = vpop.f32.mrf.mxu0
    %v1475 = vpop.f32.mrf.mxu0
    %v1476 = vadd.f32 0.0, %v1475
    %v1477 = vpop.f32.mrf.mxu0
    %1478 = vmatprep.mubr.bf16.mxu0 0
    %1479 = vmatmul.mubr.bf16.gmra.mxu0 %v1420
    %v1480 = vpop.f32.mrf.mxu0
    %v1481 = vadd.f32 0.0, %v1480
    %v1482 = vpop.f32.mrf.mxu0
    %v1483 = vpop.f32.mrf.mxu0
    %v1484 = vadd.f32 0.0, %v1483
    %v1485 = vpop.f32.mrf.mxu0
    %1486 = vdwg.mxu0
    %v1487 = vadd.f32 %v1457, %v230
    %v1488 = vadd.f32 %v1460, %v230
    %v1489 = vadd.f32 %v1465, %v230
    %v1490 = vadd.f32 %v1468, %v230
    %v1491 = vxor.u32 %v1487, 2147483648
    %v1492 = vxor.u32 %v1488, 2147483648
    %v1493 = vxor.u32 %v1489, 2147483648
    %v1494 = vxor.u32 %v1490, 2147483648
    %v1495 = vmul.f32 %v1491, 1.442695
    %v1496 = vpow.pop %v1495
    %v1497 = vmul.f32 %v1492, 1.442695
    %v1498 = vpow.pop %v1497
    %v1499 = vmul.f32 %v1493, 1.442695
    %v1500 = vpow.pop %v1499
    %v1501 = vmul.f32 %v1494, 1.442695
    %v1502 = vpow.pop %v1501
    %v1503 = vadd.f32 %v1496, 1.0
    %v1504 = vadd.f32 %v1498, 1.0
    %v1505 = vadd.f32 %v1500, 1.0
    %v1506 = vadd.f32 %v1502, 1.0
    %v1507 = vrcp.pop %v1503
    %v1508 = vmul.f32 1.0, %v1507
    %v1509 = vrcp.pop %v1504
    %v1510 = vmul.f32 1.0, %v1509
    %v1511 = vrcp.pop %v1505
    %v1512 = vmul.f32 1.0, %v1511
    %v1513 = vrcp.pop %v1506
    %v1514 = vmul.f32 1.0, %v1513
    %v1515 = vadd.f32 %v1457, %v266
    %v1516 = vadd.f32 %v1460, %v266
    %v1517 = vadd.f32 %v1465, %v266
    %v1518 = vadd.f32 %v1468, %v266
    %v1519 = vtanh.pop %v1515
    %v1520 = vtanh.pop %v1516
    %v1521 = vtanh.pop %v1517
    %v1522 = vtanh.pop %v1518
    %v1523 = vadd.f32 %v1473, %v282
    %v1524 = vadd.f32 %v1476, %v282
    %v1525 = vadd.f32 %v1481, %v282
    %v1526 = vadd.f32 %v1484, %v282
    %v1527 = vxor.u32 %v1523, 2147483648
    %v1528 = vxor.u32 %v1524, 2147483648
    %v1529 = vxor.u32 %v1525, 2147483648
    %v1530 = vxor.u32 %v1526, 2147483648
    %v1531 = vmul.f32 %v1527, 1.442695
    %v1532 = vpow.pop %v1531
    %v1533 = vmul.f32 %v1528, 1.442695
    %v1534 = vpow.pop %v1533
    %v1535 = vmul.f32 %v1529, 1.442695
    %v1536 = vpow.pop %v1535
    %v1537 = vmul.f32 %v1530, 1.442695
    %v1538 = vpow.pop %v1537
    %v1539 = vadd.f32 %v1532, 1.0
    %v1540 = vadd.f32 %v1534, 1.0
    %v1541 = vadd.f32 %v1536, 1.0
    %v1542 = vadd.f32 %v1538, 1.0
    %v1543 = vrcp.pop %v1539
    %v1544 = vmul.f32 1.0, %v1543
    %v1545 = vrcp.pop %v1540
    %v1546 = vmul.f32 1.0, %v1545
    %v1547 = vrcp.pop %v1541
    %v1548 = vmul.f32 1.0, %v1547
    %v1549 = vrcp.pop %v1542
    %v1550 = vmul.f32 1.0, %v1549
    %v1551 = vadd.f32 %v1473, %v318
    %v1552 = vadd.f32 %v1476, %v318
    %v1553 = vadd.f32 %v1481, %v318
    %v1554 = vadd.f32 %v1484, %v318
    %v1555 = vxor.u32 %v1551, 2147483648
    %v1556 = vxor.u32 %v1552, 2147483648
    %v1557 = vxor.u32 %v1553, 2147483648
    %v1558 = vxor.u32 %v1554, 2147483648
    %v1559 = vmul.f32 %v1555, 1.442695
    %v1560 = vpow.pop %v1559
    %v1561 = vmul.f32 %v1556, 1.442695
    %v1562 = vpow.pop %v1561
    %v1563 = vmul.f32 %v1557, 1.442695
    %v1564 = vpow.pop %v1563
    %v1565 = vmul.f32 %v1558, 1.442695
    %v1566 = vpow.pop %v1565
    %v1567 = vadd.f32 %v1560, 1.0
    %v1568 = vadd.f32 %v1562, 1.0
    %v1569 = vadd.f32 %v1564, 1.0
    %v1570 = vadd.f32 %v1566, 1.0
    %v1571 = vrcp.pop %v1567
    %v1572 = vmul.f32 1.0, %v1571
    %v1573 = vrcp.pop %v1568
    %v1574 = vmul.f32 1.0, %v1573
    %v1575 = vrcp.pop %v1569
    %v1576 = vmul.f32 1.0, %v1575
    %v1577 = vrcp.pop %v1570
    %v1578 = vmul.f32 1.0, %v1577
    %v1579 = vmul.f32 %v1544, %v1265
    %v1580 = vmul.f32 %v1546, %v1266
    %v1581 = vmul.f32 %v1548, %v1267
    %v1582 = vmul.f32 %v1550, %v1268
    %1587 = vrot.lane.b32.xlu0 %v1519, 96
    %v1588 = vpop.permute.xlu0 %1587
    %1589 = vrot.lane.b32.xlu0 %v1520, 96
    %v1590 = vpop.permute.xlu0 %1589
    %1591 = vrot.lane.b32.xlu0 %v1521, 96
    %v1592 = vpop.permute.xlu0 %1591
    %1593 = vrot.lane.b32.xlu0 %v1522, 96
    %v1594 = vpop.permute.xlu0 %1593
    %v1599 = vmul.f32 %v1508, %v1588
    %v1600 = vmul.f32 %v1510, %v1590
    %v1601 = vmul.f32 %v1512, %v1592
    %v1602 = vmul.f32 %v1514, %v1594
    %v1603 = vpack.c.bf16 %v1600, %v1599
    %v1604 = vpack.c.bf16 %v1602, %v1601
    %1605 = vmatprep.subr.bf16.mxu0 0
    %1606 = vmatpush1.bf16.msra.mxu0 0
    %1607 = vmatprep.subr.bf16.mxu0 0
    %1608 = vmatpush1.bf16.msra.mxu0 0
    %1609 = vmatprep.subr.bf16.mxu0 0
    %1610 = vmatpush1.bf16.msra.mxu0 0
    %1611 = vmatprep.subr.bf16.mxu0 0
    %1612 = vmatpush1.bf16.msra.mxu0 0
    %1613 = vmatprep.subr.bf16.mxu0 0
    %1614 = vmatpush1.bf16.msra.mxu0 0
    %1615 = vmatprep.subr.bf16.mxu0 0
    %1616 = vmatpush1.bf16.msra.mxu0 0
    %1617 = vmatprep.subr.bf16.mxu0 0
    %1618 = vmatpush1.bf16.msra.mxu0 %v1604
    %1619 = vmatprep.subr.bf16.mxu0 0
    %1620 = vmatpush1.bf16.msra.mxu0 %v1603
    %1621 = vmatprep.subr.bf16.mxu0 0
    %1622 = vmatpush2.bf16.msra.mxu0 0
    %1623 = vmatprep.subr.bf16.mxu0 0
    %1624 = vmatpush2.bf16.msra.mxu0 0
    %1625 = vmatprep.subr.bf16.mxu0 0
    %1626 = vmatpush2.bf16.msra.mxu0 0
    %1627 = vmatprep.subr.bf16.mxu0 0
    %1628 = vmatpush2.bf16.msra.mxu0 0
    %1629 = vmatprep.subr.bf16.mxu0 0
    %1630 = vmatpush2.bf16.msra.mxu0 0
    %1631 = vmatprep.subr.bf16.mxu0 0
    %1632 = vmatpush2.bf16.msra.mxu0 0
    %1633 = vmatprep.subr.bf16.mxu0 0
    %1634 = vmatpush2.bf16.msra.mxu0 0
    %1635 = vmatprep.subr.bf16.mxu0 0
    %1636 = vmatpush2.bf16.msra.mxu0 0
    %1637 = vmatprep.mubr.bf16.mxu0 0
    %1638 = vmatmul.mubr.bf16.gmra.mxu0 %v1332
    %v1639 = vpop.f32.mrf.mxu0
    %v1640 = vadd.f32 0.0, %v1639
    %v1641 = vpop.f32.mrf.mxu0
    %v1642 = vpop.f32.mrf.mxu0
    %v1643 = vadd.f32 0.0, %v1642
    %v1644 = vpop.f32.mrf.mxu0
    %1645 = vmatprep.mubr.bf16.mxu0 0
    %1646 = vmatmul.mubr.bf16.gmra.mxu0 %v1335
    %v1647 = vpop.f32.mrf.mxu0
    %v1648 = vadd.f32 0.0, %v1647
    %v1649 = vpop.f32.mrf.mxu0
    %v1650 = vpop.f32.mrf.mxu0
    %v1651 = vadd.f32 0.0, %v1650
    %v1652 = vpop.f32.mrf.mxu0
    %1653 = vdwg.mxu0
    %1658 = vrot.lane.b32.xlu0 %v1640, 64
    %v1659 = vpop.permute.xlu0 %1658
    %1660 = vrot.lane.b32.xlu0 %v1643, 64
    %v1661 = vpop.permute.xlu0 %1660
    %1662 = vrot.lane.b32.xlu0 %v1648, 64
    %v1663 = vpop.permute.xlu0 %1662
    %1664 = vrot.lane.b32.xlu0 %v1651, 64
    %v1665 = vpop.permute.xlu0 %1664
    %v1670 = vadd.f32 %v1579, %v1659
    %v1671 = vadd.f32 %v1580, %v1661
    %v1672 = vadd.f32 %v1581, %v1663
    %v1673 = vadd.f32 %v1582, %v1665
    %v1674 = vtanh.pop %v1670
    %v1675 = vtanh.pop %v1671
    %v1676 = vtanh.pop %v1672
    %v1677 = vtanh.pop %v1673
    %1682 = vrot.lane.b32.xlu0 %v1674, 32
    %v1683 = vpop.permute.xlu0 %1682
    %1684 = vrot.lane.b32.xlu0 %v1675, 32
    %v1685 = vpop.permute.xlu0 %1684
    %1686 = vrot.lane.b32.xlu0 %v1676, 32
    %v1687 = vpop.permute.xlu0 %1686
    %1688 = vrot.lane.b32.xlu0 %v1677, 32
    %v1689 = vpop.permute.xlu0 %1688
    %v1694 = vmul.f32 %v1572, %v1683
    %v1695 = vmul.f32 %v1574, %v1685
    %v1696 = vmul.f32 %v1576, %v1687
    %v1697 = vmul.f32 %v1578, %v1689
    %1702 = vrot.lane.b32.xlu0 %v1694, 32
    %v1703 = vpop.permute.xlu0 %1702
    %1704 = vrot.lane.b32.xlu0 %v1695, 32
    %v1705 = vpop.permute.xlu0 %1704
    %1706 = vrot.lane.b32.xlu0 %v1696, 32
    %v1707 = vpop.permute.xlu0 %1706
    %1708 = vrot.lane.b32.xlu0 %v1697, 32
    %v1709 = vpop.permute.xlu0 %1708
    %s1714 = scalar_lea.vmem [#allocation5], 128
    %1715 = vst.msk [vmem:[%s1714] sm:$0xff] %vm51, %v1703
    %1716 = vst.msk [vmem:[%s1714 + $0x8] sm:$0xff] %vm51, %v1705
    %1717 = vst.msk [vmem:[%s1714 + $0x10] sm:$0xff] %vm51, %v1707
    %1718 = vst.msk [vmem:[%s1714 + $0x18] sm:$0xff] %vm51, %v1709
    %s1719 = scalar_lea.vmem %s0, 128
    %v1720 = vld [vmem:[%s1719] sm:$0xff]
    %v1721 = vld [vmem:[%s1719 + $0x8] sm:$0xff]
    %v1722 = vld [vmem:[%s1719 + $0x10] sm:$0xff]
    %v1723 = vld [vmem:[%s1719 + $0x18] sm:$0xff]
    %v1724 = vpack.c.bf16 %v1721, %v1720
    %v1725 = vpack.c.bf16 %v1723, %v1722
    %v1726 = vpack.c.bf16 %v1695, %v1694
    %v1727 = vpack.c.bf16 %v1697, %v1696
    %1730 = vrot.lane.b32.xlu0 %v1726, 32
    %v1731 = vpop.permute.xlu0 %1730
    %1732 = vrot.lane.b32.xlu0 %v1727, 32
    %v1733 = vpop.permute.xlu0 %1732
    %v1737 = vsel %vm51, %v1724, 0
    %v1740 = vsel %vm51, %v1725, 0
    %1742 = vmatprep.subr.bf16.mxu0 0
    %1743 = vmatpush1.bf16.msra.mxu0 0
    %1744 = vmatprep.subr.bf16.mxu0 0
    %1745 = vmatpush1.bf16.msra.mxu0 0
    %1746 = vmatprep.subr.bf16.mxu0 0
    %1747 = vmatpush1.bf16.msra.mxu0 0
    %1748 = vmatprep.subr.bf16.mxu0 0
    %1749 = vmatpush1.bf16.msra.mxu0 0
    %1750 = vmatprep.subr.bf16.mxu0 0
    %1751 = vmatpush1.bf16.msra.mxu0 0
    %1752 = vmatprep.subr.bf16.mxu0 0
    %1753 = vmatpush1.bf16.msra.mxu0 0
    %1754 = vmatprep.subr.bf16.mxu0 0
    %1755 = vmatpush1.bf16.msra.mxu0 %v1733
    %1756 = vmatprep.subr.bf16.mxu0 0
    %1757 = vmatpush1.bf16.msra.mxu0 %v1731
    %1758 = vmatprep.subr.bf16.mxu0 0
    %1759 = vmatpush2.bf16.msra.mxu0 0
    %1760 = vmatprep.subr.bf16.mxu0 0
    %1761 = vmatpush2.bf16.msra.mxu0 0
    %1762 = vmatprep.subr.bf16.mxu0 0
    %1763 = vmatpush2.bf16.msra.mxu0 0
    %1764 = vmatprep.subr.bf16.mxu0 0
    %1765 = vmatpush2.bf16.msra.mxu0 0
    %1766 = vmatprep.subr.bf16.mxu0 0
    %1767 = vmatpush2.bf16.msra.mxu0 0
    %1768 = vmatprep.subr.bf16.mxu0 0
    %1769 = vmatpush2.bf16.msra.mxu0 0
    %1770 = vmatprep.subr.bf16.mxu0 0
    %1771 = vmatpush2.bf16.msra.mxu0 0
    %1772 = vmatprep.subr.bf16.mxu0 0
    %1773 = vmatpush2.bf16.msra.mxu0 0
    %1774 = vmatprep.mubr.bf16.mxu0 0
    %1775 = vmatmul.mubr.bf16.gmra.mxu0 %v1737
    %v1776 = vpop.f32.mrf.mxu0
    %v1777 = vadd.f32 0.0, %v1776
    %v1778 = vpop.f32.mrf.mxu0
    %v1779 = vpop.f32.mrf.mxu0
    %v1780 = vadd.f32 0.0, %v1779
    %v1781 = vpop.f32.mrf.mxu0
    %1782 = vmatprep.mubr.bf16.mxu0 0
    %1783 = vmatmul.mubr.bf16.gmra.mxu0 %v1740
    %v1784 = vpop.f32.mrf.mxu0
    %v1785 = vadd.f32 0.0, %v1784
    %v1786 = vpop.f32.mrf.mxu0
    %v1787 = vpop.f32.mrf.mxu0
    %v1788 = vadd.f32 0.0, %v1787
    %v1789 = vpop.f32.mrf.mxu0
    %1790 = vdwg.mxu0
    %1795 = vrot.lane.b32.xlu0 %v1777, 96
    %v1796 = vpop.permute.xlu0 %1795
    %1797 = vrot.lane.b32.xlu0 %v1780, 96
    %v1798 = vpop.permute.xlu0 %1797
    %1799 = vrot.lane.b32.xlu0 %v1785, 96
    %v1800 = vpop.permute.xlu0 %1799
    %1801 = vrot.lane.b32.xlu0 %v1788, 96
    %v1802 = vpop.permute.xlu0 %1801
    %v1807 = vpack.c.bf16 %v1798, %v1796
    %v1808 = vpack.c.bf16 %v1802, %v1800
    %1811 = vrot.lane.b32.xlu0 %v1807, 32
    %v1812 = vpop.permute.xlu0 %1811
    %1813 = vrot.lane.b32.xlu0 %v1808, 32
    %v1814 = vpop.permute.xlu0 %1813
    %v1816 = vsel %vm51, %v1731, 0
    %v1819 = vsel %vm51, %v1733, 0
    %v1822 = vsel %vm51, %v1812, 0
    %v1825 = vsel %vm51, %v1814, 0
    %1827 = vmatprep.subr.bf16.mxu0 0
    %1828 = vmatpush1.bf16.msra.mxu0 0
    %1829 = vmatprep.subr.bf16.mxu0 0
    %1830 = vmatpush1.bf16.msra.mxu0 0
    %1831 = vmatprep.subr.bf16.mxu0 0
    %1832 = vmatpush1.bf16.msra.mxu0 0
    %1833 = vmatprep.subr.bf16.mxu0 0
    %1834 = vmatpush1.bf16.msra.mxu0 0
    %1835 = vmatprep.subr.bf16.mxu0 0
    %1836 = vmatpush1.bf16.msra.mxu0 0
    %1837 = vmatprep.subr.bf16.mxu0 0
    %1838 = vmatpush1.bf16.msra.mxu0 0
    %1839 = vmatprep.subr.bf16.mxu0 0
    %1840 = vmatpush1.bf16.msra.mxu0 %v146
    %1841 = vmatprep.subr.bf16.mxu0 0
    %1842 = vmatpush1.bf16.msra.mxu0 %v145
    %1843 = vmatprep.subr.bf16.mxu0 0
    %1844 = vmatpush2.bf16.msra.mxu0 0
    %1845 = vmatprep.subr.bf16.mxu0 0
    %1846 = vmatpush2.bf16.msra.mxu0 0
    %1847 = vmatprep.subr.bf16.mxu0 0
    %1848 = vmatpush2.bf16.msra.mxu0 0
    %1849 = vmatprep.subr.bf16.mxu0 0
    %1850 = vmatpush2.bf16.msra.mxu0 0
    %1851 = vmatprep.subr.bf16.mxu0 0
    %1852 = vmatpush2.bf16.msra.mxu0 0
    %1853 = vmatprep.subr.bf16.mxu0 0
    %1854 = vmatpush2.bf16.msra.mxu0 0
    %1855 = vmatprep.subr.bf16.mxu0 0
    %1856 = vmatpush2.bf16.msra.mxu0 0
    %1857 = vmatprep.subr.bf16.mxu0 0
    %1858 = vmatpush2.bf16.msra.mxu0 0
    %1859 = vmatprep.mubr.bf16.mxu0 0
    %1860 = vmatmul.mubr.bf16.gmra.mxu0 %v1816
    %v1861 = vpop.f32.mrf.mxu0
    %v1862 = vadd.f32 0.0, %v1861
    %v1863 = vpop.f32.mrf.mxu0
    %v1864 = vpop.f32.mrf.mxu0
    %v1865 = vadd.f32 0.0, %v1864
    %v1866 = vpop.f32.mrf.mxu0
    %1867 = vmatprep.mubr.bf16.mxu0 0
    %1868 = vmatmul.mubr.bf16.gmra.mxu0 %v1819
    %v1869 = vpop.f32.mrf.mxu0
    %v1870 = vadd.f32 0.0, %v1869
    %v1871 = vpop.f32.mrf.mxu0
    %v1872 = vpop.f32.mrf.mxu0
    %v1873 = vadd.f32 0.0, %v1872
    %v1874 = vpop.f32.mrf.mxu0
    %1875 = vmatprep.mubr.bf16.mxu0 0
    %1876 = vmatmul.mubr.bf16.gmra.mxu0 %v1822
    %v1877 = vpop.f32.mrf.mxu0
    %v1878 = vadd.f32 0.0, %v1877
    %v1879 = vpop.f32.mrf.mxu0
    %v1880 = vpop.f32.mrf.mxu0
    %v1881 = vadd.f32 0.0, %v1880
    %v1882 = vpop.f32.mrf.mxu0
    %1883 = vmatprep.mubr.bf16.mxu0 0
    %1884 = vmatmul.mubr.bf16.gmra.mxu0 %v1825
    %v1885 = vpop.f32.mrf.mxu0
    %v1886 = vadd.f32 0.0, %v1885
    %v1887 = vpop.f32.mrf.mxu0
    %v1888 = vpop.f32.mrf.mxu0
    %v1889 = vadd.f32 0.0, %v1888
    %v1890 = vpop.f32.mrf.mxu0
    %1891 = vdwg.mxu0
    %v1892 = vadd.f32 %v1862, %v230
    %v1893 = vadd.f32 %v1865, %v230
    %v1894 = vadd.f32 %v1870, %v230
    %v1895 = vadd.f32 %v1873, %v230
    %v1896 = vxor.u32 %v1892, 2147483648
    %v1897 = vxor.u32 %v1893, 2147483648
    %v1898 = vxor.u32 %v1894, 2147483648
    %v1899 = vxor.u32 %v1895, 2147483648
    %v1900 = vmul.f32 %v1896, 1.442695
    %v1901 = vpow.pop %v1900
    %v1902 = vmul.f32 %v1897, 1.442695
    %v1903 = vpow.pop %v1902
    %v1904 = vmul.f32 %v1898, 1.442695
    %v1905 = vpow.pop %v1904
    %v1906 = vmul.f32 %v1899, 1.442695
    %v1907 = vpow.pop %v1906
    %v1908 = vadd.f32 %v1901, 1.0
    %v1909 = vadd.f32 %v1903, 1.0
    %v1910 = vadd.f32 %v1905, 1.0
    %v1911 = vadd.f32 %v1907, 1.0
    %v1912 = vrcp.pop %v1908
    %v1913 = vmul.f32 1.0, %v1912
    %v1914 = vrcp.pop %v1909
    %v1915 = vmul.f32 1.0, %v1914
    %v1916 = vrcp.pop %v1910
    %v1917 = vmul.f32 1.0, %v1916
    %v1918 = vrcp.pop %v1911
    %v1919 = vmul.f32 1.0, %v1918
    %v1920 = vadd.f32 %v1862, %v266
    %v1921 = vadd.f32 %v1865, %v266
    %v1922 = vadd.f32 %v1870, %v266
    %v1923 = vadd.f32 %v1873, %v266
    %v1924 = vtanh.pop %v1920
    %v1925 = vtanh.pop %v1921
    %v1926 = vtanh.pop %v1922
    %v1927 = vtanh.pop %v1923
    %v1928 = vadd.f32 %v1878, %v282
    %v1929 = vadd.f32 %v1881, %v282
    %v1930 = vadd.f32 %v1886, %v282
    %v1931 = vadd.f32 %v1889, %v282
    %v1932 = vxor.u32 %v1928, 2147483648
    %v1933 = vxor.u32 %v1929, 2147483648
    %v1934 = vxor.u32 %v1930, 2147483648
    %v1935 = vxor.u32 %v1931, 2147483648
    %v1936 = vmul.f32 %v1932, 1.442695
    %v1937 = vpow.pop %v1936
    %v1938 = vmul.f32 %v1933, 1.442695
    %v1939 = vpow.pop %v1938
    %v1940 = vmul.f32 %v1934, 1.442695
    %v1941 = vpow.pop %v1940
    %v1942 = vmul.f32 %v1935, 1.442695
    %v1943 = vpow.pop %v1942
    %v1944 = vadd.f32 %v1937, 1.0
    %v1945 = vadd.f32 %v1939, 1.0
    %v1946 = vadd.f32 %v1941, 1.0
    %v1947 = vadd.f32 %v1943, 1.0
    %v1948 = vrcp.pop %v1944
    %v1949 = vmul.f32 1.0, %v1948
    %v1950 = vrcp.pop %v1945
    %v1951 = vmul.f32 1.0, %v1950
    %v1952 = vrcp.pop %v1946
    %v1953 = vmul.f32 1.0, %v1952
    %v1954 = vrcp.pop %v1947
    %v1955 = vmul.f32 1.0, %v1954
    %v1956 = vadd.f32 %v1878, %v318
    %v1957 = vadd.f32 %v1881, %v318
    %v1958 = vadd.f32 %v1886, %v318
    %v1959 = vadd.f32 %v1889, %v318
    %v1960 = vxor.u32 %v1956, 2147483648
    %v1961 = vxor.u32 %v1957, 2147483648
    %v1962 = vxor.u32 %v1958, 2147483648
    %v1963 = vxor.u32 %v1959, 2147483648
    %v1964 = vmul.f32 %v1960, 1.442695
    %v1965 = vpow.pop %v1964
    %v1966 = vmul.f32 %v1961, 1.442695
    %v1967 = vpow.pop %v1966
    %v1968 = vmul.f32 %v1962, 1.442695
    %v1969 = vpow.pop %v1968
    %v1970 = vmul.f32 %v1963, 1.442695
    %v1971 = vpow.pop %v1970
    %v1972 = vadd.f32 %v1965, 1.0
    %v1973 = vadd.f32 %v1967, 1.0
    %v1974 = vadd.f32 %v1969, 1.0
    %v1975 = vadd.f32 %v1971, 1.0
    %v1976 = vrcp.pop %v1972
    %v1977 = vmul.f32 1.0, %v1976
    %v1978 = vrcp.pop %v1973
    %v1979 = vmul.f32 1.0, %v1978
    %v1980 = vrcp.pop %v1974
    %v1981 = vmul.f32 1.0, %v1980
    %v1982 = vrcp.pop %v1975
    %v1983 = vmul.f32 1.0, %v1982
    %v1984 = vmul.f32 %v1949, %v1670
    %v1985 = vmul.f32 %v1951, %v1671
    %v1986 = vmul.f32 %v1953, %v1672
    %v1987 = vmul.f32 %v1955, %v1673
    %1992 = vrot.lane.b32.xlu0 %v1924, 96
    %v1993 = vpop.permute.xlu0 %1992
    %1994 = vrot.lane.b32.xlu0 %v1925, 96
    %v1995 = vpop.permute.xlu0 %1994
    %1996 = vrot.lane.b32.xlu0 %v1926, 96
    %v1997 = vpop.permute.xlu0 %1996
    %1998 = vrot.lane.b32.xlu0 %v1927, 96
    %v1999 = vpop.permute.xlu0 %1998
    %v2004 = vmul.f32 %v1913, %v1993
    %v2005 = vmul.f32 %v1915, %v1995
    %v2006 = vmul.f32 %v1917, %v1997
    %v2007 = vmul.f32 %v1919, %v1999
    %v2008 = vpack.c.bf16 %v2005, %v2004
    %v2009 = vpack.c.bf16 %v2007, %v2006
    %2010 = vmatprep.subr.bf16.mxu0 0
    %2011 = vmatpush1.bf16.msra.mxu0 0
    %2012 = vmatprep.subr.bf16.mxu0 0
    %2013 = vmatpush1.bf16.msra.mxu0 0
    %2014 = vmatprep.subr.bf16.mxu0 0
    %2015 = vmatpush1.bf16.msra.mxu0 0
    %2016 = vmatprep.subr.bf16.mxu0 0
    %2017 = vmatpush1.bf16.msra.mxu0 0
    %2018 = vmatprep.subr.bf16.mxu0 0
    %2019 = vmatpush1.bf16.msra.mxu0 0
    %2020 = vmatprep.subr.bf16.mxu0 0
    %2021 = vmatpush1.bf16.msra.mxu0 0
    %2022 = vmatprep.subr.bf16.mxu0 0
    %2023 = vmatpush1.bf16.msra.mxu0 %v2009
    %2024 = vmatprep.subr.bf16.mxu0 0
    %2025 = vmatpush1.bf16.msra.mxu0 %v2008
    %2026 = vmatprep.subr.bf16.mxu0 0
    %2027 = vmatpush2.bf16.msra.mxu0 0
    %2028 = vmatprep.subr.bf16.mxu0 0
    %2029 = vmatpush2.bf16.msra.mxu0 0
    %2030 = vmatprep.subr.bf16.mxu0 0
    %2031 = vmatpush2.bf16.msra.mxu0 0
    %2032 = vmatprep.subr.bf16.mxu0 0
    %2033 = vmatpush2.bf16.msra.mxu0 0
    %2034 = vmatprep.subr.bf16.mxu0 0
    %2035 = vmatpush2.bf16.msra.mxu0 0
    %2036 = vmatprep.subr.bf16.mxu0 0
    %2037 = vmatpush2.bf16.msra.mxu0 0
    %2038 = vmatprep.subr.bf16.mxu0 0
    %2039 = vmatpush2.bf16.msra.mxu0 0
    %2040 = vmatprep.subr.bf16.mxu0 0
    %2041 = vmatpush2.bf16.msra.mxu0 0
    %2042 = vmatprep.mubr.bf16.mxu0 0
    %2043 = vmatmul.mubr.bf16.gmra.mxu0 %v1737
    %v2044 = vpop.f32.mrf.mxu0
    %v2045 = vadd.f32 0.0, %v2044
    %v2046 = vpop.f32.mrf.mxu0
    %v2047 = vpop.f32.mrf.mxu0
    %v2048 = vadd.f32 0.0, %v2047
    %v2049 = vpop.f32.mrf.mxu0
    %2050 = vmatprep.mubr.bf16.mxu0 0
    %2051 = vmatmul.mubr.bf16.gmra.mxu0 %v1740
    %v2052 = vpop.f32.mrf.mxu0
    %v2053 = vadd.f32 0.0, %v2052
    %v2054 = vpop.f32.mrf.mxu0
    %v2055 = vpop.f32.mrf.mxu0
    %v2056 = vadd.f32 0.0, %v2055
    %v2057 = vpop.f32.mrf.mxu0
    %2058 = vdwg.mxu0
    %2063 = vrot.lane.b32.xlu0 %v2045, 64
    %v2064 = vpop.permute.xlu0 %2063
    %2065 = vrot.lane.b32.xlu0 %v2048, 64
    %v2066 = vpop.permute.xlu0 %2065
    %2067 = vrot.lane.b32.xlu0 %v2053, 64
    %v2068 = vpop.permute.xlu0 %2067
    %2069 = vrot.lane.b32.xlu0 %v2056, 64
    %v2070 = vpop.permute.xlu0 %2069
    %v2075 = vadd.f32 %v1984, %v2064
    %v2076 = vadd.f32 %v1985, %v2066
    %v2077 = vadd.f32 %v1986, %v2068
    %v2078 = vadd.f32 %v1987, %v2070
    %v2079 = vtanh.pop %v2075
    %v2080 = vtanh.pop %v2076
    %v2081 = vtanh.pop %v2077
    %v2082 = vtanh.pop %v2078
    %2087 = vrot.lane.b32.xlu0 %v2079, 32
    %v2088 = vpop.permute.xlu0 %2087
    %2089 = vrot.lane.b32.xlu0 %v2080, 32
    %v2090 = vpop.permute.xlu0 %2089
    %2091 = vrot.lane.b32.xlu0 %v2081, 32
    %v2092 = vpop.permute.xlu0 %2091
    %2093 = vrot.lane.b32.xlu0 %v2082, 32
    %v2094 = vpop.permute.xlu0 %2093
    %v2099 = vmul.f32 %v1977, %v2088
    %v2100 = vmul.f32 %v1979, %v2090
    %v2101 = vmul.f32 %v1981, %v2092
    %v2102 = vmul.f32 %v1983, %v2094
    %2107 = vrot.lane.b32.xlu0 %v2099, 32
    %v2108 = vpop.permute.xlu0 %2107
    %2109 = vrot.lane.b32.xlu0 %v2100, 32
    %v2110 = vpop.permute.xlu0 %2109
    %2111 = vrot.lane.b32.xlu0 %v2101, 32
    %v2112 = vpop.permute.xlu0 %2111
    %2113 = vrot.lane.b32.xlu0 %v2102, 32
    %v2114 = vpop.permute.xlu0 %2113
    %s2119 = scalar_lea.vmem [#allocation5], 160
    %2120 = vst.msk [vmem:[%s2119] sm:$0xff] %vm51, %v2108
    %2121 = vst.msk [vmem:[%s2119 + $0x8] sm:$0xff] %vm51, %v2110
    %2122 = vst.msk [vmem:[%s2119 + $0x10] sm:$0xff] %vm51, %v2112
    %2123 = vst.msk [vmem:[%s2119 + $0x18] sm:$0xff] %vm51, %v2114
    %s2124 = scalar_lea.vmem %s0, 160
    %v2125 = vld [vmem:[%s2124] sm:$0xff]
    %v2126 = vld [vmem:[%s2124 + $0x8] sm:$0xff]
    %v2127 = vld [vmem:[%s2124 + $0x10] sm:$0xff]
    %v2128 = vld [vmem:[%s2124 + $0x18] sm:$0xff]
    %v2129 = vpack.c.bf16 %v2126, %v2125
    %v2130 = vpack.c.bf16 %v2128, %v2127
    %v2131 = vpack.c.bf16 %v2100, %v2099
    %v2132 = vpack.c.bf16 %v2102, %v2101
    %2135 = vrot.lane.b32.xlu0 %v2131, 32
    %v2136 = vpop.permute.xlu0 %2135
    %2137 = vrot.lane.b32.xlu0 %v2132, 32
    %v2138 = vpop.permute.xlu0 %2137
    %v2142 = vsel %vm51, %v2129, 0
    %v2145 = vsel %vm51, %v2130, 0
    %2147 = vmatprep.subr.bf16.mxu0 0
    %2148 = vmatpush1.bf16.msra.mxu0 0
    %2149 = vmatprep.subr.bf16.mxu0 0
    %2150 = vmatpush1.bf16.msra.mxu0 0
    %2151 = vmatprep.subr.bf16.mxu0 0
    %2152 = vmatpush1.bf16.msra.mxu0 0
    %2153 = vmatprep.subr.bf16.mxu0 0
    %2154 = vmatpush1.bf16.msra.mxu0 0
    %2155 = vmatprep.subr.bf16.mxu0 0
    %2156 = vmatpush1.bf16.msra.mxu0 0
    %2157 = vmatprep.subr.bf16.mxu0 0
    %2158 = vmatpush1.bf16.msra.mxu0 0
    %2159 = vmatprep.subr.bf16.mxu0 0
    %2160 = vmatpush1.bf16.msra.mxu0 %v2138
    %2161 = vmatprep.subr.bf16.mxu0 0
    %2162 = vmatpush1.bf16.msra.mxu0 %v2136
    %2163 = vmatprep.subr.bf16.mxu0 0
    %2164 = vmatpush2.bf16.msra.mxu0 0
    %2165 = vmatprep.subr.bf16.mxu0 0
    %2166 = vmatpush2.bf16.msra.mxu0 0
    %2167 = vmatprep.subr.bf16.mxu0 0
    %2168 = vmatpush2.bf16.msra.mxu0 0
    %2169 = vmatprep.subr.bf16.mxu0 0
    %2170 = vmatpush2.bf16.msra.mxu0 0
    %2171 = vmatprep.subr.bf16.mxu0 0
    %2172 = vmatpush2.bf16.msra.mxu0 0
    %2173 = vmatprep.subr.bf16.mxu0 0
    %2174 = vmatpush2.bf16.msra.mxu0 0
    %2175 = vmatprep.subr.bf16.mxu0 0
    %2176 = vmatpush2.bf16.msra.mxu0 0
    %2177 = vmatprep.subr.bf16.mxu0 0
    %2178 = vmatpush2.bf16.msra.mxu0 0
    %2179 = vmatprep.mubr.bf16.mxu0 0
    %2180 = vmatmul.mubr.bf16.gmra.mxu0 %v2142
    %v2181 = vpop.f32.mrf.mxu0
    %v2182 = vadd.f32 0.0, %v2181
    %v2183 = vpop.f32.mrf.mxu0
    %v2184 = vpop.f32.mrf.mxu0
    %v2185 = vadd.f32 0.0, %v2184
    %v2186 = vpop.f32.mrf.mxu0
    %2187 = vmatprep.mubr.bf16.mxu0 0
    %2188 = vmatmul.mubr.bf16.gmra.mxu0 %v2145
    %v2189 = vpop.f32.mrf.mxu0
    %v2190 = vadd.f32 0.0, %v2189
    %v2191 = vpop.f32.mrf.mxu0
    %v2192 = vpop.f32.mrf.mxu0
    %v2193 = vadd.f32 0.0, %v2192
    %v2194 = vpop.f32.mrf.mxu0
    %2195 = vdwg.mxu0
    %2200 = vrot.lane.b32.xlu0 %v2182, 96
    %v2201 = vpop.permute.xlu0 %2200
    %2202 = vrot.lane.b32.xlu0 %v2185, 96
    %v2203 = vpop.permute.xlu0 %2202
    %2204 = vrot.lane.b32.xlu0 %v2190, 96
    %v2205 = vpop.permute.xlu0 %2204
    %2206 = vrot.lane.b32.xlu0 %v2193, 96
    %v2207 = vpop.permute.xlu0 %2206
    %v2212 = vpack.c.bf16 %v2203, %v2201
    %v2213 = vpack.c.bf16 %v2207, %v2205
    %2216 = vrot.lane.b32.xlu0 %v2212, 32
    %v2217 = vpop.permute.xlu0 %2216
    %2218 = vrot.lane.b32.xlu0 %v2213, 32
    %v2219 = vpop.permute.xlu0 %2218
    %v2221 = vsel %vm51, %v2136, 0
    %v2224 = vsel %vm51, %v2138, 0
    %v2227 = vsel %vm51, %v2217, 0
    %v2230 = vsel %vm51, %v2219, 0
    %2232 = vmatprep.subr.bf16.mxu0 0
    %2233 = vmatpush1.bf16.msra.mxu0 0
    %2234 = vmatprep.subr.bf16.mxu0 0
    %2235 = vmatpush1.bf16.msra.mxu0 0
    %2236 = vmatprep.subr.bf16.mxu0 0
    %2237 = vmatpush1.bf16.msra.mxu0 0
    %2238 = vmatprep.subr.bf16.mxu0 0
    %2239 = vmatpush1.bf16.msra.mxu0 0
    %2240 = vmatprep.subr.bf16.mxu0 0
    %2241 = vmatpush1.bf16.msra.mxu0 0
    %2242 = vmatprep.subr.bf16.mxu0 0
    %2243 = vmatpush1.bf16.msra.mxu0 0
    %2244 = vmatprep.subr.bf16.mxu0 0
    %2245 = vmatpush1.bf16.msra.mxu0 %v146
    %2246 = vmatprep.subr.bf16.mxu0 0
    %2247 = vmatpush1.bf16.msra.mxu0 %v145
    %2248 = vmatprep.subr.bf16.mxu0 0
    %2249 = vmatpush2.bf16.msra.mxu0 0
    %2250 = vmatprep.subr.bf16.mxu0 0
    %2251 = vmatpush2.bf16.msra.mxu0 0
    %2252 = vmatprep.subr.bf16.mxu0 0
    %2253 = vmatpush2.bf16.msra.mxu0 0
    %2254 = vmatprep.subr.bf16.mxu0 0
    %2255 = vmatpush2.bf16.msra.mxu0 0
    %2256 = vmatprep.subr.bf16.mxu0 0
    %2257 = vmatpush2.bf16.msra.mxu0 0
    %2258 = vmatprep.subr.bf16.mxu0 0
    %2259 = vmatpush2.bf16.msra.mxu0 0
    %2260 = vmatprep.subr.bf16.mxu0 0
    %2261 = vmatpush2.bf16.msra.mxu0 0
    %2262 = vmatprep.subr.bf16.mxu0 0
    %2263 = vmatpush2.bf16.msra.mxu0 0
    %2264 = vmatprep.mubr.bf16.mxu0 0
    %2265 = vmatmul.mubr.bf16.gmra.mxu0 %v2221
    %v2266 = vpop.f32.mrf.mxu0
    %v2267 = vadd.f32 0.0, %v2266
    %v2268 = vpop.f32.mrf.mxu0
    %v2269 = vpop.f32.mrf.mxu0
    %v2270 = vadd.f32 0.0, %v2269
    %v2271 = vpop.f32.mrf.mxu0
    %2272 = vmatprep.mubr.bf16.mxu0 0
    %2273 = vmatmul.mubr.bf16.gmra.mxu0 %v2224
    %v2274 = vpop.f32.mrf.mxu0
    %v2275 = vadd.f32 0.0, %v2274
    %v2276 = vpop.f32.mrf.mxu0
    %v2277 = vpop.f32.mrf.mxu0
    %v2278 = vadd.f32 0.0, %v2277
    %v2279 = vpop.f32.mrf.mxu0
    %2280 = vmatprep.mubr.bf16.mxu0 0
    %2281 = vmatmul.mubr.bf16.gmra.mxu0 %v2227
    %v2282 = vpop.f32.mrf.mxu0
    %v2283 = vadd.f32 0.0, %v2282
    %v2284 = vpop.f32.mrf.mxu0
    %v2285 = vpop.f32.mrf.mxu0
    %v2286 = vadd.f32 0.0, %v2285
    %v2287 = vpop.f32.mrf.mxu0
    %2288 = vmatprep.mubr.bf16.mxu0 0
    %2289 = vmatmul.mubr.bf16.gmra.mxu0 %v2230
    %v2290 = vpop.f32.mrf.mxu0
    %v2291 = vadd.f32 0.0, %v2290
    %v2292 = vpop.f32.mrf.mxu0
    %v2293 = vpop.f32.mrf.mxu0
    %v2294 = vadd.f32 0.0, %v2293
    %v2295 = vpop.f32.mrf.mxu0
    %2296 = vdwg.mxu0
    %v2297 = vadd.f32 %v2267, %v230
    %v2298 = vadd.f32 %v2270, %v230
    %v2299 = vadd.f32 %v2275, %v230
    %v2300 = vadd.f32 %v2278, %v230
    %v2301 = vxor.u32 %v2297, 2147483648
    %v2302 = vxor.u32 %v2298, 2147483648
    %v2303 = vxor.u32 %v2299, 2147483648
    %v2304 = vxor.u32 %v2300, 2147483648
    %v2305 = vmul.f32 %v2301, 1.442695
    %v2306 = vpow.pop %v2305
    %v2307 = vmul.f32 %v2302, 1.442695
    %v2308 = vpow.pop %v2307
    %v2309 = vmul.f32 %v2303, 1.442695
    %v2310 = vpow.pop %v2309
    %v2311 = vmul.f32 %v2304, 1.442695
    %v2312 = vpow.pop %v2311
    %v2313 = vadd.f32 %v2306, 1.0
    %v2314 = vadd.f32 %v2308, 1.0
    %v2315 = vadd.f32 %v2310, 1.0
    %v2316 = vadd.f32 %v2312, 1.0
    %v2317 = vrcp.pop %v2313
    %v2318 = vmul.f32 1.0, %v2317
    %v2319 = vrcp.pop %v2314
    %v2320 = vmul.f32 1.0, %v2319
    %v2321 = vrcp.pop %v2315
    %v2322 = vmul.f32 1.0, %v2321
    %v2323 = vrcp.pop %v2316
    %v2324 = vmul.f32 1.0, %v2323
    %v2325 = vadd.f32 %v2267, %v266
    %v2326 = vadd.f32 %v2270, %v266
    %v2327 = vadd.f32 %v2275, %v266
    %v2328 = vadd.f32 %v2278, %v266
    %v2329 = vtanh.pop %v2325
    %v2330 = vtanh.pop %v2326
    %v2331 = vtanh.pop %v2327
    %v2332 = vtanh.pop %v2328
    %v2333 = vadd.f32 %v2283, %v282
    %v2334 = vadd.f32 %v2286, %v282
    %v2335 = vadd.f32 %v2291, %v282
    %v2336 = vadd.f32 %v2294, %v282
    %v2337 = vxor.u32 %v2333, 2147483648
    %v2338 = vxor.u32 %v2334, 2147483648
    %v2339 = vxor.u32 %v2335, 2147483648
    %v2340 = vxor.u32 %v2336, 2147483648
    %v2341 = vmul.f32 %v2337, 1.442695
    %v2342 = vpow.pop %v2341
    %v2343 = vmul.f32 %v2338, 1.442695
    %v2344 = vpow.pop %v2343
    %v2345 = vmul.f32 %v2339, 1.442695
    %v2346 = vpow.pop %v2345
    %v2347 = vmul.f32 %v2340, 1.442695
    %v2348 = vpow.pop %v2347
    %v2349 = vadd.f32 %v2342, 1.0
    %v2350 = vadd.f32 %v2344, 1.0
    %v2351 = vadd.f32 %v2346, 1.0
    %v2352 = vadd.f32 %v2348, 1.0
    %v2353 = vrcp.pop %v2349
    %v2354 = vmul.f32 1.0, %v2353
    %v2355 = vrcp.pop %v2350
    %v2356 = vmul.f32 1.0, %v2355
    %v2357 = vrcp.pop %v2351
    %v2358 = vmul.f32 1.0, %v2357
    %v2359 = vrcp.pop %v2352
    %v2360 = vmul.f32 1.0, %v2359
    %v2361 = vadd.f32 %v2283, %v318
    %v2362 = vadd.f32 %v2286, %v318
    %v2363 = vadd.f32 %v2291, %v318
    %v2364 = vadd.f32 %v2294, %v318
    %v2365 = vxor.u32 %v2361, 2147483648
    %v2366 = vxor.u32 %v2362, 2147483648
    %v2367 = vxor.u32 %v2363, 2147483648
    %v2368 = vxor.u32 %v2364, 2147483648
    %v2369 = vmul.f32 %v2365, 1.442695
    %v2370 = vpow.pop %v2369
    %v2371 = vmul.f32 %v2366, 1.442695
    %v2372 = vpow.pop %v2371
    %v2373 = vmul.f32 %v2367, 1.442695
    %v2374 = vpow.pop %v2373
    %v2375 = vmul.f32 %v2368, 1.442695
    %v2376 = vpow.pop %v2375
    %v2377 = vadd.f32 %v2370, 1.0
    %v2378 = vadd.f32 %v2372, 1.0
    %v2379 = vadd.f32 %v2374, 1.0
    %v2380 = vadd.f32 %v2376, 1.0
    %v2381 = vrcp.pop %v2377
    %v2382 = vmul.f32 1.0, %v2381
    %v2383 = vrcp.pop %v2378
    %v2384 = vmul.f32 1.0, %v2383
    %v2385 = vrcp.pop %v2379
    %v2386 = vmul.f32 1.0, %v2385
    %v2387 = vrcp.pop %v2380
    %v2388 = vmul.f32 1.0, %v2387
    %v2389 = vmul.f32 %v2354, %v2075
    %v2390 = vmul.f32 %v2356, %v2076
    %v2391 = vmul.f32 %v2358, %v2077
    %v2392 = vmul.f32 %v2360, %v2078
    %2397 = vrot.lane.b32.xlu0 %v2329, 96
    %v2398 = vpop.permute.xlu0 %2397
    %2399 = vrot.lane.b32.xlu0 %v2330, 96
    %v2400 = vpop.permute.xlu0 %2399
    %2401 = vrot.lane.b32.xlu0 %v2331, 96
    %v2402 = vpop.permute.xlu0 %2401
    %2403 = vrot.lane.b32.xlu0 %v2332, 96
    %v2404 = vpop.permute.xlu0 %2403
    %v2409 = vmul.f32 %v2318, %v2398
    %v2410 = vmul.f32 %v2320, %v2400
    %v2411 = vmul.f32 %v2322, %v2402
    %v2412 = vmul.f32 %v2324, %v2404
    %v2413 = vpack.c.bf16 %v2410, %v2409
    %v2414 = vpack.c.bf16 %v2412, %v2411
    %2415 = vmatprep.subr.bf16.mxu0 0
    %2416 = vmatpush1.bf16.msra.mxu0 0
    %2417 = vmatprep.subr.bf16.mxu0 0
    %2418 = vmatpush1.bf16.msra.mxu0 0
    %2419 = vmatprep.subr.bf16.mxu0 0
    %2420 = vmatpush1.bf16.msra.mxu0 0
    %2421 = vmatprep.subr.bf16.mxu0 0
    %2422 = vmatpush1.bf16.msra.mxu0 0
    %2423 = vmatprep.subr.bf16.mxu0 0
    %2424 = vmatpush1.bf16.msra.mxu0 0
    %2425 = vmatprep.subr.bf16.mxu0 0
    %2426 = vmatpush1.bf16.msra.mxu0 0
    %2427 = vmatprep.subr.bf16.mxu0 0
    %2428 = vmatpush1.bf16.msra.mxu0 %v2414
    %2429 = vmatprep.subr.bf16.mxu0 0
    %2430 = vmatpush1.bf16.msra.mxu0 %v2413
    %2431 = vmatprep.subr.bf16.mxu0 0
    %2432 = vmatpush2.bf16.msra.mxu0 0
    %2433 = vmatprep.subr.bf16.mxu0 0
    %2434 = vmatpush2.bf16.msra.mxu0 0
    %2435 = vmatprep.subr.bf16.mxu0 0
    %2436 = vmatpush2.bf16.msra.mxu0 0
    %2437 = vmatprep.subr.bf16.mxu0 0
    %2438 = vmatpush2.bf16.msra.mxu0 0
    %2439 = vmatprep.subr.bf16.mxu0 0
    %2440 = vmatpush2.bf16.msra.mxu0 0
    %2441 = vmatprep.subr.bf16.mxu0 0
    %2442 = vmatpush2.bf16.msra.mxu0 0
    %2443 = vmatprep.subr.bf16.mxu0 0
    %2444 = vmatpush2.bf16.msra.mxu0 0
    %2445 = vmatprep.subr.bf16.mxu0 0
    %2446 = vmatpush2.bf16.msra.mxu0 0
    %2447 = vmatprep.mubr.bf16.mxu0 0
    %2448 = vmatmul.mubr.bf16.gmra.mxu0 %v2142
    %v2449 = vpop.f32.mrf.mxu0
    %v2450 = vadd.f32 0.0, %v2449
    %v2451 = vpop.f32.mrf.mxu0
    %v2452 = vpop.f32.mrf.mxu0
    %v2453 = vadd.f32 0.0, %v2452
    %v2454 = vpop.f32.mrf.mxu0
    %2455 = vmatprep.mubr.bf16.mxu0 0
    %2456 = vmatmul.mubr.bf16.gmra.mxu0 %v2145
    %v2457 = vpop.f32.mrf.mxu0
    %v2458 = vadd.f32 0.0, %v2457
    %v2459 = vpop.f32.mrf.mxu0
    %v2460 = vpop.f32.mrf.mxu0
    %v2461 = vadd.f32 0.0, %v2460
    %v2462 = vpop.f32.mrf.mxu0
    %2463 = vdwg.mxu0
    %2468 = vrot.lane.b32.xlu0 %v2450, 64
    %v2469 = vpop.permute.xlu0 %2468
    %2470 = vrot.lane.b32.xlu0 %v2453, 64
    %v2471 = vpop.permute.xlu0 %2470
    %2472 = vrot.lane.b32.xlu0 %v2458, 64
    %v2473 = vpop.permute.xlu0 %2472
    %2474 = vrot.lane.b32.xlu0 %v2461, 64
    %v2475 = vpop.permute.xlu0 %2474
    %v2480 = vadd.f32 %v2389, %v2469
    %v2481 = vadd.f32 %v2390, %v2471
    %v2482 = vadd.f32 %v2391, %v2473
    %v2483 = vadd.f32 %v2392, %v2475
    %v2484 = vtanh.pop %v2480
    %v2485 = vtanh.pop %v2481
    %v2486 = vtanh.pop %v2482
    %v2487 = vtanh.pop %v2483
    %2492 = vrot.lane.b32.xlu0 %v2484, 32
    %v2493 = vpop.permute.xlu0 %2492
    %2494 = vrot.lane.b32.xlu0 %v2485, 32
    %v2495 = vpop.permute.xlu0 %2494
    %2496 = vrot.lane.b32.xlu0 %v2486, 32
    %v2497 = vpop.permute.xlu0 %2496
    %2498 = vrot.lane.b32.xlu0 %v2487, 32
    %v2499 = vpop.permute.xlu0 %2498
    %v2504 = vmul.f32 %v2382, %v2493
    %v2505 = vmul.f32 %v2384, %v2495
    %v2506 = vmul.f32 %v2386, %v2497
    %v2507 = vmul.f32 %v2388, %v2499
    %2512 = vrot.lane.b32.xlu0 %v2504, 32
    %v2513 = vpop.permute.xlu0 %2512
    %2514 = vrot.lane.b32.xlu0 %v2505, 32
    %v2515 = vpop.permute.xlu0 %2514
    %2516 = vrot.lane.b32.xlu0 %v2506, 32
    %v2517 = vpop.permute.xlu0 %2516
    %2518 = vrot.lane.b32.xlu0 %v2507, 32
    %v2519 = vpop.permute.xlu0 %2518
    %s2524 = scalar_lea.vmem [#allocation5], 192
    %2525 = vst.msk [vmem:[%s2524] sm:$0xff] %vm51, %v2513
    %2526 = vst.msk [vmem:[%s2524 + $0x8] sm:$0xff] %vm51, %v2515
    %2527 = vst.msk [vmem:[%s2524 + $0x10] sm:$0xff] %vm51, %v2517
    %2528 = vst.msk [vmem:[%s2524 + $0x18] sm:$0xff] %vm51, %v2519
    %s2529 = scalar_lea.vmem %s0, 192
    %v2530 = vld [vmem:[%s2529] sm:$0xff]
    %v2531 = vld [vmem:[%s2529 + $0x8] sm:$0xff]
    %v2532 = vld [vmem:[%s2529 + $0x10] sm:$0xff]
    %v2533 = vld [vmem:[%s2529 + $0x18] sm:$0xff]
    %v2534 = vpack.c.bf16 %v2531, %v2530
    %v2535 = vpack.c.bf16 %v2533, %v2532
    %v2536 = vpack.c.bf16 %v2505, %v2504
    %v2537 = vpack.c.bf16 %v2507, %v2506
    %2540 = vrot.lane.b32.xlu0 %v2536, 32
    %v2541 = vpop.permute.xlu0 %2540
    %2542 = vrot.lane.b32.xlu0 %v2537, 32
    %v2543 = vpop.permute.xlu0 %2542
    %v2547 = vsel %vm51, %v2534, 0
    %v2550 = vsel %vm51, %v2535, 0
    %2552 = vmatprep.subr.bf16.mxu0 0
    %2553 = vmatpush1.bf16.msra.mxu0 0
    %2554 = vmatprep.subr.bf16.mxu0 0
    %2555 = vmatpush1.bf16.msra.mxu0 0
    %2556 = vmatprep.subr.bf16.mxu0 0
    %2557 = vmatpush1.bf16.msra.mxu0 0
    %2558 = vmatprep.subr.bf16.mxu0 0
    %2559 = vmatpush1.bf16.msra.mxu0 0
    %2560 = vmatprep.subr.bf16.mxu0 0
    %2561 = vmatpush1.bf16.msra.mxu0 0
    %2562 = vmatprep.subr.bf16.mxu0 0
    %2563 = vmatpush1.bf16.msra.mxu0 0
    %2564 = vmatprep.subr.bf16.mxu0 0
    %2565 = vmatpush1.bf16.msra.mxu0 %v2543
    %2566 = vmatprep.subr.bf16.mxu0 0
    %2567 = vmatpush1.bf16.msra.mxu0 %v2541
    %2568 = vmatprep.subr.bf16.mxu0 0
    %2569 = vmatpush2.bf16.msra.mxu0 0
    %2570 = vmatprep.subr.bf16.mxu0 0
    %2571 = vmatpush2.bf16.msra.mxu0 0
    %2572 = vmatprep.subr.bf16.mxu0 0
    %2573 = vmatpush2.bf16.msra.mxu0 0
    %2574 = vmatprep.subr.bf16.mxu0 0
    %2575 = vmatpush2.bf16.msra.mxu0 0
    %2576 = vmatprep.subr.bf16.mxu0 0
    %2577 = vmatpush2.bf16.msra.mxu0 0
    %2578 = vmatprep.subr.bf16.mxu0 0
    %2579 = vmatpush2.bf16.msra.mxu0 0
    %2580 = vmatprep.subr.bf16.mxu0 0
    %2581 = vmatpush2.bf16.msra.mxu0 0
    %2582 = vmatprep.subr.bf16.mxu0 0
    %2583 = vmatpush2.bf16.msra.mxu0 0
    %2584 = vmatprep.mubr.bf16.mxu0 0
    %2585 = vmatmul.mubr.bf16.gmra.mxu0 %v2547
    %v2586 = vpop.f32.mrf.mxu0
    %v2587 = vadd.f32 0.0, %v2586
    %v2588 = vpop.f32.mrf.mxu0
    %v2589 = vpop.f32.mrf.mxu0
    %v2590 = vadd.f32 0.0, %v2589
    %v2591 = vpop.f32.mrf.mxu0
    %2592 = vmatprep.mubr.bf16.mxu0 0
    %2593 = vmatmul.mubr.bf16.gmra.mxu0 %v2550
    %v2594 = vpop.f32.mrf.mxu0
    %v2595 = vadd.f32 0.0, %v2594
    %v2596 = vpop.f32.mrf.mxu0
    %v2597 = vpop.f32.mrf.mxu0
    %v2598 = vadd.f32 0.0, %v2597
    %v2599 = vpop.f32.mrf.mxu0
    %2600 = vdwg.mxu0
    %2605 = vrot.lane.b32.xlu0 %v2587, 96
    %v2606 = vpop.permute.xlu0 %2605
    %2607 = vrot.lane.b32.xlu0 %v2590, 96
    %v2608 = vpop.permute.xlu0 %2607
    %2609 = vrot.lane.b32.xlu0 %v2595, 96
    %v2610 = vpop.permute.xlu0 %2609
    %2611 = vrot.lane.b32.xlu0 %v2598, 96
    %v2612 = vpop.permute.xlu0 %2611
    %v2617 = vpack.c.bf16 %v2608, %v2606
    %v2618 = vpack.c.bf16 %v2612, %v2610
    %2621 = vrot.lane.b32.xlu0 %v2617, 32
    %v2622 = vpop.permute.xlu0 %2621
    %2623 = vrot.lane.b32.xlu0 %v2618, 32
    %v2624 = vpop.permute.xlu0 %2623
    %v2626 = vsel %vm51, %v2541, 0
    %v2629 = vsel %vm51, %v2543, 0
    %v2632 = vsel %vm51, %v2622, 0
    %v2635 = vsel %vm51, %v2624, 0
    %2637 = vmatprep.subr.bf16.mxu0 0
    %2638 = vmatpush1.bf16.msra.mxu0 0
    %2639 = vmatprep.subr.bf16.mxu0 0
    %2640 = vmatpush1.bf16.msra.mxu0 0
    %2641 = vmatprep.subr.bf16.mxu0 0
    %2642 = vmatpush1.bf16.msra.mxu0 0
    %2643 = vmatprep.subr.bf16.mxu0 0
    %2644 = vmatpush1.bf16.msra.mxu0 0
    %2645 = vmatprep.subr.bf16.mxu0 0
    %2646 = vmatpush1.bf16.msra.mxu0 0
    %2647 = vmatprep.subr.bf16.mxu0 0
    %2648 = vmatpush1.bf16.msra.mxu0 0
    %2649 = vmatprep.subr.bf16.mxu0 0
    %2650 = vmatpush1.bf16.msra.mxu0 %v146
    %2651 = vmatprep.subr.bf16.mxu0 0
    %2652 = vmatpush1.bf16.msra.mxu0 %v145
    %2653 = vmatprep.subr.bf16.mxu0 0
    %2654 = vmatpush2.bf16.msra.mxu0 0
    %2655 = vmatprep.subr.bf16.mxu0 0
    %2656 = vmatpush2.bf16.msra.mxu0 0
    %2657 = vmatprep.subr.bf16.mxu0 0
    %2658 = vmatpush2.bf16.msra.mxu0 0
    %2659 = vmatprep.subr.bf16.mxu0 0
    %2660 = vmatpush2.bf16.msra.mxu0 0
    %2661 = vmatprep.subr.bf16.mxu0 0
    %2662 = vmatpush2.bf16.msra.mxu0 0
    %2663 = vmatprep.subr.bf16.mxu0 0
    %2664 = vmatpush2.bf16.msra.mxu0 0
    %2665 = vmatprep.subr.bf16.mxu0 0
    %2666 = vmatpush2.bf16.msra.mxu0 0
    %2667 = vmatprep.subr.bf16.mxu0 0
    %2668 = vmatpush2.bf16.msra.mxu0 0
    %2669 = vmatprep.mubr.bf16.mxu0 0
    %2670 = vmatmul.mubr.bf16.gmra.mxu0 %v2626
    %v2671 = vpop.f32.mrf.mxu0
    %v2672 = vadd.f32 0.0, %v2671
    %v2673 = vpop.f32.mrf.mxu0
    %v2674 = vpop.f32.mrf.mxu0
    %v2675 = vadd.f32 0.0, %v2674
    %v2676 = vpop.f32.mrf.mxu0
    %2677 = vmatprep.mubr.bf16.mxu0 0
    %2678 = vmatmul.mubr.bf16.gmra.mxu0 %v2629
    %v2679 = vpop.f32.mrf.mxu0
    %v2680 = vadd.f32 0.0, %v2679
    %v2681 = vpop.f32.mrf.mxu0
    %v2682 = vpop.f32.mrf.mxu0
    %v2683 = vadd.f32 0.0, %v2682
    %v2684 = vpop.f32.mrf.mxu0
    %2685 = vmatprep.mubr.bf16.mxu0 0
    %2686 = vmatmul.mubr.bf16.gmra.mxu0 %v2632
    %v2687 = vpop.f32.mrf.mxu0
    %v2688 = vadd.f32 0.0, %v2687
    %v2689 = vpop.f32.mrf.mxu0
    %v2690 = vpop.f32.mrf.mxu0
    %v2691 = vadd.f32 0.0, %v2690
    %v2692 = vpop.f32.mrf.mxu0
    %2693 = vmatprep.mubr.bf16.mxu0 0
    %2694 = vmatmul.mubr.bf16.gmra.mxu0 %v2635
    %v2695 = vpop.f32.mrf.mxu0
    %v2696 = vadd.f32 0.0, %v2695
    %v2697 = vpop.f32.mrf.mxu0
    %v2698 = vpop.f32.mrf.mxu0
    %v2699 = vadd.f32 0.0, %v2698
    %v2700 = vpop.f32.mrf.mxu0
    %2701 = vdwg.mxu0
    %v2702 = vadd.f32 %v2672, %v230
    %v2703 = vadd.f32 %v2675, %v230
    %v2704 = vadd.f32 %v2680, %v230
    %v2705 = vadd.f32 %v2683, %v230
    %v2706 = vxor.u32 %v2702, 2147483648
    %v2707 = vxor.u32 %v2703, 2147483648
    %v2708 = vxor.u32 %v2704, 2147483648
    %v2709 = vxor.u32 %v2705, 2147483648
    %v2710 = vmul.f32 %v2706, 1.442695
    %v2711 = vpow.pop %v2710
    %v2712 = vmul.f32 %v2707, 1.442695
    %v2713 = vpow.pop %v2712
    %v2714 = vmul.f32 %v2708, 1.442695
    %v2715 = vpow.pop %v2714
    %v2716 = vmul.f32 %v2709, 1.442695
    %v2717 = vpow.pop %v2716
    %v2718 = vadd.f32 %v2711, 1.0
    %v2719 = vadd.f32 %v2713, 1.0
    %v2720 = vadd.f32 %v2715, 1.0
    %v2721 = vadd.f32 %v2717, 1.0
    %v2722 = vrcp.pop %v2718
    %v2723 = vmul.f32 1.0, %v2722
    %v2724 = vrcp.pop %v2719
    %v2725 = vmul.f32 1.0, %v2724
    %v2726 = vrcp.pop %v2720
    %v2727 = vmul.f32 1.0, %v2726
    %v2728 = vrcp.pop %v2721
    %v2729 = vmul.f32 1.0, %v2728
    %v2730 = vadd.f32 %v2672, %v266
    %v2731 = vadd.f32 %v2675, %v266
    %v2732 = vadd.f32 %v2680, %v266
    %v2733 = vadd.f32 %v2683, %v266
    %v2734 = vtanh.pop %v2730
    %v2735 = vtanh.pop %v2731
    %v2736 = vtanh.pop %v2732
    %v2737 = vtanh.pop %v2733
    %v2738 = vadd.f32 %v2688, %v282
    %v2739 = vadd.f32 %v2691, %v282
    %v2740 = vadd.f32 %v2696, %v282
    %v2741 = vadd.f32 %v2699, %v282
    %v2742 = vxor.u32 %v2738, 2147483648
    %v2743 = vxor.u32 %v2739, 2147483648
    %v2744 = vxor.u32 %v2740, 2147483648
    %v2745 = vxor.u32 %v2741, 2147483648
    %v2746 = vmul.f32 %v2742, 1.442695
    %v2747 = vpow.pop %v2746
    %v2748 = vmul.f32 %v2743, 1.442695
    %v2749 = vpow.pop %v2748
    %v2750 = vmul.f32 %v2744, 1.442695
    %v2751 = vpow.pop %v2750
    %v2752 = vmul.f32 %v2745, 1.442695
    %v2753 = vpow.pop %v2752
    %v2754 = vadd.f32 %v2747, 1.0
    %v2755 = vadd.f32 %v2749, 1.0
    %v2756 = vadd.f32 %v2751, 1.0
    %v2757 = vadd.f32 %v2753, 1.0
    %v2758 = vrcp.pop %v2754
    %v2759 = vmul.f32 1.0, %v2758
    %v2760 = vrcp.pop %v2755
    %v2761 = vmul.f32 1.0, %v2760
    %v2762 = vrcp.pop %v2756
    %v2763 = vmul.f32 1.0, %v2762
    %v2764 = vrcp.pop %v2757
    %v2765 = vmul.f32 1.0, %v2764
    %v2766 = vadd.f32 %v2688, %v318
    %v2767 = vadd.f32 %v2691, %v318
    %v2768 = vadd.f32 %v2696, %v318
    %v2769 = vadd.f32 %v2699, %v318
    %v2770 = vxor.u32 %v2766, 2147483648
    %v2771 = vxor.u32 %v2767, 2147483648
    %v2772 = vxor.u32 %v2768, 2147483648
    %v2773 = vxor.u32 %v2769, 2147483648
    %v2774 = vmul.f32 %v2770, 1.442695
    %v2775 = vpow.pop %v2774
    %v2776 = vmul.f32 %v2771, 1.442695
    %v2777 = vpow.pop %v2776
    %v2778 = vmul.f32 %v2772, 1.442695
    %v2779 = vpow.pop %v2778
    %v2780 = vmul.f32 %v2773, 1.442695
    %v2781 = vpow.pop %v2780
    %v2782 = vadd.f32 %v2775, 1.0
    %v2783 = vadd.f32 %v2777, 1.0
    %v2784 = vadd.f32 %v2779, 1.0
    %v2785 = vadd.f32 %v2781, 1.0
    %v2786 = vrcp.pop %v2782
    %v2787 = vmul.f32 1.0, %v2786
    %v2788 = vrcp.pop %v2783
    %v2789 = vmul.f32 1.0, %v2788
    %v2790 = vrcp.pop %v2784
    %v2791 = vmul.f32 1.0, %v2790
    %v2792 = vrcp.pop %v2785
    %v2793 = vmul.f32 1.0, %v2792
    %v2794 = vmul.f32 %v2759, %v2480
    %v2795 = vmul.f32 %v2761, %v2481
    %v2796 = vmul.f32 %v2763, %v2482
    %v2797 = vmul.f32 %v2765, %v2483
    %2802 = vrot.lane.b32.xlu0 %v2734, 96
    %v2803 = vpop.permute.xlu0 %2802
    %2804 = vrot.lane.b32.xlu0 %v2735, 96
    %v2805 = vpop.permute.xlu0 %2804
    %2806 = vrot.lane.b32.xlu0 %v2736, 96
    %v2807 = vpop.permute.xlu0 %2806
    %2808 = vrot.lane.b32.xlu0 %v2737, 96
    %v2809 = vpop.permute.xlu0 %2808
    %v2814 = vmul.f32 %v2723, %v2803
    %v2815 = vmul.f32 %v2725, %v2805
    %v2816 = vmul.f32 %v2727, %v2807
    %v2817 = vmul.f32 %v2729, %v2809
    %v2818 = vpack.c.bf16 %v2815, %v2814
    %v2819 = vpack.c.bf16 %v2817, %v2816
    %2820 = vmatprep.subr.bf16.mxu0 0
    %2821 = vmatpush1.bf16.msra.mxu0 0
    %2822 = vmatprep.subr.bf16.mxu0 0
    %2823 = vmatpush1.bf16.msra.mxu0 0
    %2824 = vmatprep.subr.bf16.mxu0 0
    %2825 = vmatpush1.bf16.msra.mxu0 0
    %2826 = vmatprep.subr.bf16.mxu0 0
    %2827 = vmatpush1.bf16.msra.mxu0 0
    %2828 = vmatprep.subr.bf16.mxu0 0
    %2829 = vmatpush1.bf16.msra.mxu0 0
    %2830 = vmatprep.subr.bf16.mxu0 0
    %2831 = vmatpush1.bf16.msra.mxu0 0
    %2832 = vmatprep.subr.bf16.mxu0 0
    %2833 = vmatpush1.bf16.msra.mxu0 %v2819
    %2834 = vmatprep.subr.bf16.mxu0 0
    %2835 = vmatpush1.bf16.msra.mxu0 %v2818
    %2836 = vmatprep.subr.bf16.mxu0 0
    %2837 = vmatpush2.bf16.msra.mxu0 0
    %2838 = vmatprep.subr.bf16.mxu0 0
    %2839 = vmatpush2.bf16.msra.mxu0 0
    %2840 = vmatprep.subr.bf16.mxu0 0
    %2841 = vmatpush2.bf16.msra.mxu0 0
    %2842 = vmatprep.subr.bf16.mxu0 0
    %2843 = vmatpush2.bf16.msra.mxu0 0
    %2844 = vmatprep.subr.bf16.mxu0 0
    %2845 = vmatpush2.bf16.msra.mxu0 0
    %2846 = vmatprep.subr.bf16.mxu0 0
    %2847 = vmatpush2.bf16.msra.mxu0 0
    %2848 = vmatprep.subr.bf16.mxu0 0
    %2849 = vmatpush2.bf16.msra.mxu0 0
    %2850 = vmatprep.subr.bf16.mxu0 0
    %2851 = vmatpush2.bf16.msra.mxu0 0
    %2852 = vmatprep.mubr.bf16.mxu0 0
    %2853 = vmatmul.mubr.bf16.gmra.mxu0 %v2547
    %v2854 = vpop.f32.mrf.mxu0
    %v2855 = vadd.f32 0.0, %v2854
    %v2856 = vpop.f32.mrf.mxu0
    %v2857 = vpop.f32.mrf.mxu0
    %v2858 = vadd.f32 0.0, %v2857
    %v2859 = vpop.f32.mrf.mxu0
    %2860 = vmatprep.mubr.bf16.mxu0 0
    %2861 = vmatmul.mubr.bf16.gmra.mxu0 %v2550
    %v2862 = vpop.f32.mrf.mxu0
    %v2863 = vadd.f32 0.0, %v2862
    %v2864 = vpop.f32.mrf.mxu0
    %v2865 = vpop.f32.mrf.mxu0
    %v2866 = vadd.f32 0.0, %v2865
    %v2867 = vpop.f32.mrf.mxu0
    %2868 = vdwg.mxu0
    %2873 = vrot.lane.b32.xlu0 %v2855, 64
    %v2874 = vpop.permute.xlu0 %2873
    %2875 = vrot.lane.b32.xlu0 %v2858, 64
    %v2876 = vpop.permute.xlu0 %2875
    %2877 = vrot.lane.b32.xlu0 %v2863, 64
    %v2878 = vpop.permute.xlu0 %2877
    %2879 = vrot.lane.b32.xlu0 %v2866, 64
    %v2880 = vpop.permute.xlu0 %2879
    %v2885 = vadd.f32 %v2794, %v2874
    %v2886 = vadd.f32 %v2795, %v2876
    %v2887 = vadd.f32 %v2796, %v2878
    %v2888 = vadd.f32 %v2797, %v2880
    %v2889 = vtanh.pop %v2885
    %v2890 = vtanh.pop %v2886
    %v2891 = vtanh.pop %v2887
    %v2892 = vtanh.pop %v2888
    %2897 = vrot.lane.b32.xlu0 %v2889, 32
    %v2898 = vpop.permute.xlu0 %2897
    %2899 = vrot.lane.b32.xlu0 %v2890, 32
    %v2900 = vpop.permute.xlu0 %2899
    %2901 = vrot.lane.b32.xlu0 %v2891, 32
    %v2902 = vpop.permute.xlu0 %2901
    %2903 = vrot.lane.b32.xlu0 %v2892, 32
    %v2904 = vpop.permute.xlu0 %2903
    %v2909 = vmul.f32 %v2787, %v2898
    %v2910 = vmul.f32 %v2789, %v2900
    %v2911 = vmul.f32 %v2791, %v2902
    %v2912 = vmul.f32 %v2793, %v2904
    %2917 = vrot.lane.b32.xlu0 %v2909, 32
    %v2918 = vpop.permute.xlu0 %2917
    %2919 = vrot.lane.b32.xlu0 %v2910, 32
    %v2920 = vpop.permute.xlu0 %2919
    %2921 = vrot.lane.b32.xlu0 %v2911, 32
    %v2922 = vpop.permute.xlu0 %2921
    %2923 = vrot.lane.b32.xlu0 %v2912, 32
    %v2924 = vpop.permute.xlu0 %2923
    %s2929 = scalar_lea.vmem [#allocation5], 224
    %2930 = vst.msk [vmem:[%s2929] sm:$0xff] %vm51, %v2918
    %2931 = vst.msk [vmem:[%s2929 + $0x8] sm:$0xff] %vm51, %v2920
    %2932 = vst.msk [vmem:[%s2929 + $0x10] sm:$0xff] %vm51, %v2922
    %2933 = vst.msk [vmem:[%s2929 + $0x18] sm:$0xff] %vm51, %v2924
    %s2934 = scalar_lea.vmem %s0, 224
    %v2935 = vld [vmem:[%s2934] sm:$0xff]
    %v2936 = vld [vmem:[%s2934 + $0x8] sm:$0xff]
    %v2937 = vld [vmem:[%s2934 + $0x10] sm:$0xff]
    %v2938 = vld [vmem:[%s2934 + $0x18] sm:$0xff]
    %v2939 = vpack.c.bf16 %v2936, %v2935
    %v2940 = vpack.c.bf16 %v2938, %v2937
    %v2941 = vpack.c.bf16 %v2910, %v2909
    %v2942 = vpack.c.bf16 %v2912, %v2911
    %2945 = vrot.lane.b32.xlu0 %v2941, 32
    %v2946 = vpop.permute.xlu0 %2945
    %2947 = vrot.lane.b32.xlu0 %v2942, 32
    %v2948 = vpop.permute.xlu0 %2947
    %v2952 = vsel %vm51, %v2939, 0
    %v2955 = vsel %vm51, %v2940, 0
    %2957 = vmatprep.subr.bf16.mxu0 0
    %2958 = vmatpush1.bf16.msra.mxu0 0
    %2959 = vmatprep.subr.bf16.mxu0 0
    %2960 = vmatpush1.bf16.msra.mxu0 0
    %2961 = vmatprep.subr.bf16.mxu0 0
    %2962 = vmatpush1.bf16.msra.mxu0 0
    %2963 = vmatprep.subr.bf16.mxu0 0
    %2964 = vmatpush1.bf16.msra.mxu0 0
    %2965 = vmatprep.subr.bf16.mxu0 0
    %2966 = vmatpush1.bf16.msra.mxu0 0
    %2967 = vmatprep.subr.bf16.mxu0 0
    %2968 = vmatpush1.bf16.msra.mxu0 0
    %2969 = vmatprep.subr.bf16.mxu0 0
    %2970 = vmatpush1.bf16.msra.mxu0 %v2948
    %2971 = vmatprep.subr.bf16.mxu0 0
    %2972 = vmatpush1.bf16.msra.mxu0 %v2946
    %2973 = vmatprep.subr.bf16.mxu0 0
    %2974 = vmatpush2.bf16.msra.mxu0 0
    %2975 = vmatprep.subr.bf16.mxu0 0
    %2976 = vmatpush2.bf16.msra.mxu0 0
    %2977 = vmatprep.subr.bf16.mxu0 0
    %2978 = vmatpush2.bf16.msra.mxu0 0
    %2979 = vmatprep.subr.bf16.mxu0 0
    %2980 = vmatpush2.bf16.msra.mxu0 0
    %2981 = vmatprep.subr.bf16.mxu0 0
    %2982 = vmatpush2.bf16.msra.mxu0 0
    %2983 = vmatprep.subr.bf16.mxu0 0
    %2984 = vmatpush2.bf16.msra.mxu0 0
    %2985 = vmatprep.subr.bf16.mxu0 0
    %2986 = vmatpush2.bf16.msra.mxu0 0
    %2987 = vmatprep.subr.bf16.mxu0 0
    %2988 = vmatpush2.bf16.msra.mxu0 0
    %2989 = vmatprep.mubr.bf16.mxu0 0
    %2990 = vmatmul.mubr.bf16.gmra.mxu0 %v2952
    %v2991 = vpop.f32.mrf.mxu0
    %v2992 = vadd.f32 0.0, %v2991
    %v2993 = vpop.f32.mrf.mxu0
    %v2994 = vpop.f32.mrf.mxu0
    %v2995 = vadd.f32 0.0, %v2994
    %v2996 = vpop.f32.mrf.mxu0
    %2997 = vmatprep.mubr.bf16.mxu0 0
    %2998 = vmatmul.mubr.bf16.gmra.mxu0 %v2955
    %v2999 = vpop.f32.mrf.mxu0
    %v3000 = vadd.f32 0.0, %v2999
    %v3001 = vpop.f32.mrf.mxu0
    %v3002 = vpop.f32.mrf.mxu0
    %v3003 = vadd.f32 0.0, %v3002
    %v3004 = vpop.f32.mrf.mxu0
    %3005 = vdwg.mxu0
    %3010 = vrot.lane.b32.xlu0 %v2992, 96
    %v3011 = vpop.permute.xlu0 %3010
    %3012 = vrot.lane.b32.xlu0 %v2995, 96
    %v3013 = vpop.permute.xlu0 %3012
    %3014 = vrot.lane.b32.xlu0 %v3000, 96
    %v3015 = vpop.permute.xlu0 %3014
    %3016 = vrot.lane.b32.xlu0 %v3003, 96
    %v3017 = vpop.permute.xlu0 %3016
    %v3022 = vpack.c.bf16 %v3013, %v3011
    %v3023 = vpack.c.bf16 %v3017, %v3015
    %3026 = vrot.lane.b32.xlu0 %v3022, 32
    %v3027 = vpop.permute.xlu0 %3026
    %3028 = vrot.lane.b32.xlu0 %v3023, 32
    %v3029 = vpop.permute.xlu0 %3028
    %v3031 = vsel %vm51, %v2946, 0
    %v3034 = vsel %vm51, %v2948, 0
    %v3037 = vsel %vm51, %v3027, 0
    %v3040 = vsel %vm51, %v3029, 0
    %3042 = vmatprep.subr.bf16.mxu0 0
    %3043 = vmatpush1.bf16.msra.mxu0 0
    %3044 = vmatprep.subr.bf16.mxu0 0
    %3045 = vmatpush1.bf16.msra.mxu0 0
    %3046 = vmatprep.subr.bf16.mxu0 0
    %3047 = vmatpush1.bf16.msra.mxu0 0
    %3048 = vmatprep.subr.bf16.mxu0 0
    %3049 = vmatpush1.bf16.msra.mxu0 0
    %3050 = vmatprep.subr.bf16.mxu0 0
    %3051 = vmatpush1.bf16.msra.mxu0 0
    %3052 = vmatprep.subr.bf16.mxu0 0
    %3053 = vmatpush1.bf16.msra.mxu0 0
    %3054 = vmatprep.subr.bf16.mxu0 0
    %3055 = vmatpush1.bf16.msra.mxu0 %v146
    %3056 = vmatprep.subr.bf16.mxu0 0
    %3057 = vmatpush1.bf16.msra.mxu0 %v145
    %3058 = vmatprep.subr.bf16.mxu0 0
    %3059 = vmatpush2.bf16.msra.mxu0 0
    %3060 = vmatprep.subr.bf16.mxu0 0
    %3061 = vmatpush2.bf16.msra.mxu0 0
    %3062 = vmatprep.subr.bf16.mxu0 0
    %3063 = vmatpush2.bf16.msra.mxu0 0
    %3064 = vmatprep.subr.bf16.mxu0 0
    %3065 = vmatpush2.bf16.msra.mxu0 0
    %3066 = vmatprep.subr.bf16.mxu0 0
    %3067 = vmatpush2.bf16.msra.mxu0 0
    %3068 = vmatprep.subr.bf16.mxu0 0
    %3069 = vmatpush2.bf16.msra.mxu0 0
    %3070 = vmatprep.subr.bf16.mxu0 0
    %3071 = vmatpush2.bf16.msra.mxu0 0
    %3072 = vmatprep.subr.bf16.mxu0 0
    %3073 = vmatpush2.bf16.msra.mxu0 0
    %3074 = vmatprep.mubr.bf16.mxu0 0
    %3075 = vmatmul.mubr.bf16.gmra.mxu0 %v3031
    %v3076 = vpop.f32.mrf.mxu0
    %v3077 = vadd.f32 0.0, %v3076
    %v3078 = vpop.f32.mrf.mxu0
    %v3079 = vpop.f32.mrf.mxu0
    %v3080 = vadd.f32 0.0, %v3079
    %v3081 = vpop.f32.mrf.mxu0
    %3082 = vmatprep.mubr.bf16.mxu0 0
    %3083 = vmatmul.mubr.bf16.gmra.mxu0 %v3034
    %v3084 = vpop.f32.mrf.mxu0
    %v3085 = vadd.f32 0.0, %v3084
    %v3086 = vpop.f32.mrf.mxu0
    %v3087 = vpop.f32.mrf.mxu0
    %v3088 = vadd.f32 0.0, %v3087
    %v3089 = vpop.f32.mrf.mxu0
    %3090 = vmatprep.mubr.bf16.mxu0 0
    %3091 = vmatmul.mubr.bf16.gmra.mxu0 %v3037
    %v3092 = vpop.f32.mrf.mxu0
    %v3093 = vadd.f32 0.0, %v3092
    %v3094 = vpop.f32.mrf.mxu0
    %v3095 = vpop.f32.mrf.mxu0
    %v3096 = vadd.f32 0.0, %v3095
    %v3097 = vpop.f32.mrf.mxu0
    %3098 = vmatprep.mubr.bf16.mxu0 0
    %3099 = vmatmul.mubr.bf16.gmra.mxu0 %v3040
    %v3100 = vpop.f32.mrf.mxu0
    %v3101 = vadd.f32 0.0, %v3100
    %v3102 = vpop.f32.mrf.mxu0
    %v3103 = vpop.f32.mrf.mxu0
    %v3104 = vadd.f32 0.0, %v3103
    %v3105 = vpop.f32.mrf.mxu0
    %3106 = vdwg.mxu0
    %v3107 = vadd.f32 %v3077, %v230
    %v3108 = vadd.f32 %v3080, %v230
    %v3109 = vadd.f32 %v3085, %v230
    %v3110 = vadd.f32 %v3088, %v230
    %v3111 = vxor.u32 %v3107, 2147483648
    %v3112 = vxor.u32 %v3108, 2147483648
    %v3113 = vxor.u32 %v3109, 2147483648
    %v3114 = vxor.u32 %v3110, 2147483648
    %v3115 = vmul.f32 %v3111, 1.442695
    %v3116 = vpow.pop %v3115
    %v3117 = vmul.f32 %v3112, 1.442695
    %v3118 = vpow.pop %v3117
    %v3119 = vmul.f32 %v3113, 1.442695
    %v3120 = vpow.pop %v3119
    %v3121 = vmul.f32 %v3114, 1.442695
    %v3122 = vpow.pop %v3121
    %v3123 = vadd.f32 %v3116, 1.0
    %v3124 = vadd.f32 %v3118, 1.0
    %v3125 = vadd.f32 %v3120, 1.0
    %v3126 = vadd.f32 %v3122, 1.0
    %v3127 = vrcp.pop %v3123
    %v3128 = vmul.f32 1.0, %v3127
    %v3129 = vrcp.pop %v3124
    %v3130 = vmul.f32 1.0, %v3129
    %v3131 = vrcp.pop %v3125
    %v3132 = vmul.f32 1.0, %v3131
    %v3133 = vrcp.pop %v3126
    %v3134 = vmul.f32 1.0, %v3133
    %v3135 = vadd.f32 %v3077, %v266
    %v3136 = vadd.f32 %v3080, %v266
    %v3137 = vadd.f32 %v3085, %v266
    %v3138 = vadd.f32 %v3088, %v266
    %v3139 = vtanh.pop %v3135
    %v3140 = vtanh.pop %v3136
    %v3141 = vtanh.pop %v3137
    %v3142 = vtanh.pop %v3138
    %v3143 = vadd.f32 %v3093, %v282
    %v3144 = vadd.f32 %v3096, %v282
    %v3145 = vadd.f32 %v3101, %v282
    %v3146 = vadd.f32 %v3104, %v282
    %v3147 = vxor.u32 %v3143, 2147483648
    %v3148 = vxor.u32 %v3144, 2147483648
    %v3149 = vxor.u32 %v3145, 2147483648
    %v3150 = vxor.u32 %v3146, 2147483648
    %v3151 = vmul.f32 %v3147, 1.442695
    %v3152 = vpow.pop %v3151
    %v3153 = vmul.f32 %v3148, 1.442695
    %v3154 = vpow.pop %v3153
    %v3155 = vmul.f32 %v3149, 1.442695
    %v3156 = vpow.pop %v3155
    %v3157 = vmul.f32 %v3150, 1.442695
    %v3158 = vpow.pop %v3157
    %v3159 = vadd.f32 %v3152, 1.0
    %v3160 = vadd.f32 %v3154, 1.0
    %v3161 = vadd.f32 %v3156, 1.0
    %v3162 = vadd.f32 %v3158, 1.0
    %v3163 = vrcp.pop %v3159
    %v3164 = vmul.f32 1.0, %v3163
    %v3165 = vrcp.pop %v3160
    %v3166 = vmul.f32 1.0, %v3165
    %v3167 = vrcp.pop %v3161
    %v3168 = vmul.f32 1.0, %v3167
    %v3169 = vrcp.pop %v3162
    %v3170 = vmul.f32 1.0, %v3169
    %v3171 = vadd.f32 %v3093, %v318
    %v3172 = vadd.f32 %v3096, %v318
    %v3173 = vadd.f32 %v3101, %v318
    %v3174 = vadd.f32 %v3104, %v318
    %v3175 = vxor.u32 %v3171, 2147483648
    %v3176 = vxor.u32 %v3172, 2147483648
    %v3177 = vxor.u32 %v3173, 2147483648
    %v3178 = vxor.u32 %v3174, 2147483648
    %v3179 = vmul.f32 %v3175, 1.442695
    %v3180 = vpow.pop %v3179
    %v3181 = vmul.f32 %v3176, 1.442695
    %v3182 = vpow.pop %v3181
    %v3183 = vmul.f32 %v3177, 1.442695
    %v3184 = vpow.pop %v3183
    %v3185 = vmul.f32 %v3178, 1.442695
    %v3186 = vpow.pop %v3185
    %v3187 = vadd.f32 %v3180, 1.0
    %v3188 = vadd.f32 %v3182, 1.0
    %v3189 = vadd.f32 %v3184, 1.0
    %v3190 = vadd.f32 %v3186, 1.0
    %v3191 = vrcp.pop %v3187
    %v3192 = vmul.f32 1.0, %v3191
    %v3193 = vrcp.pop %v3188
    %v3194 = vmul.f32 1.0, %v3193
    %v3195 = vrcp.pop %v3189
    %v3196 = vmul.f32 1.0, %v3195
    %v3197 = vrcp.pop %v3190
    %v3198 = vmul.f32 1.0, %v3197
    %v3199 = vmul.f32 %v3164, %v2885
    %v3200 = vmul.f32 %v3166, %v2886
    %v3201 = vmul.f32 %v3168, %v2887
    %v3202 = vmul.f32 %v3170, %v2888
    %3207 = vrot.lane.b32.xlu0 %v3139, 96
    %v3208 = vpop.permute.xlu0 %3207
    %3209 = vrot.lane.b32.xlu0 %v3140, 96
    %v3210 = vpop.permute.xlu0 %3209
    %3211 = vrot.lane.b32.xlu0 %v3141, 96
    %v3212 = vpop.permute.xlu0 %3211
    %3213 = vrot.lane.b32.xlu0 %v3142, 96
    %v3214 = vpop.permute.xlu0 %3213
    %v3219 = vmul.f32 %v3128, %v3208
    %v3220 = vmul.f32 %v3130, %v3210
    %v3221 = vmul.f32 %v3132, %v3212
    %v3222 = vmul.f32 %v3134, %v3214
    %v3223 = vpack.c.bf16 %v3220, %v3219
    %v3224 = vpack.c.bf16 %v3222, %v3221
    %3225 = vmatprep.subr.bf16.mxu0 0
    %3226 = vmatpush1.bf16.msra.mxu0 0
    %3227 = vmatprep.subr.bf16.mxu0 0
    %3228 = vmatpush1.bf16.msra.mxu0 0
    %3229 = vmatprep.subr.bf16.mxu0 0
    %3230 = vmatpush1.bf16.msra.mxu0 0
    %3231 = vmatprep.subr.bf16.mxu0 0
    %3232 = vmatpush1.bf16.msra.mxu0 0
    %3233 = vmatprep.subr.bf16.mxu0 0
    %3234 = vmatpush1.bf16.msra.mxu0 0
    %3235 = vmatprep.subr.bf16.mxu0 0
    %3236 = vmatpush1.bf16.msra.mxu0 0
    %3237 = vmatprep.subr.bf16.mxu0 0
    %3238 = vmatpush1.bf16.msra.mxu0 %v3224
    %3239 = vmatprep.subr.bf16.mxu0 0
    %3240 = vmatpush1.bf16.msra.mxu0 %v3223
    %3241 = vmatprep.subr.bf16.mxu0 0
    %3242 = vmatpush2.bf16.msra.mxu0 0
    %3243 = vmatprep.subr.bf16.mxu0 0
    %3244 = vmatpush2.bf16.msra.mxu0 0
    %3245 = vmatprep.subr.bf16.mxu0 0
    %3246 = vmatpush2.bf16.msra.mxu0 0
    %3247 = vmatprep.subr.bf16.mxu0 0
    %3248 = vmatpush2.bf16.msra.mxu0 0
    %3249 = vmatprep.subr.bf16.mxu0 0
    %3250 = vmatpush2.bf16.msra.mxu0 0
    %3251 = vmatprep.subr.bf16.mxu0 0
    %3252 = vmatpush2.bf16.msra.mxu0 0
    %3253 = vmatprep.subr.bf16.mxu0 0
    %3254 = vmatpush2.bf16.msra.mxu0 0
    %3255 = vmatprep.subr.bf16.mxu0 0
    %3256 = vmatpush2.bf16.msra.mxu0 0
    %3257 = vmatprep.mubr.bf16.mxu0 0
    %3258 = vmatmul.mubr.bf16.gmra.mxu0 %v2952
    %v3259 = vpop.f32.mrf.mxu0
    %v3260 = vadd.f32 0.0, %v3259
    %v3261 = vpop.f32.mrf.mxu0
    %v3262 = vpop.f32.mrf.mxu0
    %v3263 = vadd.f32 0.0, %v3262
    %v3264 = vpop.f32.mrf.mxu0
    %3265 = vmatprep.mubr.bf16.mxu0 0
    %3266 = vmatmul.mubr.bf16.gmra.mxu0 %v2955
    %v3267 = vpop.f32.mrf.mxu0
    %v3268 = vadd.f32 0.0, %v3267
    %v3269 = vpop.f32.mrf.mxu0
    %v3270 = vpop.f32.mrf.mxu0
    %v3271 = vadd.f32 0.0, %v3270
    %v3272 = vpop.f32.mrf.mxu0
    %3273 = vdwg.mxu0
    %3278 = vrot.lane.b32.xlu0 %v3260, 64
    %v3279 = vpop.permute.xlu0 %3278
    %3280 = vrot.lane.b32.xlu0 %v3263, 64
    %v3281 = vpop.permute.xlu0 %3280
    %3282 = vrot.lane.b32.xlu0 %v3268, 64
    %v3283 = vpop.permute.xlu0 %3282
    %3284 = vrot.lane.b32.xlu0 %v3271, 64
    %v3285 = vpop.permute.xlu0 %3284
    %v3290 = vadd.f32 %v3199, %v3279
    %v3291 = vadd.f32 %v3200, %v3281
    %v3292 = vadd.f32 %v3201, %v3283
    %v3293 = vadd.f32 %v3202, %v3285
    %v3294 = vtanh.pop %v3290
    %v3295 = vtanh.pop %v3291
    %v3296 = vtanh.pop %v3292
    %v3297 = vtanh.pop %v3293
    %3302 = vrot.lane.b32.xlu0 %v3294, 32
    %v3303 = vpop.permute.xlu0 %3302
    %3304 = vrot.lane.b32.xlu0 %v3295, 32
    %v3305 = vpop.permute.xlu0 %3304
    %3306 = vrot.lane.b32.xlu0 %v3296, 32
    %v3307 = vpop.permute.xlu0 %3306
    %3308 = vrot.lane.b32.xlu0 %v3297, 32
    %v3309 = vpop.permute.xlu0 %3308
    %v3314 = vmul.f32 %v3192, %v3303
    %v3315 = vmul.f32 %v3194, %v3305
    %v3316 = vmul.f32 %v3196, %v3307
    %v3317 = vmul.f32 %v3198, %v3309
    %3322 = vrot.lane.b32.xlu0 %v3314, 32
    %v3323 = vpop.permute.xlu0 %3322
    %3324 = vrot.lane.b32.xlu0 %v3315, 32
    %v3325 = vpop.permute.xlu0 %3324
    %3326 = vrot.lane.b32.xlu0 %v3316, 32
    %v3327 = vpop.permute.xlu0 %3326
    %3328 = vrot.lane.b32.xlu0 %v3317, 32
    %v3329 = vpop.permute.xlu0 %3328
    %s3334 = scalar_lea.vmem [#allocation5], 256
    %3335 = vst.msk [vmem:[%s3334] sm:$0xff] %vm51, %v3323
    %3336 = vst.msk [vmem:[%s3334 + $0x8] sm:$0xff] %vm51, %v3325
    %3337 = vst.msk [vmem:[%s3334 + $0x10] sm:$0xff] %vm51, %v3327
    %3338 = vst.msk [vmem:[%s3334 + $0x18] sm:$0xff] %vm51, %v3329
    %3339 = vst.msk [vmem:[#allocation6] sm:$0xff] %vm51, %v3323
    %3340 = vst.msk [vmem:[#allocation6 + $0x8] sm:$0xff] %vm51, %v3325
    %3341 = vst.msk [vmem:[#allocation6 + $0x10] sm:$0xff] %vm51, %v3327
    %3342 = vst.msk [vmem:[#allocation6 + $0x18] sm:$0xff] %vm51, %v3329
    %3347 = vrot.lane.b32.xlu0 %v3290, 64
    %v3348 = vpop.permute.xlu0 %3347
    %3349 = vrot.lane.b32.xlu0 %v3291, 64
    %v3350 = vpop.permute.xlu0 %3349
    %3351 = vrot.lane.b32.xlu0 %v3292, 64
    %v3352 = vpop.permute.xlu0 %3351
    %3353 = vrot.lane.b32.xlu0 %v3293, 64
    %v3354 = vpop.permute.xlu0 %3353
    %3359 = vst.msk [vmem:[#allocation8] sm:$0xff] %vm51, %v3348
    %3360 = vst.msk [vmem:[#allocation8 + $0x8] sm:$0xff] %vm51, %v3350
    %3361 = vst.msk [vmem:[#allocation8 + $0x10] sm:$0xff] %vm51, %v3352
    %3362 = vst.msk [vmem:[#allocation8 + $0x18] sm:$0xff] %vm51, %v3354
    // Predicated region
    $region38: #{my_lstm_forward.1} parent=1 // pred_check
      _
    $region39: #{my_lstm_forward.1} parent=1 // pred_check_branch
      %3364 = sbr.rel (0) target = $region41
    $region40: #{my_lstm_forward.1} parent=1 // pred_region
      %s3366 = ssub.s32 4608, 4608
      %3367 = vsyncadd [#allocation4], %s3366
      %s3368 = sshll.u32 [#allocation5], 4
      %s3369 = int_to_ptr.vmem [resolvable:$true] %s3368
      %3374 = dma.vmem_to_hbm [thread:$0]  %s3369, 4608, %s8, [#allocation4], 128, 128, 8
    $region41: #{my_lstm_forward.1} parent=1 // pred_fallthru
      _
    // Predicated region
    $region42: #{my_lstm_forward.1} parent=1 // pred_check
      _
    $region43: #{my_lstm_forward.1} parent=1 // pred_check_branch
      %3376 = sbr.rel (0) target = $region45
    $region44: #{my_lstm_forward.1} parent=1 // pred_region
      %s3378 = ssub.s32 512, 512
      %3379 = vsyncadd [#allocation7], %s3378
      %s3380 = sshll.u32 [#allocation6], 4
      %s3381 = int_to_ptr.vmem [resolvable:$true] %s3380
      %3386 = dma.vmem_to_hbm [thread:$0]  %s3381, 512, %s9, [#allocation7], 128, 128, 8
    $region45: #{my_lstm_forward.1} parent=1 // pred_fallthru
      _
    // Predicated region
    $region46: #{my_lstm_forward.1} parent=1 // pred_check
      _
    $region47: #{my_lstm_forward.1} parent=1 // pred_check_branch
      %3388 = sbr.rel (0) target = $region49
    $region48: #{my_lstm_forward.1} parent=1 // pred_region
      %s3390 = ssub.s32 512, 512
      %3391 = vsyncadd [#allocation7], %s3390
      %s3392 = sshll.u32 [#allocation8], 4
      %s3393 = int_to_ptr.vmem [resolvable:$true] %s3392
      %3398 = dma.vmem_to_hbm [thread:$0]  %s3393, 512, %s10, [#allocation7], 128, 128, 8
    $region49: #{my_lstm_forward.1} parent=1 // pred_fallthru
      _
    // Predicated region
    $region50: #{my_lstm_forward.1} parent=1 // pred_check
      _
    $region51: #{my_lstm_forward.1} parent=1 // pred_check_branch
      %3400 = sbr.rel (0) target = $region53
    $region52: #{my_lstm_forward.1} parent=1 // pred_region
      %3401 = dma.done [#allocation4], 4608
    $region53: #{my_lstm_forward.1} parent=1 // pred_fallthru
      _
    // Predicated region
    $region54: #{my_lstm_forward.1} parent=1 // pred_check
      _
    $region55: #{my_lstm_forward.1} parent=1 // pred_check_branch
      %3403 = sbr.rel (0) target = $region57
    $region56: #{my_lstm_forward.1} parent=1 // pred_region
      %3404 = dma.done [#allocation7], 512
    $region57: #{my_lstm_forward.1} parent=1 // pred_fallthru
      _
    // Predicated region
    $region58: #{my_lstm_forward.1} parent=1 // pred_check
      _
    $region59: #{my_lstm_forward.1} parent=1 // pred_check_branch
      %3406 = sbr.rel (0) target = $region61
    $region60: #{my_lstm_forward.1} parent=1 // pred_region
      %3407 = dma.done [#allocation7], 512
    $region61: #{my_lstm_forward.1} parent=1 // pred_fallthru
      _
    %3408 = vsyncpa [#allocation3], 1
    %3409 = vsyncpa [#allocation4], 1
    %3410 = vsyncpa [#allocation7], 1

</llo_original>
